<compile_context>
chip_gen: v7x
topology: tpu7x:2x2x1
jax: 0.10.0
libtpu: 0.0.40
codegen_flags: <defaults>
</compile_context>

<pallas_src>
import functools

import jax
import jax.numpy as jnp
from jax.experimental import pallas as pl
from jax.experimental.pallas import tpu as pltpu


# ----------------------------------------------------------------------------
# 1x1 conv (+ optional folded-BN affine + ReLU) as a tiled bf16 MXU matmul
# ----------------------------------------------------------------------------

def _mm_affine_kernel(a_ref, b_ref, s_ref, t_ref, o_ref, *, relu):
    acc = jnp.dot(a_ref[...], b_ref[...], preferred_element_type=jnp.float32)
    acc = acc * s_ref[...] + t_ref[...]
    if relu:
        acc = jnp.maximum(acc, 0.0)
    o_ref[...] = acc.astype(o_ref.dtype)


def matmul_affine(a, b, scale=None, bias=None, relu=False, tm=256):
    """act((a @ b) * scale + bias); bf16 MXU operands, f32 accumulate/epilogue."""
    M, K = a.shape
    K2, N = b.shape
    assert K == K2
    if scale is None:
        scale = jnp.ones((N,), jnp.float32)
    if bias is None:
        bias = jnp.zeros((N,), jnp.float32)
    scale = scale.reshape(1, N).astype(jnp.float32)
    bias = bias.reshape(1, N).astype(jnp.float32)

    a = a.astype(jnp.bfloat16)
    b = b.astype(jnp.bfloat16)

    tm = min(tm, M)
    pad = (-M) % tm
    if pad:  # fallback only for awkward M; never hit in this model
        a = jnp.pad(a, ((0, pad), (0, 0)))
    Mp = M + pad

    out = pl.pallas_call(
        functools.partial(_mm_affine_kernel, relu=relu),
        out_shape=jax.ShapeDtypeStruct((Mp, N), jnp.float32),
        grid=(Mp // tm,),
        in_specs=[
            pl.BlockSpec((tm, K), lambda i: (i, 0)),
            pl.BlockSpec((K, N), lambda i: (0, 0)),
            pl.BlockSpec((1, N), lambda i: (0, 0)),
            pl.BlockSpec((1, N), lambda i: (0, 0)),
        ],
        out_specs=pl.BlockSpec((tm, N), lambda i: (i, 0)),
        compiler_params=pltpu.CompilerParams(
            dimension_semantics=("parallel",)),
    )(a, b, scale, bias)
    return out[:M] if pad else out


def conv1x1(x, w, scale=None, bias=None, relu=False, tm=64):
    # x: (B, H, W, Cin) NHWC; w: (Cin, Cout)
    B, H, W, Cin = x.shape
    Cout = w.shape[-1]
    y = matmul_affine(x.reshape(B * H * W, Cin), w, scale, bias, relu, tm=tm)
    return y.reshape(B, H, W, Cout)


# ----------------------------------------------------------------------------
# 3x3 conv + folded BN + ReLU, im2col fused in-kernel (shifted matmuls)
# ----------------------------------------------------------------------------

def _conv3x3_bn_relu_kernel(x_ref, w_ref, s_ref, t_ref, o_ref, *, m, shifts, relu):
    # x_ref: (1, P, Cin)  f32 flattened, spatially-padded image rows
    # w_ref: (9, Cin, Cout) bf16, taps in (di, dj) row-major order
    # o_ref: (1, m, Cout) f32  (m = H*(W+2); pad columns discarded outside)
    x = x_ref[0]                                            # (P, Cin)
    acc = jnp.zeros((m, o_ref.shape[-1]), jnp.float32)
    for t, s in enumerate(shifts):                          # unrolled 3x3 taps
        a = x[s:s + m, :].astype(jnp.bfloat16)              # shifted rows, no im2col
        acc = acc + jnp.dot(a, w_ref[t], preferred_element_type=jnp.float32)
    acc = acc * s_ref[...] + t_ref[...]
    if relu:
        acc = jnp.maximum(acc, 0.0)
    o_ref[0] = acc.astype(o_ref.dtype)


def conv3x3_bn_relu(x, w, scale, bias, relu=True):
    """3x3 conv (padding=1, stride=1, no bias) + folded BN affine + ReLU."""
    B, H, W, Cin = x.shape
    Cout = w.shape[-1]
    Wp = W + 2
    M = H * Wp                       # output rows incl. (discarded) pad columns
    P = (H + 2) * Wp + 2             # flattened padded rows + 2 spare rows

    xp = jnp.pad(x.astype(jnp.float32), ((0, 0), (1, 1), (1, 1), (0, 0)))
    xf = jnp.pad(xp.reshape(B, (H + 2) * Wp, Cin), ((0, 0), (0, 2), (0, 0)))
    wr = w.reshape(9, Cin, Cout).astype(jnp.bfloat16)
    shifts = tuple(di * Wp + dj for di in range(3) for dj in range(3))

    out = pl.pallas_call(
        functools.partial(_conv3x3_bn_relu_kernel, m=M, shifts=shifts, relu=relu),
        out_shape=jax.ShapeDtypeStruct((B, M, Cout), jnp.float32),
        grid=(B,),
        in_specs=[
            pl.BlockSpec((1, P, Cin), lambda b: (b, 0, 0)),
            pl.BlockSpec((9, Cin, Cout), lambda b: (0, 0, 0)),
            pl.BlockSpec((1, Cout), lambda b: (0, 0)),
            pl.BlockSpec((1, Cout), lambda b: (0, 0)),
        ],
        out_specs=pl.BlockSpec((1, M, Cout), lambda b: (b, 0, 0)),
        compiler_params=pltpu.CompilerParams(
            dimension_semantics=("parallel",)),
    )(xf, wr, scale.reshape(1, Cout).astype(jnp.float32),
      bias.reshape(1, Cout).astype(jnp.float32))
    # drop the two pad columns per row
    return out.reshape(B, H, Wp, Cout)[:, :, :W, :]


# ----------------------------------------------------------------------------
# BA linear attention: fused q/k/v 1x1 convs + attention + gamma residual
# ----------------------------------------------------------------------------

def _ba_kernel(low_ref, high_ref, wq_ref, wk_ref, wv_ref, g_ref, o_ref, *, eps):
    low = low_ref[0]                                        # (N, C) f32
    high = high_ref[0]                                      # (N, C) bf16
    low_bf = low.astype(jnp.bfloat16)
    n = low.shape[0]

    # fused 1x1 convs: the lane-sparse (N, C//8) q/k never leave VMEM.
    q = jnp.dot(high, wq_ref[...], preferred_element_type=jnp.float32)    # (N, ck)
    k = jnp.dot(low_bf, wk_ref[...], preferred_element_type=jnp.float32)  # (N, ck)
    v = jnp.dot(low_bf, wv_ref[...], preferred_element_type=jnp.float32)  # (N, C)

    # l2 norm over channels per spatial position (EUP rsqrt).
    # TODO(synk): the PyTorch l2_norm has no eps; a tiny one is added inside
    # rsqrt only to avoid inf on an exactly-zero row.
    qn = q * jax.lax.rsqrt(jnp.sum(q * q, axis=1, keepdims=True) + 1e-12)
    kn = k * jax.lax.rsqrt(jnp.sum(k * k, axis=1, keepdims=True) + 1e-12)

    ksum = jnp.sum(kn, axis=0, keepdims=True) + eps                       # (1, ck)
    tailor = pl.reciprocal(
        n + jnp.sum(qn * ksum, axis=1, keepdims=True), approx=True)       # (N, 1)
    vsum = jnp.sum(v, axis=0, keepdims=True)                              # (1, C)

    # matrix = K_n^T . V  (contract over the N spatial positions, MXU)
    matrix = jax.lax.dot_general(kn, v, (((0,), (0,)), ((), ())),
                                 preferred_element_type=jnp.float32)      # (ck, C)
    ms = vsum + jnp.dot(qn, matrix, preferred_element_type=jnp.float32)   # (N, C)
    o_ref[0] = (low + g_ref[...] * (ms * tailor)).astype(o_ref.dtype)


def ba_attention(low, high_up, wq, wk, wv, gamma, eps=1e-6):
    # low, high_up: (B, H, W, C) NHWC; wq/wk: (C, C//8); wv: (C, C)
    B, H, W, C = low.shape
    N = H * W
    ck = wq.shape[-1]
    out = pl.pallas_call(
        functools.partial(_ba_kernel, eps=eps),
        out_shape=jax.ShapeDtypeStruct((B, N, C), jnp.float32),
        grid=(B,),
        in_specs=[
            pl.BlockSpec((1, N, C), lambda b: (b, 0, 0)),
            pl.BlockSpec((1, N, C), lambda b: (b, 0, 0)),
            pl.BlockSpec((C, ck), lambda b: (0, 0)),
            pl.BlockSpec((C, ck), lambda b: (0, 0)),
            pl.BlockSpec((C, C), lambda b: (0, 0)),
            pl.BlockSpec((1, 1), lambda b: (0, 0)),
        ],
        out_specs=pl.BlockSpec((1, N, C), lambda b: (b, 0, 0)),
        compiler_params=pltpu.CompilerParams(
            dimension_semantics=("parallel",)),
    )(low.reshape(B, N, C).astype(jnp.float32),
      high_up.reshape(B, N, C).astype(jnp.bfloat16),
      wq.astype(jnp.bfloat16), wk.astype(jnp.bfloat16), wv.astype(jnp.bfloat16),
      jnp.asarray(gamma, jnp.float32).reshape(1, 1))
    return out.reshape(B, H, W, C)


# ----------------------------------------------------------------------------
# BA_Model forward + deterministic synthetic parameters
# ----------------------------------------------------------------------------

def init_ba_model(key, high_level_channel, channel, att_scale=8):
    ck = channel // att_scale
    ks = jax.random.split(key, 9)
    rnd = lambda k, shape, s=0.1: s * jax.random.normal(k, shape, jnp.float32)
    # fold eval-mode BatchNorm into a per-channel affine (scale, bias)
    g = 1.0 + 0.05 * jax.random.normal(ks[5], (channel,), jnp.float32)
    beta = 0.05 * jax.random.normal(ks[6], (channel,), jnp.float32)
    mean = 0.05 * jax.random.normal(ks[7], (channel,), jnp.float32)
    var = 1.0 + 0.05 * jnp.abs(jax.random.normal(ks[8], (channel,), jnp.float32))
    s = g / jnp.sqrt(var + 1e-5)
    t = beta - mean * s
    return {
        'w_high': rnd(ks[0], (high_level_channel, channel)),  # conv_high 1x1
        'w_up': rnd(ks[1], (3, 3, channel, channel)),          # up 3x3 (HWIO)
        'bn_scale': s, 'bn_bias': t,
        'wq': rnd(ks[2], (channel, ck)),
        'wk': rnd(ks[3], (channel, ck)),
        'wv': rnd(ks[4], (channel, channel)),
        # PyTorch initialises gamma to 0 (output == low); 0.5 is used here so
        # the attention path is actually exercised numerically.
        'gamma': jnp.full((1, 1), 0.5, jnp.float32),
    }


def ba_model_forward(params, low, high, scale_factor=2, eps=1e-6):
    """BA_Model.forward; low: (B,H,W,C) NHWC, high: (B,H/s,W/s,C_high) NHWC."""
    high = conv1x1(high, params['w_high'], tm=64)                    # conv_high
    high = conv3x3_bn_relu(high, params['w_up'],
                           params['bn_scale'], params['bn_bias'])    # ConvBNReLU
    high = jnp.repeat(jnp.repeat(high, scale_factor, axis=1),
                      scale_factor, axis=2)                          # nearest up
    return ba_attention(low, high, params['wq'], params['wk'],
                        params['wv'], params['gamma'], eps=eps)


# ----------------------------------------------------------------------------
# Main
# ----------------------------------------------------------------------------

if __name__ == "__main__":
    B, C, C_HIGH, H, W, SCALE = 2, 64, 128, 16, 16, 2
    key = jax.random.PRNGKey(0)
    k_low, k_high, k_par = jax.random.split(key, 3)

    # Inputs in PyTorch NCHW convention; transposed to NHWC at the boundary.
    low_nchw = jax.random.normal(k_low, (B, C, H, W), jnp.float32)
    high_nchw = jax.random.normal(k_high, (B, C_HIGH, H // SCALE, W // SCALE),
                                  jnp.float32)
    params = init_ba_model(k_par, C_HIGH, C)

    fwd = jax.jit(ba_model_forward, static_argnames=('scale_factor',))
    out_nhwc = fwd(params,
                   jnp.transpose(low_nchw, (0, 2, 3, 1)),
                   jnp.transpose(high_nchw, (0, 2, 3, 1)),
                   scale_factor=SCALE)
    out = jnp.transpose(out_nhwc, (0, 3, 1, 2))
    jax.block_until_ready(out)

    assert out.shape == (B, C, H, W), out.shape
    assert bool(jnp.all(jnp.isfinite(out)))
    print("KERNEL_OK")
</pallas_src>

<mosaic_0001>
module attributes {stable_mosaic.version = 11 : i64} {
  func.func @_mm_affine_kernel(%arg0: i32, %arg1: memref<64x128xbf16, #tpu.memory_space<vmem>>, %arg2: memref<128x64xbf16, #tpu.memory_space<vmem>>, %arg3: memref<1x64xf32, #tpu.memory_space<vmem>>, %arg4: memref<1x64xf32, #tpu.memory_space<vmem>>, %arg5: memref<64x64xf32, #tpu.memory_space<vmem>>) attributes {dimension_semantics = [#tpu.dimension_semantics<parallel>], iteration_bounds = array<i64: 2>, scalar_prefetch = 0 : i64, scratch_operands = 0 : i64, tpu.core_type = #tpu.core_type<tc>, window_params = [{transform_indices = @transform_0, window_bounds = array<i64: 64, 128>}, {pipeline_mode = #tpu.pipeline_mode<synchronous>, transform_indices = @transform_1, window_bounds = array<i64: 128, 64>}, {pipeline_mode = #tpu.pipeline_mode<synchronous>, transform_indices = @transform_2, window_bounds = array<i64: 1, 64>}, {pipeline_mode = #tpu.pipeline_mode<synchronous>, transform_indices = @transform_3, window_bounds = array<i64: 1, 64>}, {transform_indices = @transform_4, window_bounds = array<i64: 64, 64>}]} {
    %c0 = arith.constant 0 : index
    %c0_0 = arith.constant 0 : index
    %0 = vector.load %arg1[%c0, %c0_0] : memref<64x128xbf16, #tpu.memory_space<vmem>>, vector<64x128xbf16>
    %c0_1 = arith.constant 0 : index
    %c0_2 = arith.constant 0 : index
    %1 = vector.load %arg2[%c0_1, %c0_2] : memref<128x64xbf16, #tpu.memory_space<vmem>>, vector<128x64xbf16>
    %cst = arith.constant dense<0.000000e+00> : vector<64x64xf32>
    %2 = tpu.matmul %0, %1, %cst {dimension_numbers = #tpu.dot_dimension_numbers<[1], [0], [0], [1], [0, 0, 1, 1], [], []>} : vector<64x128xbf16>, vector<128x64xbf16>, vector<64x64xf32> -> vector<64x64xf32>
    %c0_3 = arith.constant 0 : index
    %c0_4 = arith.constant 0 : index
    %3 = vector.load %arg3[%c0_3, %c0_4] : memref<1x64xf32, #tpu.memory_space<vmem>>, vector<1x64xf32>
    %4 = vector.broadcast %3 : vector<1x64xf32> to vector<64x64xf32>
    %5 = arith.mulf %2, %4 : vector<64x64xf32>
    %c0_5 = arith.constant 0 : index
    %c0_6 = arith.constant 0 : index
    %6 = vector.load %arg4[%c0_5, %c0_6] : memref<1x64xf32, #tpu.memory_space<vmem>>, vector<1x64xf32>
    %7 = vector.broadcast %6 : vector<1x64xf32> to vector<64x64xf32>
    %8 = arith.addf %5, %7 : vector<64x64xf32>
    %c0_7 = arith.constant 0 : index
    %c0_8 = arith.constant 0 : index
    %9 = vector.load %arg5[%c0_7, %c0_8] : memref<64x64xf32, #tpu.memory_space<vmem>>, vector<64x64xf32>
    tpu.vector_store %arg5[%c0_7, %c0_8], %8 {strides = array<i32>} : memref<64x64xf32, #tpu.memory_space<vmem>>, vector<64x64xf32>,
    return
  }
  func.func @transform_0(%arg0: i32) -> (i32, i32) {
    %c0_i32 = arith.constant 0 : i32
    %c0_i32_0 = arith.constant 0 : i32
    return %arg0, %c0_i32 : i32, i32
  }
  func.func @transform_1(%arg0: i32) -> (i32, i32) {
    %c0_i32 = arith.constant 0 : i32
    %c0_i32_0 = arith.constant 0 : i32
    %c0_i32_1 = arith.constant 0 : i32
    return %c0_i32, %c0_i32_0 : i32, i32
  }
  func.func @transform_2(%arg0: i32) -> (i32, i32) {
    %c0_i32 = arith.constant 0 : i32
    %c0_i32_0 = arith.constant 0 : i32
    %c0_i32_1 = arith.constant 0 : i32
    return %c0_i32, %c0_i32_0 : i32, i32
  }
  func.func @transform_3(%arg0: i32) -> (i32, i32) {
    %c0_i32 = arith.constant 0 : i32
    %c0_i32_0 = arith.constant 0 : i32
    %c0_i32_1 = arith.constant 0 : i32
    return %c0_i32, %c0_i32_0 : i32, i32
  }
  func.func @transform_4(%arg0: i32) -> (i32, i32) {
    %c0_i32 = arith.constant 0 : i32
    %c0_i32_0 = arith.constant 0 : i32
    return %arg0, %c0_i32 : i32, i32
  }
}

module attributes {stable_mosaic.version = 11 : i64} {
  func.func @_conv3x3_bn_relu_kernel(%arg0: i32, %arg1: memref<1x102x64xf32, #tpu.memory_space<vmem>>, %arg2: memref<9x64x64xbf16, #tpu.memory_space<vmem>>, %arg3: memref<1x64xf32, #tpu.memory_space<vmem>>, %arg4: memref<1x64xf32, #tpu.memory_space<vmem>>, %arg5: memref<1x80x64xf32, #tpu.memory_space<vmem>>) attributes {dimension_semantics = [#tpu.dimension_semantics<parallel>], iteration_bounds = array<i64: 2>, scalar_prefetch = 0 : i64, scratch_operands = 0 : i64, tpu.core_type = #tpu.core_type<tc>, window_params = [{transform_indices = @transform_0, window_bounds = array<i64: 1, 102, 64>}, {pipeline_mode = #tpu.pipeline_mode<synchronous>, transform_indices = @transform_1, window_bounds = array<i64: 9, 64, 64>}, {pipeline_mode = #tpu.pipeline_mode<synchronous>, transform_indices = @transform_2, window_bounds = array<i64: 1, 64>}, {pipeline_mode = #tpu.pipeline_mode<synchronous>, transform_indices = @transform_3, window_bounds = array<i64: 1, 64>}, {transform_indices = @transform_4, window_bounds = array<i64: 1, 80, 64>}]} {
    %c0 = arith.constant 0 : index
    %c0_0 = arith.constant 0 : index
    %c0_1 = arith.constant 0 : index
    %0 = vector.load %arg1[%c0, %c0_0, %c0_1] : memref<1x102x64xf32, #tpu.memory_space<vmem>>, vector<1x102x64xf32>
    %1 = vector.shape_cast %0 : vector<1x102x64xf32> to vector<102x64xf32>
    %cst = arith.constant 0.000000e+00 : f32
    %2 = vector.broadcast %cst : f32 to vector<80x64xf32>
    %3 = vector.extract_strided_slice %1 {offsets = [0, 0], sizes = [80, 64], strides = [1, 1]} : vector<102x64xf32> to vector<80x64xf32>
    %4 = arith.truncf %3 : vector<80x64xf32> to vector<80x64xbf16>
    %c0_2 = arith.constant 0 : index
    %c0_3 = arith.constant 0 : index
    %c0_4 = arith.constant 0 : index
    %5 = vector.load %arg2[%c0_2, %c0_3, %c0_4] : memref<9x64x64xbf16, #tpu.memory_space<vmem>>, vector<1x64x64xbf16>
    %6 = vector.shape_cast %5 : vector<1x64x64xbf16> to vector<64x64xbf16>
    %cst_5 = arith.constant dense<0.000000e+00> : vector<80x64xf32>
    %7 = tpu.matmul %4, %6, %cst_5 {dimension_numbers = #tpu.dot_dimension_numbers<[1], [0], [0], [1], [0, 0, 1, 1], [], []>} : vector<80x64xbf16>, vector<64x64xbf16>, vector<80x64xf32> -> vector<80x64xf32>
    %8 = arith.addf %2, %7 : vector<80x64xf32>
    %9 = vector.extract_strided_slice %1 {offsets = [1, 0], sizes = [80, 64], strides = [1, 1]} : vector<102x64xf32> to vector<80x64xf32>
    %10 = arith.truncf %9 : vector<80x64xf32> to vector<80x64xbf16>
    %c1 = arith.constant 1 : index
    %c0_6 = arith.constant 0 : index
    %c0_7 = arith.constant 0 : index
    %11 = vector.load %arg2[%c1, %c0_6, %c0_7] : memref<9x64x64xbf16, #tpu.memory_space<vmem>>, vector<1x64x64xbf16>
    %12 = vector.shape_cast %11 : vector<1x64x64xbf16> to vector<64x64xbf16>
    %cst_8 = arith.constant dense<0.000000e+00> : vector<80x64xf32>
    %13 = tpu.matmul %10, %12, %cst_8 {dimension_numbers = #tpu.dot_dimension_numbers<[1], [0], [0], [1], [0, 0, 1, 1], [], []>} : vector<80x64xbf16>, vector<64x64xbf16>, vector<80x64xf32> -> vector<80x64xf32>
    %14 = arith.addf %8, %13 : vector<80x64xf32>
    %15 = vector.extract_strided_slice %1 {offsets = [2, 0], sizes = [80, 64], strides = [1, 1]} : vector<102x64xf32> to vector<80x64xf32>
    %16 = arith.truncf %15 : vector<80x64xf32> to vector<80x64xbf16>
    %c2 = arith.constant 2 : index
    %c0_9 = arith.constant 0 : index
    %c0_10 = arith.constant 0 : index
    %17 = vector.load %arg2[%c2, %c0_9, %c0_10] : memref<9x64x64xbf16, #tpu.memory_space<vmem>>, vector<1x64x64xbf16>
    %18 = vector.shape_cast %17 : vector<1x64x64xbf16> to vector<64x64xbf16>
    %cst_11 = arith.constant dense<0.000000e+00> : vector<80x64xf32>
    %19 = tpu.matmul %16, %18, %cst_11 {dimension_numbers = #tpu.dot_dimension_numbers<[1], [0], [0], [1], [0, 0, 1, 1], [], []>} : vector<80x64xbf16>, vector<64x64xbf16>, vector<80x64xf32> -> vector<80x64xf32>
    %20 = arith.addf %14, %19 : vector<80x64xf32>
    %21 = vector.extract_strided_slice %1 {offsets = [10, 0], sizes = [80, 64], strides = [1, 1]} : vector<102x64xf32> to vector<80x64xf32>
    %22 = arith.truncf %21 : vector<80x64xf32> to vector<80x64xbf16>
    %c3 = arith.constant 3 : index
    %c0_12 = arith.constant 0 : index
    %c0_13 = arith.constant 0 : index
    %23 = vector.load %arg2[%c3, %c0_12, %c0_13] : memref<9x64x64xbf16, #tpu.memory_space<vmem>>, vector<1x64x64xbf16>
    %24 = vector.shape_cast %23 : vector<1x64x64xbf16> to vector<64x64xbf16>
    %cst_14 = arith.constant dense<0.000000e+00> : vector<80x64xf32>
    %25 = tpu.matmul %22, %24, %cst_14 {dimension_numbers = #tpu.dot_dimension_numbers<[1], [0], [0], [1], [0, 0, 1, 1], [], []>} : vector<80x64xbf16>, vector<64x64xbf16>, vector<80x64xf32> -> vector<80x64xf32>
    %26 = arith.addf %20, %25 : vector<80x64xf32>
    %27 = vector.extract_strided_slice %1 {offsets = [11, 0], sizes = [80, 64], strides = [1, 1]} : vector<102x64xf32> to vector<80x64xf32>
    %28 = arith.truncf %27 : vector<80x64xf32> to vector<80x64xbf16>
    %c4 = arith.constant 4 : index
    %c0_15 = arith.constant 0 : index
    %c0_16 = arith.constant 0 : index
    %29 = vector.load %arg2[%c4, %c0_15, %c0_16] : memref<9x64x64xbf16, #tpu.memory_space<vmem>>, vector<1x64x64xbf16>
    %30 = vector.shape_cast %29 : vector<1x64x64xbf16> to vector<64x64xbf16>
    %cst_17 = arith.constant dense<0.000000e+00> : vector<80x64xf32>
    %31 = tpu.matmul %28, %30, %cst_17 {dimension_numbers = #tpu.dot_dimension_numbers<[1], [0], [0], [1], [0, 0, 1, 1], [], []>} : vector<80x64xbf16>, vector<64x64xbf16>, vector<80x64xf32> -> vector<80x64xf32>
    %32 = arith.addf %26, %31 : vector<80x64xf32>
    %33 = vector.extract_strided_slice %1 {offsets = [12, 0], sizes = [80, 64], strides = [1, 1]} : vector<102x64xf32> to vector<80x64xf32>
    %34 = arith.truncf %33 : vector<80x64xf32> to vector<80x64xbf16>
    %c5 = arith.constant 5 : index
    %c0_18 = arith.constant 0 : index
    %c0_19 = arith.constant 0 : index
    %35 = vector.load %arg2[%c5, %c0_18, %c0_19] : memref<9x64x64xbf16, #tpu.memory_space<vmem>>, vector<1x64x64xbf16>
    %36 = vector.shape_cast %35 : vector<1x64x64xbf16> to vector<64x64xbf16>
    %cst_20 = arith.constant dense<0.000000e+00> : vector<80x64xf32>
    %37 = tpu.matmul %34, %36, %cst_20 {dimension_numbers = #tpu.dot_dimension_numbers<[1], [0], [0], [1], [0, 0, 1, 1], [], []>} : vector<80x64xbf16>, vector<64x64xbf16>, vector<80x64xf32> -> vector<80x64xf32>
    %38 = arith.addf %32, %37 : vector<80x64xf32>
    %39 = vector.extract_strided_slice %1 {offsets = [20, 0], sizes = [80, 64], strides = [1, 1]} : vector<102x64xf32> to vector<80x64xf32>
    %40 = arith.truncf %39 : vector<80x64xf32> to vector<80x64xbf16>
    %c6 = arith.constant 6 : index
    %c0_21 = arith.constant 0 : index
    %c0_22 = arith.constant 0 : index
    %41 = vector.load %arg2[%c6, %c0_21, %c0_22] : memref<9x64x64xbf16, #tpu.memory_space<vmem>>, vector<1x64x64xbf16>
    %42 = vector.shape_cast %41 : vector<1x64x64xbf16> to vector<64x64xbf16>
    %cst_23 = arith.constant dense<0.000000e+00> : vector<80x64xf32>
    %43 = tpu.matmul %40, %42, %cst_23 {dimension_numbers = #tpu.dot_dimension_numbers<[1], [0], [0], [1], [0, 0, 1, 1], [], []>} : vector<80x64xbf16>, vector<64x64xbf16>, vector<80x64xf32> -> vector<80x64xf32>
    %44 = arith.addf %38, %43 : vector<80x64xf32>
    %45 = vector.extract_strided_slice %1 {offsets = [21, 0], sizes = [80, 64], strides = [1, 1]} : vector<102x64xf32> to vector<80x64xf32>
    %46 = arith.truncf %45 : vector<80x64xf32> to vector<80x64xbf16>
    %c7 = arith.constant 7 : index
    %c0_24 = arith.constant 0 : index
    %c0_25 = arith.constant 0 : index
    %47 = vector.load %arg2[%c7, %c0_24, %c0_25] : memref<9x64x64xbf16, #tpu.memory_space<vmem>>, vector<1x64x64xbf16>
    %48 = vector.shape_cast %47 : vector<1x64x64xbf16> to vector<64x64xbf16>
    %cst_26 = arith.constant dense<0.000000e+00> : vector<80x64xf32>
    %49 = tpu.matmul %46, %48, %cst_26 {dimension_numbers = #tpu.dot_dimension_numbers<[1], [0], [0], [1], [0, 0, 1, 1], [], []>} : vector<80x64xbf16>, vector<64x64xbf16>, vector<80x64xf32> -> vector<80x64xf32>
    %50 = arith.addf %44, %49 : vector<80x64xf32>
    %51 = vector.extract_strided_slice %1 {offsets = [22, 0], sizes = [80, 64], strides = [1, 1]} : vector<102x64xf32> to vector<80x64xf32>
    %52 = arith.truncf %51 : vector<80x64xf32> to vector<80x64xbf16>
    %c8 = arith.constant 8 : index
    %c0_27 = arith.constant 0 : index
    %c0_28 = arith.constant 0 : index
    %53 = vector.load %arg2[%c8, %c0_27, %c0_28] : memref<9x64x64xbf16, #tpu.memory_space<vmem>>, vector<1x64x64xbf16>
    %54 = vector.shape_cast %53 : vector<1x64x64xbf16> to vector<64x64xbf16>
    %cst_29 = arith.constant dense<0.000000e+00> : vector<80x64xf32>
    %55 = tpu.matmul %52, %54, %cst_29 {dimension_numbers = #tpu.dot_dimension_numbers<[1], [0], [0], [1], [0, 0, 1, 1], [], []>} : vector<80x64xbf16>, vector<64x64xbf16>, vector<80x64xf32> -> vector<80x64xf32>
    %56 = arith.addf %50, %55 : vector<80x64xf32>
    %c0_30 = arith.constant 0 : index
    %c0_31 = arith.constant 0 : index
    %57 = vector.load %arg3[%c0_30, %c0_31] : memref<1x64xf32, #tpu.memory_space<vmem>>, vector<1x64xf32>
    %58 = vector.broadcast %57 : vector<1x64xf32> to vector<80x64xf32>
    %59 = arith.mulf %56, %58 : vector<80x64xf32>
    %c0_32 = arith.constant 0 : index
    %c0_33 = arith.constant 0 : index
    %60 = vector.load %arg4[%c0_32, %c0_33] : memref<1x64xf32, #tpu.memory_space<vmem>>, vector<1x64xf32>
    %61 = vector.broadcast %60 : vector<1x64xf32> to vector<80x64xf32>
    %62 = arith.addf %59, %61 : vector<80x64xf32>
    %cst_34 = arith.constant 0.000000e+00 : f32
    %63 = vector.broadcast %cst_34 : f32 to vector<80x64xf32>
    %64 = arith.maximumf %62, %63 : vector<80x64xf32>
    %c0_35 = arith.constant 0 : index
    %c0_36 = arith.constant 0 : index
    %c0_37 = arith.constant 0 : index
    %65 = vector.load %arg5[%c0_35, %c0_36, %c0_37] : memref<1x80x64xf32, #tpu.memory_space<vmem>>, vector<1x80x64xf32>
    %66 = vector.shape_cast %65 : vector<1x80x64xf32> to vector<80x64xf32>
    %67 = vector.shape_cast %64 : vector<80x64xf32> to vector<1x80x64xf32>
    tpu.vector_store %arg5[%c0_35, %c0_36, %c0_37], %67 {strides = array<i32>} : memref<1x80x64xf32, #tpu.memory_space<vmem>>, vector<1x80x64xf32>,
    return
  }
  func.func @transform_0(%arg0: i32) -> (i32, i32, i32) {
    %c0_i32 = arith.constant 0 : i32
    %c0_i32_0 = arith.constant 0 : i32
    %c0_i32_1 = arith.constant 0 : i32
    return %arg0, %c0_i32, %c0_i32_0 : i32, i32, i32
  }
  func.func @transform_1(%arg0: i32) -> (i32, i32, i32) {
    %c0_i32 = arith.constant 0 : i32
    %c0_i32_0 = arith.constant 0 : i32
    %c0_i32_1 = arith.constant 0 : i32
    %c0_i32_2 = arith.constant 0 : i32
    return %c0_i32, %c0_i32_0, %c0_i32_1 : i32, i32, i32
  }
  func.func @transform_2(%arg0: i32) -> (i32, i32) {
    %c0_i32 = arith.constant 0 : i32
    %c0_i32_0 = arith.constant 0 : i32
    %c0_i32_1 = arith.constant 0 : i32
    return %c0_i32, %c0_i32_0 : i32, i32
  }
  func.func @transform_3(%arg0: i32) -> (i32, i32) {
    %c0_i32 = arith.constant 0 : i32
    %c0_i32_0 = arith.constant 0 : i32
    %c0_i32_1 = arith.constant 0 : i32
    return %c0_i32, %c0_i32_0 : i32, i32
  }
  func.func @transform_4(%arg0: i32) -> (i32, i32, i32) {
    %c0_i32 = arith.constant 0 : i32
    %c0_i32_0 = arith.constant 0 : i32
    %c0_i32_1 = arith.constant 0 : i32
    return %arg0, %c0_i32, %c0_i32_0 : i32, i32, i32
  }
}

module attributes {stable_mosaic.version = 11 : i64} {
  func.func @_ba_kernel(%arg0: i32, %arg1: memref<1x256x64xf32, #tpu.memory_space<vmem>>, %arg2: memref<1x256x64xbf16, #tpu.memory_space<vmem>>, %arg3: memref<64x8xbf16, #tpu.memory_space<vmem>>, %arg4: memref<64x8xbf16, #tpu.memory_space<vmem>>, %arg5: memref<64x64xbf16, #tpu.memory_space<vmem>>, %arg6: memref<1x1xf32, #tpu.memory_space<vmem>>, %arg7: memref<1x256x64xf32, #tpu.memory_space<vmem>>) attributes {dimension_semantics = [#tpu.dimension_semantics<parallel>], iteration_bounds = array<i64: 2>, scalar_prefetch = 0 : i64, scratch_operands = 0 : i64, tpu.core_type = #tpu.core_type<tc>, window_params = [{transform_indices = @transform_0, window_bounds = array<i64: 1, 256, 64>}, {transform_indices = @transform_1, window_bounds = array<i64: 1, 256, 64>}, {pipeline_mode = #tpu.pipeline_mode<synchronous>, transform_indices = @transform_2, window_bounds = array<i64: 64, 8>}, {pipeline_mode = #tpu.pipeline_mode<synchronous>, transform_indices = @transform_3, window_bounds = array<i64: 64, 8>}, {pipeline_mode = #tpu.pipeline_mode<synchronous>, transform_indices = @transform_4, window_bounds = array<i64: 64, 64>}, {pipeline_mode = #tpu.pipeline_mode<synchronous>, transform_indices = @transform_5, window_bounds = array<i64: 1, 1>}, {transform_indices = @transform_6, window_bounds = array<i64: 1, 256, 64>}]} {
    %c0 = arith.constant 0 : index
    %c0_0 = arith.constant 0 : index
    %c0_1 = arith.constant 0 : index
    %0 = vector.load %arg1[%c0, %c0_0, %c0_1] : memref<1x256x64xf32, #tpu.memory_space<vmem>>, vector<1x256x64xf32>
    %1 = vector.shape_cast %0 : vector<1x256x64xf32> to vector<256x64xf32>
    %c0_2 = arith.constant 0 : index
    %c0_3 = arith.constant 0 : index
    %c0_4 = arith.constant 0 : index
    %2 = vector.load %arg2[%c0_2, %c0_3, %c0_4] : memref<1x256x64xbf16, #tpu.memory_space<vmem>>, vector<1x256x64xbf16>
    %3 = vector.shape_cast %2 : vector<1x256x64xbf16> to vector<256x64xbf16>
    %4 = arith.truncf %1 : vector<256x64xf32> to vector<256x64xbf16>
    %c0_5 = arith.constant 0 : index
    %c0_6 = arith.constant 0 : index
    %5 = vector.load %arg3[%c0_5, %c0_6] : memref<64x8xbf16, #tpu.memory_space<vmem>>, vector<64x8xbf16>
    %cst = arith.constant dense<0.000000e+00> : vector<256x8xf32>
    %6 = tpu.matmul %3, %5, %cst {dimension_numbers = #tpu.dot_dimension_numbers<[1], [0], [0], [1], [0, 0, 1, 1], [], []>} : vector<256x64xbf16>, vector<64x8xbf16>, vector<256x8xf32> -> vector<256x8xf32>
    %c0_7 = arith.constant 0 : index
    %c0_8 = arith.constant 0 : index
    %7 = vector.load %arg4[%c0_7, %c0_8] : memref<64x8xbf16, #tpu.memory_space<vmem>>, vector<64x8xbf16>
    %cst_9 = arith.constant dense<0.000000e+00> : vector<256x8xf32>
    %8 = tpu.matmul %4, %7, %cst_9 {dimension_numbers = #tpu.dot_dimension_numbers<[1], [0], [0], [1], [0, 0, 1, 1], [], []>} : vector<256x64xbf16>, vector<64x8xbf16>, vector<256x8xf32> -> vector<256x8xf32>
    %c0_10 = arith.constant 0 : index
    %c0_11 = arith.constant 0 : index
    %9 = vector.load %arg5[%c0_10, %c0_11] : memref<64x64xbf16, #tpu.memory_space<vmem>>, vector<64x64xbf16>
    %cst_12 = arith.constant dense<0.000000e+00> : vector<256x64xf32>
    %10 = tpu.matmul %4, %9, %cst_12 {dimension_numbers = #tpu.dot_dimension_numbers<[1], [0], [0], [1], [0, 0, 1, 1], [], []>} : vector<256x64xbf16>, vector<64x64xbf16>, vector<256x64xf32> -> vector<256x64xf32>
    %11 = arith.mulf %6, %6 : vector<256x8xf32>
    %cst_13 = arith.constant dense<0.000000e+00> : vector<256xf32>
    %12 = vector.multi_reduction <add>, %11, %cst_13 [1] : vector<256x8xf32> to vector<256xf32>
    %13 = vector.shape_cast %12 : vector<256xf32> to vector<256x1xf32>
    %cst_14 = arith.constant 9.99999996E-13 : f32
    %14 = vector.broadcast %cst_14 : f32 to vector<256x1xf32>
    %15 = arith.addf %13, %14 : vector<256x1xf32>
    %16 = math.rsqrt %15 : vector<256x1xf32>
    %17 = vector.broadcast %16 : vector<256x1xf32> to vector<256x8xf32>
    %18 = arith.mulf %6, %17 : vector<256x8xf32>
    %19 = arith.mulf %8, %8 : vector<256x8xf32>
    %cst_15 = arith.constant dense<0.000000e+00> : vector<256xf32>
    %20 = vector.multi_reduction <add>, %19, %cst_15 [1] : vector<256x8xf32> to vector<256xf32>
    %21 = vector.shape_cast %20 : vector<256xf32> to vector<256x1xf32>
    %cst_16 = arith.constant 9.99999996E-13 : f32
    %22 = vector.broadcast %cst_16 : f32 to vector<256x1xf32>
    %23 = arith.addf %21, %22 : vector<256x1xf32>
    %24 = math.rsqrt %23 : vector<256x1xf32>
    %25 = vector.broadcast %24 : vector<256x1xf32> to vector<256x8xf32>
    %26 = arith.mulf %8, %25 : vector<256x8xf32>
    %cst_17 = arith.constant dense<0.000000e+00> : vector<8xf32>
    %27 = vector.multi_reduction <add>, %26, %cst_17 [0] : vector<256x8xf32> to vector<8xf32>
    %28 = vector.shape_cast %27 : vector<8xf32> to vector<1x8xf32>
    %cst_18 = arith.constant 9.99999997E-7 : f32
    %29 = vector.broadcast %cst_18 : f32 to vector<1x8xf32>
    %30 = arith.addf %28, %29 : vector<1x8xf32>
    %31 = vector.broadcast %30 : vector<1x8xf32> to vector<256x8xf32>
    %32 = arith.mulf %18, %31 : vector<256x8xf32>
    %cst_19 = arith.constant dense<0.000000e+00> : vector<256xf32>
    %33 = vector.multi_reduction <add>, %32, %cst_19 [1] : vector<256x8xf32> to vector<256xf32>
    %34 = vector.shape_cast %33 : vector<256xf32> to vector<256x1xf32>
    %cst_20 = arith.constant 2.560000e+02 : f32
    %35 = vector.broadcast %cst_20 : f32 to vector<256x1xf32>
    %36 = arith.addf %35, %34 : vector<256x1xf32>
    %37 = tpu.reciprocal %36 {approx = true} : vector<256x1xf32> -> vector<256x1xf32>
    %cst_21 = arith.constant dense<0.000000e+00> : vector<64xf32>
    %38 = vector.multi_reduction <add>, %10, %cst_21 [0] : vector<256x64xf32> to vector<64xf32>
    %39 = vector.shape_cast %38 : vector<64xf32> to vector<1x64xf32>
    %cst_22 = arith.constant dense<0.000000e+00> : vector<8x64xf32>
    %40 = tpu.matmul %26, %10, %cst_22 {dimension_numbers = #tpu.dot_dimension_numbers<[0], [0], [1], [1], [0, 1, 1, 1], [], []>} : vector<256x8xf32>, vector<256x64xf32>, vector<8x64xf32> -> vector<8x64xf32>
    %cst_23 = arith.constant dense<0.000000e+00> : vector<256x64xf32>
    %41 = tpu.matmul %18, %40, %cst_23 {dimension_numbers = #tpu.dot_dimension_numbers<[1], [0], [0], [1], [0, 0, 1, 1], [], []>} : vector<256x8xf32>, vector<8x64xf32>, vector<256x64xf32> -> vector<256x64xf32>
    %42 = vector.broadcast %39 : vector<1x64xf32> to vector<256x64xf32>
    %43 = arith.addf %42, %41 : vector<256x64xf32>
    %c0_24 = arith.constant 0 : index
    %c0_25 = arith.constant 0 : index
    %44 = vector.load %arg6[%c0_24, %c0_25] : memref<1x1xf32, #tpu.memory_space<vmem>>, vector<1x1xf32>
    %45 = vector.broadcast %37 : vector<256x1xf32> to vector<256x64xf32>
    %46 = arith.mulf %43, %45 : vector<256x64xf32>
    %47 = vector.broadcast %44 : vector<1x1xf32> to vector<256x64xf32>
    %48 = arith.mulf %47, %46 : vector<256x64xf32>
    %49 = arith.addf %1, %48 : vector<256x64xf32>
    %c0_26 = arith.constant 0 : index
    %c0_27 = arith.constant 0 : index
    %c0_28 = arith.constant 0 : index
    %50 = vector.load %arg7[%c0_26, %c0_27, %c0_28] : memref<1x256x64xf32, #tpu.memory_space<vmem>>, vector<1x256x64xf32>
    %51 = vector.shape_cast %50 : vector<1x256x64xf32> to vector<256x64xf32>
    %52 = vector.shape_cast %49 : vector<256x64xf32> to vector<1x256x64xf32>
    tpu.vector_store %arg7[%c0_26, %c0_27, %c0_28], %52 {strides = array<i32>} : memref<1x256x64xf32, #tpu.memory_space<vmem>>, vector<1x256x64xf32>,
    return
  }
  func.func @transform_0(%arg0: i32) -> (i32, i32, i32) {
    %c0_i32 = arith.constant 0 : i32
    %c0_i32_0 = arith.constant 0 : i32
    %c0_i32_1 = arith.constant 0 : i32
    return %arg0, %c0_i32, %c0_i32_0 : i32, i32, i32
  }
  func.func @transform_1(%arg0: i32) -> (i32, i32, i32) {
    %c0_i32 = arith.constant 0 : i32
    %c0_i32_0 = arith.constant 0 : i32
    %c0_i32_1 = arith.constant 0 : i32
    return %arg0, %c0_i32, %c0_i32_0 : i32, i32, i32
  }
  func.func @transform_2(%arg0: i32) -> (i32, i32) {
    %c0_i32 = arith.constant 0 : i32
    %c0_i32_0 = arith.constant 0 : i32
    %c0_i32_1 = arith.constant 0 : i32
    return %c0_i32, %c0_i32_0 : i32, i32
  }
  func.func @transform_3(%arg0: i32) -> (i32, i32) {
    %c0_i32 = arith.constant 0 : i32
    %c0_i32_0 = arith.constant 0 : i32
    %c0_i32_1 = arith.constant 0 : i32
    return %c0_i32, %c0_i32_0 : i32, i32
  }
  func.func @transform_4(%arg0: i32) -> (i32, i32) {
    %c0_i32 = arith.constant 0 : i32
    %c0_i32_0 = arith.constant 0 : i32
    %c0_i32_1 = arith.constant 0 : i32
    return %c0_i32, %c0_i32_0 : i32, i32
  }
  func.func @transform_5(%arg0: i32) -> (i32, i32) {
    %c0_i32 = arith.constant 0 : i32
    %c0_i32_0 = arith.constant 0 : i32
    %c0_i32_1 = arith.constant 0 : i32
    return %c0_i32, %c0_i32_0 : i32, i32
  }
  func.func @transform_6(%arg0: i32) -> (i32, i32, i32) {
    %c0_i32 = arith.constant 0 : i32
    %c0_i32_0 = arith.constant 0 : i32
    %c0_i32_1 = arith.constant 0 : i32
    return %arg0, %c0_i32, %c0_i32_0 : i32, i32, i32
  }
}

</mosaic_0001>

<llo_original>
// kernel: ba_model_forward.3
$region0: #{ba_model_forward.3}
  #allocation0 [shape = 'u32[]', space=smem, size = 0x4, offset = 0x4, fixed_abs, tag = 'smem constant byte address 0x4 - core index']
  #allocation1 [shape = 'u32[144,128]{1,0:T(1,128)}', space=vmem, size = 0x12000, scoped, tag = 'internal scratch']
  %s0 = inlined_call_operand.vmem [shape: bf16[128,128], index: 0, kind: input, shape index: {}]
  %s1 = inlined_call_operand.vmem [shape: bf16[128,64], index: 1, kind: input, shape index: {}]
  %s2 = inlined_call_operand.vmem [shape: f32[1,64], index: 2, kind: input, shape index: {}]
  %s3 = inlined_call_operand.vmem [shape: f32[1,64], index: 3, kind: input, shape index: {}]
  %s4 = inlined_call_operand.vmem [shape: f32[128,64], index: 4, kind: output, shape index: {}]
  %s5 = sld [smem:[#allocation0]]
  $region49: #{ba_model_forward.3} parent=0
    _
  %s7 = ssub.s32 1, %s5
  %s8 = scalar_select 0, %s7, %s5
  loop: start=0, step=1, limit=4
  $region2: #{ba_model_forward.3} parent=0 // loop_pre_header
    _
  $region3: #{ba_model_forward.3} parent=0 // loop_header
    %s10 = sphi 0, %s14
    %p11 = scmp.ge.s32.totalorder %s10, 4
    %s20 = sphi 0, %s22
    %s23 = sphi 0, %s20
    %s24 = sphi 0, %s23
    %s40 = sphi 0, %s24
    %s44 = sphi 0, %s44
    %s46 = sphi 0, %s44
    %s47 = sphi 0, %s46
    %s61 = sphi 0, %s47
    %s65 = sphi 0, %s65
    %s67 = sphi 0, %s65
    %s68 = sphi 0, %s67
    %s82 = sphi 0, %s68
    %s86 = sphi 0, %s86
    %s88 = sphi 0, %s86
    %s89 = sphi 0, %s88
    %s103 = sphi 0, %s89
    %s109 = sphi 0, %s111
    %s112 = sphi 0, %s109
    %s113 = sphi 0, %s112
    %s129 = sphi 0, %s113
  $region4: #{ba_model_forward.3} parent=0 // loop_header_branch
    %13 = sbr.rel (%p11) target = $region8
  $region5: #{ba_model_forward.3} parent=0 // loop_body
    %s15 = ssub.s32 %s10, 1
    %s16 = ssub.s32 %s10, 2
    %s17 = sadd.s32 %s10, 1
    %s18 = ssub.s32 %s10, %s17
    %p19 = scmp.eq.s32.totalorder %s18, 0
    %s21 = sadd.s32 %s20, 1
    %s22 = scalar_select %p19, %s20, %s21
    %p25 = pneg %p19
    %p26 = scmp.eq.s32.totalorder %s10, 1
    %p27 = por %p25, %p26
    %p28 = scmp.ne.s32.totalorder %s20, %s23
    %p29 = scmp.eq.s32.totalorder %s10, 0
    %p30 = por %p28, %p29
    %p31 = scmp.ne.s32.totalorder %s20, %s23
    %p32 = scmp.eq.s32.totalorder %s15, 1
    %p33 = por %p31, %p32
    %p34 = scmp.ne.s32.totalorder %s23, %s24
    %p35 = scmp.eq.s32.totalorder %s15, 0
    %p36 = por %p34, %p35
    %p37 = scmp.ne.s32.totalorder %s23, %s24
    %p38 = scmp.eq.s32.totalorder %s16, 1
    %p39 = por %p37, %p38
    %p41 = scmp.ne.s32.totalorder %s24, %s40
    %p42 = scmp.eq.s32.totalorder %s16, 0
    %p43 = por %p41, %p42
    %s45 = sadd.s32 %s44, 1
    %p48 = scmp.eq.s32.totalorder %s10, 1
    %p49 = scmp.ne.s32.totalorder %s44, %s46
    %p50 = scmp.eq.s32.totalorder %s10, 0
    %p51 = por %p49, %p50
    %p52 = scmp.ne.s32.totalorder %s44, %s46
    %p53 = scmp.eq.s32.totalorder %s15, 1
    %p54 = por %p52, %p53
    %p55 = scmp.ne.s32.totalorder %s46, %s47
    %p56 = scmp.eq.s32.totalorder %s15, 0
    %p57 = por %p55, %p56
    %p58 = scmp.ne.s32.totalorder %s46, %s47
    %p59 = scmp.eq.s32.totalorder %s16, 1
    %p60 = por %p58, %p59
    %p62 = scmp.ne.s32.totalorder %s47, %s61
    %p63 = scmp.eq.s32.totalorder %s16, 0
    %p64 = por %p62, %p63
    %s66 = sadd.s32 %s65, 1
    %p69 = scmp.eq.s32.totalorder %s10, 1
    %p70 = scmp.ne.s32.totalorder %s65, %s67
    %p71 = scmp.eq.s32.totalorder %s10, 0
    %p72 = por %p70, %p71
    %p73 = scmp.ne.s32.totalorder %s65, %s67
    %p74 = scmp.eq.s32.totalorder %s15, 1
    %p75 = por %p73, %p74
    %p76 = scmp.ne.s32.totalorder %s67, %s68
    %p77 = scmp.eq.s32.totalorder %s15, 0
    %p78 = por %p76, %p77
    %p79 = scmp.ne.s32.totalorder %s67, %s68
    %p80 = scmp.eq.s32.totalorder %s16, 1
    %p81 = por %p79, %p80
    %p83 = scmp.ne.s32.totalorder %s68, %s82
    %p84 = scmp.eq.s32.totalorder %s16, 0
    %p85 = por %p83, %p84
    %s87 = sadd.s32 %s86, 1
    %p90 = scmp.eq.s32.totalorder %s10, 1
    %p91 = scmp.ne.s32.totalorder %s86, %s88
    %p92 = scmp.eq.s32.totalorder %s10, 0
    %p93 = por %p91, %p92
    %p94 = scmp.ne.s32.totalorder %s86, %s88
    %p95 = scmp.eq.s32.totalorder %s15, 1
    %p96 = por %p94, %p95
    %p97 = scmp.ne.s32.totalorder %s88, %s89
    %p98 = scmp.eq.s32.totalorder %s15, 0
    %p99 = por %p97, %p98
    %p100 = scmp.ne.s32.totalorder %s88, %s89
    %p101 = scmp.eq.s32.totalorder %s16, 1
    %p102 = por %p100, %p101
    %p104 = scmp.ne.s32.totalorder %s89, %s103
    %p105 = scmp.eq.s32.totalorder %s16, 0
    %p106 = por %p104, %p105
    %s107 = ssub.s32 %s10, %s17
    %p108 = scmp.eq.s32.totalorder %s107, 0
    %s110 = sadd.s32 %s109, 1
    %s111 = scalar_select %p108, %s109, %s110
    %p114 = pneg %p108
    %p115 = scmp.eq.s32.totalorder %s10, 1
    %p116 = por %p114, %p115
    %p117 = scmp.ne.s32.totalorder %s109, %s112
    %p118 = scmp.eq.s32.totalorder %s10, 0
    %p119 = por %p117, %p118
    %p120 = scmp.ne.s32.totalorder %s109, %s112
    %p121 = scmp.eq.s32.totalorder %s15, 1
    %p122 = por %p120, %p121
    %p123 = scmp.ne.s32.totalorder %s112, %s113
    %p124 = scmp.eq.s32.totalorder %s15, 0
    %p125 = por %p123, %p124
    %p126 = scmp.ne.s32.totalorder %s112, %s113
    %p127 = scmp.eq.s32.totalorder %s16, 1
    %p128 = por %p126, %p127
    %p130 = scmp.ne.s32.totalorder %s113, %s129
    %p131 = scmp.eq.s32.totalorder %s16, 0
    %p132 = por %p130, %p131
    %p133 = scmp.le.s32.totalorder 1, %s10
    %p134 = scmp.lt.s32.totalorder %s10, 3
    %p135 = pnand %p133, %p134
    %p136 = pneg %p135
    // Predicated region
    $region9: #{ba_model_forward.3} parent=5 // pred_check
      _
    $region10: #{ba_model_forward.3} parent=5 // pred_check_branch
      %138 = sbr.rel (%p135) target = $region12
    $region11: #{ba_model_forward.3} parent=5 // pred_region
      %s139 = ssub.s32 %s10, 1
      // Predicated region
      $region13: #{ba_model_forward.3} parent=11 // pred_check
        %p140 = pneg %p57
      $region14: #{ba_model_forward.3} parent=11 // pred_check_branch
        %142 = sbr.rel (%p140) target = $region16
      $region15: #{ba_model_forward.3} parent=11 // pred_region
        _
      $region16: #{ba_model_forward.3} parent=11 // pred_fallthru
        _
      // Predicated region
      $region17: #{ba_model_forward.3} parent=11 // pred_check
        %p143 = pneg %p78
      $region18: #{ba_model_forward.3} parent=11 // pred_check_branch
        %145 = sbr.rel (%p143) target = $region20
      $region19: #{ba_model_forward.3} parent=11 // pred_region
        _
      $region20: #{ba_model_forward.3} parent=11 // pred_fallthru
        _
      // Predicated region
      $region21: #{ba_model_forward.3} parent=11 // pred_check
        %p146 = pneg %p99
      $region22: #{ba_model_forward.3} parent=11 // pred_check_branch
        %148 = sbr.rel (%p146) target = $region24
      $region23: #{ba_model_forward.3} parent=11 // pred_region
        _
      $region24: #{ba_model_forward.3} parent=11 // pred_fallthru
        _
    $region12: #{ba_model_forward.3} parent=5 // pred_fallthru
      _
    %p149 = scmp.lt.s32.totalorder %s10, 2
    // Predicated region
    $region25: #{ba_model_forward.3} parent=5 // pred_check
      %p150 = pneg %p149
    $region26: #{ba_model_forward.3} parent=5 // pred_check_branch
      %152 = sbr.rel (%p150) target = $region28
    $region27: #{ba_model_forward.3} parent=5 // pred_region
      // Predicated region
      $region29: #{ba_model_forward.3} parent=27 // pred_check
        %p153 = pneg %p30
      $region30: #{ba_model_forward.3} parent=27 // pred_check_branch
        %155 = sbr.rel (%p153) target = $region32
      $region31: #{ba_model_forward.3} parent=27 // pred_region
        %s156 = smul.u32 8, %s10
        %p157 = scmp.lt.s32.totalorder %s156, 15
        %s158 = scalar_select %p157, %s156, 15
        %s159 = smul.addr %s158, 4
        %s160 = scalar_lea.vmem %s0, %s159
        %s161 = smul.u32 8, %s10
      $region32: #{ba_model_forward.3} parent=27 // pred_fallthru
        _
    $region28: #{ba_model_forward.3} parent=5 // pred_fallthru
      _
    %p162 = scmp.le.s32.totalorder 1, %s10
    %p163 = scmp.lt.s32.totalorder %s10, 3
    %p164 = pnand %p162, %p163
    %p165 = pneg %p164
    // Predicated region
    $region33: #{ba_model_forward.3} parent=5 // pred_check
      _
    $region34: #{ba_model_forward.3} parent=5 // pred_check_branch
      %167 = sbr.rel (%p164) target = $region36
    $region35: #{ba_model_forward.3} parent=5 // pred_region
      %s168 = ssub.s32 %s10, 1
      %s169 = smul.u32 8, %s15
      %p170 = scmp.lt.s32.totalorder %s169, 15
      %s171 = scalar_select %p170, %s169, 15
      %s172 = smul.addr %s171, 4
      %s173 = scalar_lea.vmem %s0, %s172
      %p174 = pneg %p36
      %p175 = pneg %p33
      %p176 = pneg %p57
      %p177 = pneg %p54
      %p178 = pneg %p78
      %p179 = pneg %p75
      %p180 = pneg %p99
      %p181 = pneg %p96
      %p182 = pneg %p125
      %p183 = pneg %p122
      %s184 = smul.u32 8, %s15
      %p185 = scmp.lt.s32.totalorder %s184, 15
      %s186 = scalar_select %p185, %s184, 15
      %s187 = smul.addr %s186, 8
      %s188 = scalar_lea.vmem %s4, %s187
      %s189 = smul.u32 8, %s15
      %p190 = scmp.lt.s32.totalorder %s189, 15
      %s191 = scalar_select %p190, %s189, 15
      %s192 = smul.addr %s191, 4
      %s193 = scalar_lea.vmem %s0, %s192
      %s194 = smul.u32 8, %s15
      %s195 = smul.u32 8, %s15
      %p196 = scmp.lt.s32.totalorder %s195, 15
      %s197 = scalar_select %p196, %s195, 15
      %s198 = smul.addr %s197, 8
      %s199 = scalar_lea.vmem %s4, %s198
      %s200 = smul.u32 8, %s15
      %v202 = vld [vmem:[%s193] sm:$0xf]
      %v203 = vld [vmem:[%s193 + $0x4] sm:$0xf]
      %v204 = vld [vmem:[%s193 + $0x8] sm:$0xf]
      %v205 = vld [vmem:[%s193 + $0xc] sm:$0xf]
      %v206 = vld [vmem:[%s193 + $0x10] sm:$0xf]
      %v207 = vld [vmem:[%s193 + $0x14] sm:$0xf]
      %v208 = vld [vmem:[%s193 + $0x18] sm:$0xf]
      %v209 = vld [vmem:[%s193 + $0x1c] sm:$0xf]
      %v210 = vld [vmem:[%s1] sm:$0xf]
      %v211 = vld [vmem:[%s1 + $0x4] sm:$0xf]
      %v212 = vld [vmem:[%s1 + $0x8] sm:$0xf]
      %v213 = vld [vmem:[%s1 + $0xc] sm:$0xf]
      %v214 = vld [vmem:[%s1 + $0x10] sm:$0xf]
      %v215 = vld [vmem:[%s1 + $0x14] sm:$0xf]
      %v216 = vld [vmem:[%s1 + $0x18] sm:$0xf]
      %v217 = vld [vmem:[%s1 + $0x1c] sm:$0xf]
      %v218 = vld [vmem:[%s1 + $0x20] sm:$0xf]
      %v219 = vld [vmem:[%s1 + $0x24] sm:$0xf]
      %v220 = vld [vmem:[%s1 + $0x28] sm:$0xf]
      %v221 = vld [vmem:[%s1 + $0x2c] sm:$0xf]
      %v222 = vld [vmem:[%s1 + $0x30] sm:$0xf]
      %v223 = vld [vmem:[%s1 + $0x34] sm:$0xf]
      %v224 = vld [vmem:[%s1 + $0x38] sm:$0xf]
      %v225 = vld [vmem:[%s1 + $0x3c] sm:$0xf]
      %v234 = vunpack.c.l.b16 %v202
      %v235 = vunpack.c.l.b16 %v203
      %v236 = vunpack.c.l.b16 %v204
      %v237 = vunpack.c.l.b16 %v205
      %v238 = vunpack.c.l.b16 %v206
      %v239 = vunpack.c.l.b16 %v207
      %v240 = vunpack.c.l.b16 %v208
      %v241 = vunpack.c.l.b16 %v209
      %v242 = vpack.c.b16 %v235, %v234
      %v243 = vpack.c.b16 %v237, %v236
      %v244 = vpack.c.b16 %v239, %v238
      %v245 = vpack.c.b16 %v241, %v240
      %v266 = vunpack.c.l.b16 %v210
      %v267 = vunpack.c.l.b16 %v211
      %v268 = vunpack.c.l.b16 %v212
      %v269 = vunpack.c.l.b16 %v213
      %v270 = vunpack.c.l.b16 %v214
      %v271 = vunpack.c.l.b16 %v215
      %v272 = vunpack.c.l.b16 %v216
      %v273 = vunpack.c.l.b16 %v217
      %v274 = vunpack.c.l.b16 %v218
      %v275 = vunpack.c.l.b16 %v219
      %v276 = vunpack.c.l.b16 %v220
      %v277 = vunpack.c.l.b16 %v221
      %v278 = vunpack.c.l.b16 %v222
      %v279 = vunpack.c.l.b16 %v223
      %v280 = vunpack.c.l.b16 %v224
      %v281 = vunpack.c.l.b16 %v225
      %v282 = vpack.c.b16 %v267, %v266
      %v283 = vpack.c.b16 %v269, %v268
      %v284 = vpack.c.b16 %v271, %v270
      %v285 = vpack.c.b16 %v273, %v272
      %v286 = vpack.c.b16 %v275, %v274
      %v287 = vpack.c.b16 %v277, %v276
      %v288 = vpack.c.b16 %v279, %v278
      %v289 = vpack.c.b16 %v281, %v280
      %298 = vmatprep.subr.bf16.mxu0 0
      %299 = vmatpush1.bf16.msra.mxu0 %v282
      %300 = vmatprep.subr.bf16.mxu0 0
      %301 = vmatpush1.bf16.msra.mxu0 %v283
      %302 = vmatprep.subr.bf16.mxu0 0
      %303 = vmatpush1.bf16.msra.mxu0 %v284
      %304 = vmatprep.subr.bf16.mxu0 0
      %305 = vmatpush1.bf16.msra.mxu0 %v285
      %306 = vmatprep.subr.bf16.mxu0 0
      %307 = vmatpush1.bf16.msra.mxu0 %v286
      %308 = vmatprep.subr.bf16.mxu0 0
      %309 = vmatpush1.bf16.msra.mxu0 %v287
      %310 = vmatprep.subr.bf16.mxu0 0
      %311 = vmatpush1.bf16.msra.mxu0 %v288
      %312 = vmatprep.subr.bf16.mxu0 0
      %313 = vmatpush1.bf16.msra.mxu0 %v289
      %314 = vmatprep.subr.bf16.mxu0 0
      %315 = vmatpush1.bf16.msra.mxu0 0
      %316 = vmatprep.subr.bf16.mxu0 0
      %317 = vmatpush1.bf16.msra.mxu0 0
      %318 = vmatprep.subr.bf16.mxu0 0
      %319 = vmatpush1.bf16.msra.mxu0 0
      %320 = vmatprep.subr.bf16.mxu0 0
      %321 = vmatpush1.bf16.msra.mxu0 0
      %322 = vmatprep.subr.bf16.mxu0 0
      %323 = vmatpush1.bf16.msra.mxu0 0
      %324 = vmatprep.subr.bf16.mxu0 0
      %325 = vmatpush1.bf16.msra.mxu0 0
      %326 = vmatprep.subr.bf16.mxu0 0
      %327 = vmatpush1.bf16.msra.mxu0 0
      %328 = vmatprep.subr.bf16.mxu0 0
      %329 = vmatpush1.bf16.msra.mxu0 0
      %330 = vmatprep.mubr.bf16.mxu0 0
      %331 = vmatmul.mubr.bf16.gmra.mrb[0].mxu0 %v242
      %v332 = vpop.f32.mrb[0].mxu0
      %v333 = vadd.f32 0.0, %v332
      %v334 = vpop.f32.mrb[0].mxu0
      %v335 = vpop.f32.mrb[0].mxu0
      %v336 = vadd.f32 0.0, %v335
      %v337 = vpop.f32.mrb[0].mxu0
      %338 = vmatprep.mubr.bf16.mxu0 0
      %339 = vmatmul.mubr.bf16.gmra.mrb[0].mxu0 %v243
      %v340 = vpop.f32.mrb[0].mxu0
      %v341 = vadd.f32 0.0, %v340
      %v342 = vpop.f32.mrb[0].mxu0
      %v343 = vpop.f32.mrb[0].mxu0
      %v344 = vadd.f32 0.0, %v343
      %v345 = vpop.f32.mrb[0].mxu0
      %346 = vmatprep.mubr.bf16.mxu0 0
      %347 = vmatmul.mubr.bf16.gmra.mrb[0].mxu0 %v244
      %v348 = vpop.f32.mrb[0].mxu0
      %v349 = vadd.f32 0.0, %v348
      %v350 = vpop.f32.mrb[0].mxu0
      %v351 = vpop.f32.mrb[0].mxu0
      %v352 = vadd.f32 0.0, %v351
      %v353 = vpop.f32.mrb[0].mxu0
      %354 = vmatprep.mubr.bf16.mxu0 0
      %355 = vmatmul.mubr.bf16.gmra.mrb[0].mxu0 %v245
      %v356 = vpop.f32.mrb[0].mxu0
      %v357 = vadd.f32 0.0, %v356
      %v358 = vpop.f32.mrb[0].mxu0
      %v359 = vpop.f32.mrb[0].mxu0
      %v360 = vadd.f32 0.0, %v359
      %v361 = vpop.f32.mrb[0].mxu0
      %362 = vdwg.mxu0
      %v363 = vld [vmem:[%s2] sm:$0x1]
      %v365 = vlaneseq
      %v366 = vshrl.u32 %v365, 7
      %v367 = vsub.s32 0, %v366
      %v368 = vrot.slane %v363, %v367
      %v370 = vmul.f32 %v333, %v368
      %v371 = vmul.f32 %v336, %v368
      %v372 = vmul.f32 %v341, %v368
      %v373 = vmul.f32 %v344, %v368
      %v374 = vmul.f32 %v349, %v368
      %v375 = vmul.f32 %v352, %v368
      %v376 = vmul.f32 %v357, %v368
      %v377 = vmul.f32 %v360, %v368
      %v378 = vld [vmem:[%s3] sm:$0x1]
      %v380 = vlaneseq
      %v381 = vshrl.u32 %v380, 7
      %v382 = vsub.s32 0, %v381
      %v383 = vrot.slane %v378, %v382
      %v385 = vadd.f32 %v370, %v383
      %v386 = vadd.f32 %v371, %v383
      %v387 = vadd.f32 %v372, %v383
      %v388 = vadd.f32 %v373, %v383
      %v389 = vadd.f32 %v374, %v383
      %v390 = vadd.f32 %v375, %v383
      %v391 = vadd.f32 %v376, %v383
      %v392 = vadd.f32 %v377, %v383
      %vm393 = vcmask 523264
      %394 = vst.msk [vmem:[%s199] sm:$0xff] %vm393, %v385
      %395 = vst.msk [vmem:[%s199 + $0x8] sm:$0xff] %vm393, %v386
      %396 = vst.msk [vmem:[%s199 + $0x10] sm:$0xff] %vm393, %v387
      %397 = vst.msk [vmem:[%s199 + $0x18] sm:$0xff] %vm393, %v388
      %398 = vst.msk [vmem:[%s199 + $0x20] sm:$0xff] %vm393, %v389
      %399 = vst.msk [vmem:[%s199 + $0x28] sm:$0xff] %vm393, %v390
      %400 = vst.msk [vmem:[%s199 + $0x30] sm:$0xff] %vm393, %v391
      %401 = vst.msk [vmem:[%s199 + $0x38] sm:$0xff] %vm393, %v392
      %s402 = smul.u32 8, %s15
      %p403 = scmp.lt.s32.totalorder %s402, 15
      %s404 = scalar_select %p403, %s402, 15
      %s405 = smul.addr %s404, 8
      %s406 = scalar_lea.vmem %s4, %s405
      // Predicated region
      $region37: #{ba_model_forward.3} parent=35 // pred_check
        %p407 = pneg %p122
      $region38: #{ba_model_forward.3} parent=35 // pred_check_branch
        %409 = sbr.rel (%p407) target = $region40
      $region39: #{ba_model_forward.3} parent=35 // pred_region
        %s410 = smul.u32 8, %s15
      $region40: #{ba_model_forward.3} parent=35 // pred_fallthru
        _
    $region36: #{ba_model_forward.3} parent=5 // pred_fallthru
      _
    %p411 = scmp.le.s32.totalorder 2, %s10
    // Predicated region
    $region41: #{ba_model_forward.3} parent=5 // pred_check
      %p412 = pneg %p411
    $region42: #{ba_model_forward.3} parent=5 // pred_check_branch
      %414 = sbr.rel (%p412) target = $region44
    $region43: #{ba_model_forward.3} parent=5 // pred_region
      %s415 = ssub.s32 %s10, 2
      // Predicated region
      $region45: #{ba_model_forward.3} parent=43 // pred_check
        %p416 = pneg %p128
      $region46: #{ba_model_forward.3} parent=43 // pred_check_branch
        %418 = sbr.rel (%p416) target = $region48
      $region47: #{ba_model_forward.3} parent=43 // pred_region
        %s419 = smul.u32 8, %s16
        %p420 = scmp.lt.s32.totalorder %s419, 15
        %s421 = scalar_select %p420, %s419, 15
        %s422 = smul.addr %s421, 8
        %s423 = scalar_lea.vmem %s4, %s422
      $region48: #{ba_model_forward.3} parent=43 // pred_fallthru
        _
    $region44: #{ba_model_forward.3} parent=5 // pred_fallthru
      _
  $region6: #{ba_model_forward.3} parent=0 // loop_footer
    %s14 = sadd.s32 1, %s10
  $region7: #{ba_model_forward.3} parent=0 // loop_footer_branch
    %9 = sbr.rel target = $region3
  $region8: #{ba_model_forward.3} parent=0 // loop_exit
    _

// kernel: ba_model_forward.4
$region0: #{ba_model_forward.4}
  #allocation0 [shape = 'u32[]', space=smem, size = 0x4, offset = 0x4, fixed_abs, tag = 'smem constant byte address 0x4 - core index']
  #allocation1 [shape = 'u32[144,128]{1,0:T(1,128)}', space=vmem, size = 0x12000, scoped, tag = 'internal scratch']
  %s0 = inlined_call_operand.vmem [shape: f32[2,102,64], index: 0, kind: input, shape index: {}]
  %s1 = inlined_call_operand.vmem [shape: bf16[9,64,64], index: 1, kind: input, shape index: {}]
  %s2 = inlined_call_operand.vmem [shape: f32[1,64], index: 2, kind: input, shape index: {}]
  %s3 = inlined_call_operand.vmem [shape: f32[1,64], index: 3, kind: input, shape index: {}]
  %s4 = inlined_call_operand.vmem [shape: f32[2,80,64], index: 4, kind: output, shape index: {}]
  %s5 = sld [smem:[#allocation0]]
  $region49: #{ba_model_forward.4} parent=0
    _
  %s7 = ssub.s32 1, %s5
  %s8 = scalar_select 0, %s7, %s5
  loop: start=0, step=1, limit=4
  $region2: #{ba_model_forward.4} parent=0 // loop_pre_header
    _
  $region3: #{ba_model_forward.4} parent=0 // loop_header
    %s10 = sphi 0, %s14
    %p11 = scmp.ge.s32.totalorder %s10, 4
    %s20 = sphi 0, %s22
    %s23 = sphi 0, %s20
    %s24 = sphi 0, %s23
    %s40 = sphi 0, %s24
    %s44 = sphi 0, %s44
    %s46 = sphi 0, %s44
    %s47 = sphi 0, %s46
    %s61 = sphi 0, %s47
    %s65 = sphi 0, %s65
    %s67 = sphi 0, %s65
    %s68 = sphi 0, %s67
    %s82 = sphi 0, %s68
    %s86 = sphi 0, %s86
    %s88 = sphi 0, %s86
    %s89 = sphi 0, %s88
    %s103 = sphi 0, %s89
    %s109 = sphi 0, %s111
    %s112 = sphi 0, %s109
    %s113 = sphi 0, %s112
    %s129 = sphi 0, %s113
  $region4: #{ba_model_forward.4} parent=0 // loop_header_branch
    %13 = sbr.rel (%p11) target = $region8
  $region5: #{ba_model_forward.4} parent=0 // loop_body
    %s15 = ssub.s32 %s10, 1
    %s16 = ssub.s32 %s10, 2
    %s17 = sadd.s32 %s10, 1
    %s18 = ssub.s32 %s10, %s17
    %p19 = scmp.eq.s32.totalorder %s18, 0
    %s21 = sadd.s32 %s20, 1
    %s22 = scalar_select %p19, %s20, %s21
    %p25 = pneg %p19
    %p26 = scmp.eq.s32.totalorder %s10, 1
    %p27 = por %p25, %p26
    %p28 = scmp.ne.s32.totalorder %s20, %s23
    %p29 = scmp.eq.s32.totalorder %s10, 0
    %p30 = por %p28, %p29
    %p31 = scmp.ne.s32.totalorder %s20, %s23
    %p32 = scmp.eq.s32.totalorder %s15, 1
    %p33 = por %p31, %p32
    %p34 = scmp.ne.s32.totalorder %s23, %s24
    %p35 = scmp.eq.s32.totalorder %s15, 0
    %p36 = por %p34, %p35
    %p37 = scmp.ne.s32.totalorder %s23, %s24
    %p38 = scmp.eq.s32.totalorder %s16, 1
    %p39 = por %p37, %p38
    %p41 = scmp.ne.s32.totalorder %s24, %s40
    %p42 = scmp.eq.s32.totalorder %s16, 0
    %p43 = por %p41, %p42
    %s45 = sadd.s32 %s44, 1
    %p48 = scmp.eq.s32.totalorder %s10, 1
    %p49 = scmp.ne.s32.totalorder %s44, %s46
    %p50 = scmp.eq.s32.totalorder %s10, 0
    %p51 = por %p49, %p50
    %p52 = scmp.ne.s32.totalorder %s44, %s46
    %p53 = scmp.eq.s32.totalorder %s15, 1
    %p54 = por %p52, %p53
    %p55 = scmp.ne.s32.totalorder %s46, %s47
    %p56 = scmp.eq.s32.totalorder %s15, 0
    %p57 = por %p55, %p56
    %p58 = scmp.ne.s32.totalorder %s46, %s47
    %p59 = scmp.eq.s32.totalorder %s16, 1
    %p60 = por %p58, %p59
    %p62 = scmp.ne.s32.totalorder %s47, %s61
    %p63 = scmp.eq.s32.totalorder %s16, 0
    %p64 = por %p62, %p63
    %s66 = sadd.s32 %s65, 1
    %p69 = scmp.eq.s32.totalorder %s10, 1
    %p70 = scmp.ne.s32.totalorder %s65, %s67
    %p71 = scmp.eq.s32.totalorder %s10, 0
    %p72 = por %p70, %p71
    %p73 = scmp.ne.s32.totalorder %s65, %s67
    %p74 = scmp.eq.s32.totalorder %s15, 1
    %p75 = por %p73, %p74
    %p76 = scmp.ne.s32.totalorder %s67, %s68
    %p77 = scmp.eq.s32.totalorder %s15, 0
    %p78 = por %p76, %p77
    %p79 = scmp.ne.s32.totalorder %s67, %s68
    %p80 = scmp.eq.s32.totalorder %s16, 1
    %p81 = por %p79, %p80
    %p83 = scmp.ne.s32.totalorder %s68, %s82
    %p84 = scmp.eq.s32.totalorder %s16, 0
    %p85 = por %p83, %p84
    %s87 = sadd.s32 %s86, 1
    %p90 = scmp.eq.s32.totalorder %s10, 1
    %p91 = scmp.ne.s32.totalorder %s86, %s88
    %p92 = scmp.eq.s32.totalorder %s10, 0
    %p93 = por %p91, %p92
    %p94 = scmp.ne.s32.totalorder %s86, %s88
    %p95 = scmp.eq.s32.totalorder %s15, 1
    %p96 = por %p94, %p95
    %p97 = scmp.ne.s32.totalorder %s88, %s89
    %p98 = scmp.eq.s32.totalorder %s15, 0
    %p99 = por %p97, %p98
    %p100 = scmp.ne.s32.totalorder %s88, %s89
    %p101 = scmp.eq.s32.totalorder %s16, 1
    %p102 = por %p100, %p101
    %p104 = scmp.ne.s32.totalorder %s89, %s103
    %p105 = scmp.eq.s32.totalorder %s16, 0
    %p106 = por %p104, %p105
    %s107 = ssub.s32 %s10, %s17
    %p108 = scmp.eq.s32.totalorder %s107, 0
    %s110 = sadd.s32 %s109, 1
    %s111 = scalar_select %p108, %s109, %s110
    %p114 = pneg %p108
    %p115 = scmp.eq.s32.totalorder %s10, 1
    %p116 = por %p114, %p115
    %p117 = scmp.ne.s32.totalorder %s109, %s112
    %p118 = scmp.eq.s32.totalorder %s10, 0
    %p119 = por %p117, %p118
    %p120 = scmp.ne.s32.totalorder %s109, %s112
    %p121 = scmp.eq.s32.totalorder %s15, 1
    %p122 = por %p120, %p121
    %p123 = scmp.ne.s32.totalorder %s112, %s113
    %p124 = scmp.eq.s32.totalorder %s15, 0
    %p125 = por %p123, %p124
    %p126 = scmp.ne.s32.totalorder %s112, %s113
    %p127 = scmp.eq.s32.totalorder %s16, 1
    %p128 = por %p126, %p127
    %p130 = scmp.ne.s32.totalorder %s113, %s129
    %p131 = scmp.eq.s32.totalorder %s16, 0
    %p132 = por %p130, %p131
    %p133 = scmp.le.s32.totalorder 1, %s10
    %p134 = scmp.lt.s32.totalorder %s10, 3
    %p135 = pnand %p133, %p134
    %p136 = pneg %p135
    // Predicated region
    $region9: #{ba_model_forward.4} parent=5 // pred_check
      _
    $region10: #{ba_model_forward.4} parent=5 // pred_check_branch
      %138 = sbr.rel (%p135) target = $region12
    $region11: #{ba_model_forward.4} parent=5 // pred_region
      %s139 = ssub.s32 %s10, 1
      // Predicated region
      $region13: #{ba_model_forward.4} parent=11 // pred_check
        %p140 = pneg %p57
      $region14: #{ba_model_forward.4} parent=11 // pred_check_branch
        %142 = sbr.rel (%p140) target = $region16
      $region15: #{ba_model_forward.4} parent=11 // pred_region
        _
      $region16: #{ba_model_forward.4} parent=11 // pred_fallthru
        _
      // Predicated region
      $region17: #{ba_model_forward.4} parent=11 // pred_check
        %p143 = pneg %p78
      $region18: #{ba_model_forward.4} parent=11 // pred_check_branch
        %145 = sbr.rel (%p143) target = $region20
      $region19: #{ba_model_forward.4} parent=11 // pred_region
        _
      $region20: #{ba_model_forward.4} parent=11 // pred_fallthru
        _
      // Predicated region
      $region21: #{ba_model_forward.4} parent=11 // pred_check
        %p146 = pneg %p99
      $region22: #{ba_model_forward.4} parent=11 // pred_check_branch
        %148 = sbr.rel (%p146) target = $region24
      $region23: #{ba_model_forward.4} parent=11 // pred_region
        _
      $region24: #{ba_model_forward.4} parent=11 // pred_fallthru
        _
    $region12: #{ba_model_forward.4} parent=5 // pred_fallthru
      _
    %p149 = scmp.lt.s32.totalorder %s10, 2
    // Predicated region
    $region25: #{ba_model_forward.4} parent=5 // pred_check
      %p150 = pneg %p149
    $region26: #{ba_model_forward.4} parent=5 // pred_check_branch
      %152 = sbr.rel (%p150) target = $region28
    $region27: #{ba_model_forward.4} parent=5 // pred_region
      // Predicated region
      $region29: #{ba_model_forward.4} parent=27 // pred_check
        %p153 = pneg %p30
      $region30: #{ba_model_forward.4} parent=27 // pred_check_branch
        %155 = sbr.rel (%p153) target = $region32
      $region31: #{ba_model_forward.4} parent=27 // pred_region
        %p156 = scmp.lt.s32.totalorder %s10, 1
        %s157 = scalar_select %p156, %s10, 1
        %s158 = smul.addr %s157, 13
        %s159 = smul.addr %s158, 8
        %s160 = scalar_lea.vmem %s0, %s159
      $region32: #{ba_model_forward.4} parent=27 // pred_fallthru
        _
    $region28: #{ba_model_forward.4} parent=5 // pred_fallthru
      _
    %p161 = scmp.le.s32.totalorder 1, %s10
    %p162 = scmp.lt.s32.totalorder %s10, 3
    %p163 = pnand %p161, %p162
    %p164 = pneg %p163
    // Predicated region
    $region33: #{ba_model_forward.4} parent=5 // pred_check
      _
    $region34: #{ba_model_forward.4} parent=5 // pred_check_branch
      %166 = sbr.rel (%p163) target = $region36
    $region35: #{ba_model_forward.4} parent=5 // pred_region
      %s167 = ssub.s32 %s10, 1
      %p168 = scmp.lt.s32.totalorder %s15, 1
      %s169 = scalar_select %p168, %s15, 1
      %s170 = smul.addr %s169, 13
      %s171 = smul.addr %s170, 8
      %s172 = scalar_lea.vmem %s0, %s171
      %p173 = pneg %p36
      %p174 = pneg %p33
      %p175 = pneg %p57
      %p176 = pneg %p54
      %p177 = pneg %p78
      %p178 = pneg %p75
      %p179 = pneg %p99
      %p180 = pneg %p96
      %p181 = pneg %p125
      %p182 = pneg %p122
      %p183 = scmp.lt.s32.totalorder %s15, 1
      %s184 = scalar_select %p183, %s15, 1
      %s185 = smul.addr %s184, 10
      %s186 = smul.addr %s185, 8
      %s187 = scalar_lea.vmem %s4, %s186
      %p188 = scmp.lt.s32.totalorder %s15, 1
      %s189 = scalar_select %p188, %s15, 1
      %s190 = smul.addr %s189, 13
      %s191 = smul.addr %s190, 8
      %s192 = scalar_lea.vmem %s0, %s191
      %p193 = scmp.lt.s32.totalorder %s15, 1
      %s194 = scalar_select %p193, %s15, 1
      %s195 = smul.addr %s194, 10
      %s196 = smul.addr %s195, 8
      %s197 = scalar_lea.vmem %s4, %s196
      %v199 = vld [vmem:[%s192] sm:$0xff]
      %v200 = vld [vmem:[%s192 + $0x8] sm:$0xff]
      %v201 = vld [vmem:[%s192 + $0x10] sm:$0xff]
      %v202 = vld [vmem:[%s192 + $0x18] sm:$0xff]
      %v203 = vld [vmem:[%s192 + $0x20] sm:$0xff]
      %v204 = vld [vmem:[%s192 + $0x28] sm:$0xff]
      %v205 = vld [vmem:[%s192 + $0x30] sm:$0xff]
      %v206 = vld [vmem:[%s192 + $0x38] sm:$0xff]
      %v207 = vld [vmem:[%s192 + $0x40] sm:$0xff]
      %v208 = vld [vmem:[%s192 + $0x48] sm:$0xff]
      %v209 = vld [vmem:[%s192 + $0x50] sm:$0xff]
      %v210 = vld [vmem:[%s192 + $0x58] sm:$0xff]
      %v211 = vld [vmem:[%s192 + $0x60] sm:$0x3f]
      %v212 = vpack.c.bf16 %v200, %v199
      %v213 = vpack.c.bf16 %v202, %v201
      %v214 = vpack.c.bf16 %v204, %v203
      %v215 = vpack.c.bf16 %v206, %v205
      %v216 = vpack.c.bf16 %v208, %v207
      %v217 = vld [vmem:[%s1] sm:$0xf]
      %v218 = vld [vmem:[%s1 + $0x4] sm:$0xf]
      %v219 = vld [vmem:[%s1 + $0x8] sm:$0xf]
      %v220 = vld [vmem:[%s1 + $0xc] sm:$0xf]
      %v221 = vld [vmem:[%s1 + $0x10] sm:$0xf]
      %v222 = vld [vmem:[%s1 + $0x14] sm:$0xf]
      %v223 = vld [vmem:[%s1 + $0x18] sm:$0xf]
      %v224 = vld [vmem:[%s1 + $0x1c] sm:$0xf]
      %v225 = vpack.c.bf16 %v209, %v209
      %s226 = scalar_lea.vmem %s1, 32
      %v227 = vld [vmem:[%s226] sm:$0xf]
      %v228 = vld [vmem:[%s226 + $0x4] sm:$0xf]
      %v229 = vld [vmem:[%s226 + $0x8] sm:$0xf]
      %v230 = vld [vmem:[%s226 + $0xc] sm:$0xf]
      %v231 = vld [vmem:[%s226 + $0x10] sm:$0xf]
      %v232 = vld [vmem:[%s226 + $0x14] sm:$0xf]
      %v233 = vld [vmem:[%s226 + $0x18] sm:$0xf]
      %v234 = vld [vmem:[%s226 + $0x1c] sm:$0xf]
      %vm235 = vsmask.f32 7424
      %v237 = vshrl.u32 %v212, 16
      %v239 = vshll.u32 %v212, 16
      %v241 = vrot.slane %v239, 1
      %v242 = vor.u32 %v237, %v241
      %v244 = vshll.u32 %v213, 16
      %v246 = vrot.slane %v244, 1
      %v247 = vsel %vm235, %v242, %v246
      %v248 = vshrl.u32 %v213, 16
      %v250 = vor.u32 %v248, %v246
      %v252 = vshll.u32 %v214, 16
      %v254 = vrot.slane %v252, 1
      %v255 = vsel %vm235, %v250, %v254
      %v256 = vshrl.u32 %v214, 16
      %v258 = vor.u32 %v256, %v254
      %v260 = vshll.u32 %v215, 16
      %v262 = vrot.slane %v260, 1
      %v263 = vsel %vm235, %v258, %v262
      %v264 = vshrl.u32 %v215, 16
      %v266 = vor.u32 %v264, %v262
      %v268 = vshll.u32 %v216, 16
      %v270 = vrot.slane %v268, 1
      %v271 = vsel %vm235, %v266, %v270
      %v272 = vshrl.u32 %v216, 16
      %v274 = vor.u32 %v272, %v270
      %v276 = vshll.u32 %v225, 16
      %v278 = vrot.slane %v276, 1
      %v279 = vsel %vm235, %v274, %v278
      %v288 = vunpack.c.l.b16 %v227
      %v289 = vunpack.c.l.b16 %v228
      %v290 = vunpack.c.l.b16 %v229
      %v291 = vunpack.c.l.b16 %v230
      %v292 = vunpack.c.l.b16 %v231
      %v293 = vunpack.c.l.b16 %v232
      %v294 = vunpack.c.l.b16 %v233
      %v295 = vunpack.c.l.b16 %v234
      %v296 = vpack.c.b16 %v289, %v288
      %v297 = vpack.c.b16 %v291, %v290
      %v298 = vpack.c.b16 %v293, %v292
      %v299 = vpack.c.b16 %v295, %v294
      %vm304 = vcmask 523264
      %v306 = vsel %vm304, %v247, 0
      %v309 = vsel %vm304, %v255, 0
      %v312 = vsel %vm304, %v263, 0
      %v315 = vsel %vm304, %v271, 0
      %v318 = vsel %vm304, %v279, 0
      %320 = vmatprep.subr.bf16.mxu0 0
      %321 = vmatpush1.bf16.msra.mxu0 %v296
      %322 = vmatprep.subr.bf16.mxu0 0
      %323 = vmatpush1.bf16.msra.mxu0 %v297
      %324 = vmatprep.subr.bf16.mxu0 0
      %325 = vmatpush1.bf16.msra.mxu0 %v298
      %326 = vmatprep.subr.bf16.mxu0 0
      %327 = vmatpush1.bf16.msra.mxu0 %v299
      %328 = vmatprep.subr.bf16.mxu0 0
      %329 = vmatpush1.bf16.msra.mxu0 0
      %330 = vmatprep.subr.bf16.mxu0 0
      %331 = vmatpush1.bf16.msra.mxu0 0
      %332 = vmatprep.subr.bf16.mxu0 0
      %333 = vmatpush1.bf16.msra.mxu0 0
      %334 = vmatprep.subr.bf16.mxu0 0
      %335 = vmatpush1.bf16.msra.mxu0 0
      %336 = vmatprep.subr.bf16.mxu0 0
      %337 = vmatpush1.bf16.msra.mxu0 0
      %338 = vmatprep.subr.bf16.mxu0 0
      %339 = vmatpush1.bf16.msra.mxu0 0
      %340 = vmatprep.subr.bf16.mxu0 0
      %341 = vmatpush1.bf16.msra.mxu0 0
      %342 = vmatprep.subr.bf16.mxu0 0
      %343 = vmatpush1.bf16.msra.mxu0 0
      %344 = vmatprep.subr.bf16.mxu0 0
      %345 = vmatpush1.bf16.msra.mxu0 0
      %346 = vmatprep.subr.bf16.mxu0 0
      %347 = vmatpush1.bf16.msra.mxu0 0
      %348 = vmatprep.subr.bf16.mxu0 0
      %349 = vmatpush1.bf16.msra.mxu0 0
      %350 = vmatprep.subr.bf16.mxu0 0
      %351 = vmatpush1.bf16.msra.mxu0 0
      %352 = vmatprep.mubr.bf16.mxu0 0
      %353 = vmatmul.mubr.bf16.gmra.mrb[0].mxu0 %v306
      %v354 = vpop.f32.mrb[0].mxu0
      %v355 = vadd.f32 0.0, %v354
      %v356 = vpop.f32.mrb[0].mxu0
      %v357 = vpop.f32.mrb[0].mxu0
      %v358 = vadd.f32 0.0, %v357
      %v359 = vpop.f32.mrb[0].mxu0
      %360 = vmatprep.mubr.bf16.mxu0 0
      %361 = vmatmul.mubr.bf16.gmra.mrb[0].mxu0 %v309
      %v362 = vpop.f32.mrb[0].mxu0
      %v363 = vadd.f32 0.0, %v362
      %v364 = vpop.f32.mrb[0].mxu0
      %v365 = vpop.f32.mrb[0].mxu0
      %v366 = vadd.f32 0.0, %v365
      %v367 = vpop.f32.mrb[0].mxu0
      %368 = vmatprep.mubr.bf16.mxu0 0
      %369 = vmatmul.mubr.bf16.gmra.mrb[0].mxu0 %v312
      %v370 = vpop.f32.mrb[0].mxu0
      %v371 = vadd.f32 0.0, %v370
      %v372 = vpop.f32.mrb[0].mxu0
      %v373 = vpop.f32.mrb[0].mxu0
      %v374 = vadd.f32 0.0, %v373
      %v375 = vpop.f32.mrb[0].mxu0
      %376 = vmatprep.mubr.bf16.mxu0 0
      %377 = vmatmul.mubr.bf16.gmra.mrb[0].mxu0 %v315
      %v378 = vpop.f32.mrb[0].mxu0
      %v379 = vadd.f32 0.0, %v378
      %v380 = vpop.f32.mrb[0].mxu0
      %v381 = vpop.f32.mrb[0].mxu0
      %v382 = vadd.f32 0.0, %v381
      %v383 = vpop.f32.mrb[0].mxu0
      %384 = vmatprep.mubr.bf16.mxu0 0
      %385 = vmatmul.mubr.bf16.gmra.mrb[0].mxu0 %v318
      %v386 = vpop.f32.mrb[0].mxu0
      %v387 = vadd.f32 0.0, %v386
      %v388 = vpop.f32.mrb[0].mxu0
      %v389 = vpop.f32.mrb[0].mxu0
      %v390 = vadd.f32 0.0, %v389
      %v391 = vpop.f32.mrb[0].mxu0
      %392 = vdwg.mxu0
      %v401 = vunpack.c.l.b16 %v217
      %v402 = vunpack.c.l.b16 %v218
      %v403 = vunpack.c.l.b16 %v219
      %v404 = vunpack.c.l.b16 %v220
      %v405 = vunpack.c.l.b16 %v221
      %v406 = vunpack.c.l.b16 %v222
      %v407 = vunpack.c.l.b16 %v223
      %v408 = vunpack.c.l.b16 %v224
      %v409 = vpack.c.b16 %v402, %v401
      %v410 = vpack.c.b16 %v404, %v403
      %v411 = vpack.c.b16 %v406, %v405
      %v412 = vpack.c.b16 %v408, %v407
      %v417 = vsel %vm304, %v212, 0
      %v419 = vsel %vm304, %v213, 0
      %v421 = vsel %vm304, %v214, 0
      %v423 = vsel %vm304, %v215, 0
      %v425 = vsel %vm304, %v216, 0
      %427 = vmatprep.subr.bf16.mxu0 0
      %428 = vmatpush1.bf16.msra.mxu0 %v409
      %429 = vmatprep.subr.bf16.mxu0 0
      %430 = vmatpush1.bf16.msra.mxu0 %v410
      %431 = vmatprep.subr.bf16.mxu0 0
      %432 = vmatpush1.bf16.msra.mxu0 %v411
      %433 = vmatprep.subr.bf16.mxu0 0
      %434 = vmatpush1.bf16.msra.mxu0 %v412
      %435 = vmatprep.subr.bf16.mxu0 0
      %436 = vmatpush1.bf16.msra.mxu0 0
      %437 = vmatprep.subr.bf16.mxu0 0
      %438 = vmatpush1.bf16.msra.mxu0 0
      %439 = vmatprep.subr.bf16.mxu0 0
      %440 = vmatpush1.bf16.msra.mxu0 0
      %441 = vmatprep.subr.bf16.mxu0 0
      %442 = vmatpush1.bf16.msra.mxu0 0
      %443 = vmatprep.subr.bf16.mxu0 0
      %444 = vmatpush1.bf16.msra.mxu0 0
      %445 = vmatprep.subr.bf16.mxu0 0
      %446 = vmatpush1.bf16.msra.mxu0 0
      %447 = vmatprep.subr.bf16.mxu0 0
      %448 = vmatpush1.bf16.msra.mxu0 0
      %449 = vmatprep.subr.bf16.mxu0 0
      %450 = vmatpush1.bf16.msra.mxu0 0
      %451 = vmatprep.subr.bf16.mxu0 0
      %452 = vmatpush1.bf16.msra.mxu0 0
      %453 = vmatprep.subr.bf16.mxu0 0
      %454 = vmatpush1.bf16.msra.mxu0 0
      %455 = vmatprep.subr.bf16.mxu0 0
      %456 = vmatpush1.bf16.msra.mxu0 0
      %457 = vmatprep.subr.bf16.mxu0 0
      %458 = vmatpush1.bf16.msra.mxu0 0
      %459 = vmatprep.mubr.bf16.mxu0 0
      %460 = vmatmul.mubr.bf16.gmra.mrb[0].mxu0 %v417
      %v461 = vpop.f32.mrb[0].mxu0
      %v462 = vadd.f32 %v355, %v461
      %v463 = vpop.f32.mrb[0].mxu0
      %v464 = vpop.f32.mrb[0].mxu0
      %v465 = vadd.f32 %v358, %v464
      %v466 = vpop.f32.mrb[0].mxu0
      %467 = vmatprep.mubr.bf16.mxu0 0
      %468 = vmatmul.mubr.bf16.gmra.mrb[0].mxu0 %v419
      %v469 = vpop.f32.mrb[0].mxu0
      %v470 = vadd.f32 %v363, %v469
      %v471 = vpop.f32.mrb[0].mxu0
      %v472 = vpop.f32.mrb[0].mxu0
      %v473 = vadd.f32 %v366, %v472
      %v474 = vpop.f32.mrb[0].mxu0
      %475 = vmatprep.mubr.bf16.mxu0 0
      %476 = vmatmul.mubr.bf16.gmra.mrb[0].mxu0 %v421
      %v477 = vpop.f32.mrb[0].mxu0
      %v478 = vadd.f32 %v371, %v477
      %v479 = vpop.f32.mrb[0].mxu0
      %v480 = vpop.f32.mrb[0].mxu0
      %v481 = vadd.f32 %v374, %v480
      %v482 = vpop.f32.mrb[0].mxu0
      %483 = vmatprep.mubr.bf16.mxu0 0
      %484 = vmatmul.mubr.bf16.gmra.mrb[0].mxu0 %v423
      %v485 = vpop.f32.mrb[0].mxu0
      %v486 = vadd.f32 %v379, %v485
      %v487 = vpop.f32.mrb[0].mxu0
      %v488 = vpop.f32.mrb[0].mxu0
      %v489 = vadd.f32 %v382, %v488
      %v490 = vpop.f32.mrb[0].mxu0
      %491 = vmatprep.mubr.bf16.mxu0 0
      %492 = vmatmul.mubr.bf16.gmra.mrb[0].mxu0 %v425
      %v493 = vpop.f32.mrb[0].mxu0
      %v494 = vadd.f32 %v387, %v493
      %v495 = vpop.f32.mrb[0].mxu0
      %v496 = vpop.f32.mrb[0].mxu0
      %v497 = vadd.f32 %v390, %v496
      %v498 = vpop.f32.mrb[0].mxu0
      %499 = vdwg.mxu0
      %s500 = scalar_lea.vmem %s1, 64
      %v501 = vld [vmem:[%s500] sm:$0xf]
      %v502 = vld [vmem:[%s500 + $0x4] sm:$0xf]
      %v503 = vld [vmem:[%s500 + $0x8] sm:$0xf]
      %v504 = vld [vmem:[%s500 + $0xc] sm:$0xf]
      %v505 = vld [vmem:[%s500 + $0x10] sm:$0xf]
      %v506 = vld [vmem:[%s500 + $0x14] sm:$0xf]
      %v507 = vld [vmem:[%s500 + $0x18] sm:$0xf]
      %v508 = vld [vmem:[%s500 + $0x1c] sm:$0xf]
      %vm515 = vcmask 1046528
      %v516 = vrot.slane %v212, 1
      %v517 = vrot.slane %v213, 1
      %v518 = vsel %vm515, %v516, %v517
      %v519 = vrot.slane %v214, 1
      %v520 = vsel %vm515, %v517, %v519
      %v521 = vrot.slane %v215, 1
      %v522 = vsel %vm515, %v519, %v521
      %v523 = vrot.slane %v216, 1
      %v524 = vsel %vm515, %v521, %v523
      %v525 = vrot.slane %v225, 1
      %v526 = vsel %vm515, %v523, %v525
      %v535 = vunpack.c.l.b16 %v501
      %v536 = vunpack.c.l.b16 %v502
      %v537 = vunpack.c.l.b16 %v503
      %v538 = vunpack.c.l.b16 %v504
      %v539 = vunpack.c.l.b16 %v505
      %v540 = vunpack.c.l.b16 %v506
      %v541 = vunpack.c.l.b16 %v507
      %v542 = vunpack.c.l.b16 %v508
      %v543 = vpack.c.b16 %v536, %v535
      %v544 = vpack.c.b16 %v538, %v537
      %v545 = vpack.c.b16 %v540, %v539
      %v546 = vpack.c.b16 %v542, %v541
      %v552 = vsel %vm304, %v518, 0
      %v555 = vsel %vm304, %v520, 0
      %v558 = vsel %vm304, %v522, 0
      %v561 = vsel %vm304, %v524, 0
      %v564 = vsel %vm304, %v526, 0
      %566 = vmatprep.subr.bf16.mxu0 0
      %567 = vmatpush1.bf16.msra.mxu0 %v543
      %568 = vmatprep.subr.bf16.mxu0 0
      %569 = vmatpush1.bf16.msra.mxu0 %v544
      %570 = vmatprep.subr.bf16.mxu0 0
      %571 = vmatpush1.bf16.msra.mxu0 %v545
      %572 = vmatprep.subr.bf16.mxu0 0
      %573 = vmatpush1.bf16.msra.mxu0 %v546
      %574 = vmatprep.subr.bf16.mxu0 0
      %575 = vmatpush1.bf16.msra.mxu0 0
      %576 = vmatprep.subr.bf16.mxu0 0
      %577 = vmatpush1.bf16.msra.mxu0 0
      %578 = vmatprep.subr.bf16.mxu0 0
      %579 = vmatpush1.bf16.msra.mxu0 0
      %580 = vmatprep.subr.bf16.mxu0 0
      %581 = vmatpush1.bf16.msra.mxu0 0
      %582 = vmatprep.subr.bf16.mxu0 0
      %583 = vmatpush1.bf16.msra.mxu0 0
      %584 = vmatprep.subr.bf16.mxu0 0
      %585 = vmatpush1.bf16.msra.mxu0 0
      %586 = vmatprep.subr.bf16.mxu0 0
      %587 = vmatpush1.bf16.msra.mxu0 0
      %588 = vmatprep.subr.bf16.mxu0 0
      %589 = vmatpush1.bf16.msra.mxu0 0
      %590 = vmatprep.subr.bf16.mxu0 0
      %591 = vmatpush1.bf16.msra.mxu0 0
      %592 = vmatprep.subr.bf16.mxu0 0
      %593 = vmatpush1.bf16.msra.mxu0 0
      %594 = vmatprep.subr.bf16.mxu0 0
      %595 = vmatpush1.bf16.msra.mxu0 0
      %596 = vmatprep.subr.bf16.mxu0 0
      %597 = vmatpush1.bf16.msra.mxu0 0
      %598 = vmatprep.mubr.bf16.mxu0 0
      %599 = vmatmul.mubr.bf16.gmra.mrb[0].mxu0 %v552
      %v600 = vpop.f32.mrb[0].mxu0
      %v601 = vadd.f32 0.0, %v600
      %v602 = vpop.f32.mrb[0].mxu0
      %v603 = vpop.f32.mrb[0].mxu0
      %v604 = vadd.f32 0.0, %v603
      %v605 = vpop.f32.mrb[0].mxu0
      %606 = vmatprep.mubr.bf16.mxu0 0
      %607 = vmatmul.mubr.bf16.gmra.mrb[0].mxu0 %v555
      %v608 = vpop.f32.mrb[0].mxu0
      %v609 = vadd.f32 0.0, %v608
      %v610 = vpop.f32.mrb[0].mxu0
      %v611 = vpop.f32.mrb[0].mxu0
      %v612 = vadd.f32 0.0, %v611
      %v613 = vpop.f32.mrb[0].mxu0
      %614 = vmatprep.mubr.bf16.mxu0 0
      %615 = vmatmul.mubr.bf16.gmra.mrb[0].mxu0 %v558
      %v616 = vpop.f32.mrb[0].mxu0
      %v617 = vadd.f32 0.0, %v616
      %v618 = vpop.f32.mrb[0].mxu0
      %v619 = vpop.f32.mrb[0].mxu0
      %v620 = vadd.f32 0.0, %v619
      %v621 = vpop.f32.mrb[0].mxu0
      %622 = vmatprep.mubr.bf16.mxu0 0
      %623 = vmatmul.mubr.bf16.gmra.mrb[0].mxu0 %v561
      %v624 = vpop.f32.mrb[0].mxu0
      %v625 = vadd.f32 0.0, %v624
      %v626 = vpop.f32.mrb[0].mxu0
      %v627 = vpop.f32.mrb[0].mxu0
      %v628 = vadd.f32 0.0, %v627
      %v629 = vpop.f32.mrb[0].mxu0
      %630 = vmatprep.mubr.bf16.mxu0 0
      %631 = vmatmul.mubr.bf16.gmra.mrb[0].mxu0 %v564
      %v632 = vpop.f32.mrb[0].mxu0
      %v633 = vadd.f32 0.0, %v632
      %v634 = vpop.f32.mrb[0].mxu0
      %v635 = vpop.f32.mrb[0].mxu0
      %v636 = vadd.f32 0.0, %v635
      %v637 = vpop.f32.mrb[0].mxu0
      %638 = vdwg.mxu0
      %v639 = vadd.f32 %v462, %v601
      %v640 = vadd.f32 %v465, %v604
      %v641 = vadd.f32 %v470, %v609
      %v642 = vadd.f32 %v473, %v612
      %v643 = vadd.f32 %v478, %v617
      %v644 = vadd.f32 %v481, %v620
      %v645 = vadd.f32 %v486, %v625
      %v646 = vadd.f32 %v489, %v628
      %v647 = vadd.f32 %v494, %v633
      %v648 = vadd.f32 %v497, %v636
      %v649 = vpack.c.bf16 %v201, %v200
      %v650 = vpack.c.bf16 %v203, %v202
      %v651 = vpack.c.bf16 %v205, %v204
      %v652 = vpack.c.bf16 %v207, %v206
      %v653 = vpack.c.bf16 %v209, %v208
      %v654 = vpack.c.bf16 %v210, %v210
      %s655 = scalar_lea.vmem %s1, 96
      %v656 = vld [vmem:[%s655] sm:$0xf]
      %v657 = vld [vmem:[%s655 + $0x4] sm:$0xf]
      %v658 = vld [vmem:[%s655 + $0x8] sm:$0xf]
      %v659 = vld [vmem:[%s655 + $0xc] sm:$0xf]
      %v660 = vld [vmem:[%s655 + $0x10] sm:$0xf]
      %v661 = vld [vmem:[%s655 + $0x14] sm:$0xf]
      %v662 = vld [vmem:[%s655 + $0x18] sm:$0xf]
      %v663 = vld [vmem:[%s655 + $0x1c] sm:$0xf]
      %v670 = vrot.slane %v649, 1
      %v671 = vrot.slane %v650, 1
      %v672 = vsel %vm515, %v670, %v671
      %v673 = vrot.slane %v651, 1
      %v674 = vsel %vm515, %v671, %v673
      %v675 = vrot.slane %v652, 1
      %v676 = vsel %vm515, %v673, %v675
      %v677 = vrot.slane %v653, 1
      %v678 = vsel %vm515, %v675, %v677
      %v679 = vrot.slane %v654, 1
      %v680 = vsel %vm515, %v677, %v679
      %v689 = vunpack.c.l.b16 %v656
      %v690 = vunpack.c.l.b16 %v657
      %v691 = vunpack.c.l.b16 %v658
      %v692 = vunpack.c.l.b16 %v659
      %v693 = vunpack.c.l.b16 %v660
      %v694 = vunpack.c.l.b16 %v661
      %v695 = vunpack.c.l.b16 %v662
      %v696 = vunpack.c.l.b16 %v663
      %v697 = vpack.c.b16 %v690, %v689
      %v698 = vpack.c.b16 %v692, %v691
      %v699 = vpack.c.b16 %v694, %v693
      %v700 = vpack.c.b16 %v696, %v695
      %v706 = vsel %vm304, %v672, 0
      %v709 = vsel %vm304, %v674, 0
      %v712 = vsel %vm304, %v676, 0
      %v715 = vsel %vm304, %v678, 0
      %v718 = vsel %vm304, %v680, 0
      %720 = vmatprep.subr.bf16.mxu0 0
      %721 = vmatpush1.bf16.msra.mxu0 %v697
      %722 = vmatprep.subr.bf16.mxu0 0
      %723 = vmatpush1.bf16.msra.mxu0 %v698
      %724 = vmatprep.subr.bf16.mxu0 0
      %725 = vmatpush1.bf16.msra.mxu0 %v699
      %726 = vmatprep.subr.bf16.mxu0 0
      %727 = vmatpush1.bf16.msra.mxu0 %v700
      %728 = vmatprep.subr.bf16.mxu0 0
      %729 = vmatpush1.bf16.msra.mxu0 0
      %730 = vmatprep.subr.bf16.mxu0 0
      %731 = vmatpush1.bf16.msra.mxu0 0
      %732 = vmatprep.subr.bf16.mxu0 0
      %733 = vmatpush1.bf16.msra.mxu0 0
      %734 = vmatprep.subr.bf16.mxu0 0
      %735 = vmatpush1.bf16.msra.mxu0 0
      %736 = vmatprep.subr.bf16.mxu0 0
      %737 = vmatpush1.bf16.msra.mxu0 0
      %738 = vmatprep.subr.bf16.mxu0 0
      %739 = vmatpush1.bf16.msra.mxu0 0
      %740 = vmatprep.subr.bf16.mxu0 0
      %741 = vmatpush1.bf16.msra.mxu0 0
      %742 = vmatprep.subr.bf16.mxu0 0
      %743 = vmatpush1.bf16.msra.mxu0 0
      %744 = vmatprep.subr.bf16.mxu0 0
      %745 = vmatpush1.bf16.msra.mxu0 0
      %746 = vmatprep.subr.bf16.mxu0 0
      %747 = vmatpush1.bf16.msra.mxu0 0
      %748 = vmatprep.subr.bf16.mxu0 0
      %749 = vmatpush1.bf16.msra.mxu0 0
      %750 = vmatprep.subr.bf16.mxu0 0
      %751 = vmatpush1.bf16.msra.mxu0 0
      %752 = vmatprep.mubr.bf16.mxu0 0
      %753 = vmatmul.mubr.bf16.gmra.mrb[0].mxu0 %v706
      %v754 = vpop.f32.mrb[0].mxu0
      %v755 = vadd.f32 0.0, %v754
      %v756 = vpop.f32.mrb[0].mxu0
      %v757 = vpop.f32.mrb[0].mxu0
      %v758 = vadd.f32 0.0, %v757
      %v759 = vpop.f32.mrb[0].mxu0
      %760 = vmatprep.mubr.bf16.mxu0 0
      %761 = vmatmul.mubr.bf16.gmra.mrb[0].mxu0 %v709
      %v762 = vpop.f32.mrb[0].mxu0
      %v763 = vadd.f32 0.0, %v762
      %v764 = vpop.f32.mrb[0].mxu0
      %v765 = vpop.f32.mrb[0].mxu0
      %v766 = vadd.f32 0.0, %v765
      %v767 = vpop.f32.mrb[0].mxu0
      %768 = vmatprep.mubr.bf16.mxu0 0
      %769 = vmatmul.mubr.bf16.gmra.mrb[0].mxu0 %v712
      %v770 = vpop.f32.mrb[0].mxu0
      %v771 = vadd.f32 0.0, %v770
      %v772 = vpop.f32.mrb[0].mxu0
      %v773 = vpop.f32.mrb[0].mxu0
      %v774 = vadd.f32 0.0, %v773
      %v775 = vpop.f32.mrb[0].mxu0
      %776 = vmatprep.mubr.bf16.mxu0 0
      %777 = vmatmul.mubr.bf16.gmra.mrb[0].mxu0 %v715
      %v778 = vpop.f32.mrb[0].mxu0
      %v779 = vadd.f32 0.0, %v778
      %v780 = vpop.f32.mrb[0].mxu0
      %v781 = vpop.f32.mrb[0].mxu0
      %v782 = vadd.f32 0.0, %v781
      %v783 = vpop.f32.mrb[0].mxu0
      %784 = vmatprep.mubr.bf16.mxu0 0
      %785 = vmatmul.mubr.bf16.gmra.mrb[0].mxu0 %v718
      %v786 = vpop.f32.mrb[0].mxu0
      %v787 = vadd.f32 0.0, %v786
      %v788 = vpop.f32.mrb[0].mxu0
      %v789 = vpop.f32.mrb[0].mxu0
      %v790 = vadd.f32 0.0, %v789
      %v791 = vpop.f32.mrb[0].mxu0
      %792 = vdwg.mxu0
      %v793 = vadd.f32 %v639, %v755
      %v794 = vadd.f32 %v640, %v758
      %v795 = vadd.f32 %v641, %v763
      %v796 = vadd.f32 %v642, %v766
      %v797 = vadd.f32 %v643, %v771
      %v798 = vadd.f32 %v644, %v774
      %v799 = vadd.f32 %v645, %v779
      %v800 = vadd.f32 %v646, %v782
      %v801 = vadd.f32 %v647, %v787
      %v802 = vadd.f32 %v648, %v790
      %s803 = scalar_lea.vmem %s1, 128
      %v804 = vld [vmem:[%s803] sm:$0xf]
      %v805 = vld [vmem:[%s803 + $0x4] sm:$0xf]
      %v806 = vld [vmem:[%s803 + $0x8] sm:$0xf]
      %v807 = vld [vmem:[%s803 + $0xc] sm:$0xf]
      %v808 = vld [vmem:[%s803 + $0x10] sm:$0xf]
      %v809 = vld [vmem:[%s803 + $0x14] sm:$0xf]
      %v810 = vld [vmem:[%s803 + $0x18] sm:$0xf]
      %v811 = vld [vmem:[%s803 + $0x1c] sm:$0xf]
      %vm812 = vsmask.f32 6400
      %v814 = vshrl.u32 %v649, 16
      %v816 = vrot.slane %v814, 1
      %v817 = vshll.u32 %v649, 16
      %v819 = vrot.slane %v817, 2
      %v820 = vor.u32 %v816, %v819
      %v822 = vshrl.u32 %v650, 16
      %v824 = vrot.slane %v822, 1
      %v825 = vshll.u32 %v650, 16
      %v827 = vrot.slane %v825, 2
      %v828 = vor.u32 %v824, %v827
      %v829 = vsel %vm812, %v820, %v828
      %v831 = vshrl.u32 %v651, 16
      %v833 = vrot.slane %v831, 1
      %v834 = vshll.u32 %v651, 16
      %v836 = vrot.slane %v834, 2
      %v837 = vor.u32 %v833, %v836
      %v838 = vsel %vm812, %v828, %v837
      %v840 = vshrl.u32 %v652, 16
      %v842 = vrot.slane %v840, 1
      %v843 = vshll.u32 %v652, 16
      %v845 = vrot.slane %v843, 2
      %v846 = vor.u32 %v842, %v845
      %v847 = vsel %vm812, %v837, %v846
      %v849 = vshrl.u32 %v653, 16
      %v851 = vrot.slane %v849, 1
      %v852 = vshll.u32 %v653, 16
      %v854 = vrot.slane %v852, 2
      %v855 = vor.u32 %v851, %v854
      %v856 = vsel %vm812, %v846, %v855
      %v858 = vshrl.u32 %v654, 16
      %v860 = vrot.slane %v858, 1
      %v861 = vshll.u32 %v654, 16
      %v863 = vrot.slane %v861, 2
      %v864 = vor.u32 %v860, %v863
      %v865 = vsel %vm812, %v855, %v864
      %v874 = vunpack.c.l.b16 %v804
      %v875 = vunpack.c.l.b16 %v805
      %v876 = vunpack.c.l.b16 %v806
      %v877 = vunpack.c.l.b16 %v807
      %v878 = vunpack.c.l.b16 %v808
      %v879 = vunpack.c.l.b16 %v809
      %v880 = vunpack.c.l.b16 %v810
      %v881 = vunpack.c.l.b16 %v811
      %v882 = vpack.c.b16 %v875, %v874
      %v883 = vpack.c.b16 %v877, %v876
      %v884 = vpack.c.b16 %v879, %v878
      %v885 = vpack.c.b16 %v881, %v880
      %v891 = vsel %vm304, %v829, 0
      %v894 = vsel %vm304, %v838, 0
      %v897 = vsel %vm304, %v847, 0
      %v900 = vsel %vm304, %v856, 0
      %v903 = vsel %vm304, %v865, 0
      %905 = vmatprep.subr.bf16.mxu0 0
      %906 = vmatpush1.bf16.msra.mxu0 %v882
      %907 = vmatprep.subr.bf16.mxu0 0
      %908 = vmatpush1.bf16.msra.mxu0 %v883
      %909 = vmatprep.subr.bf16.mxu0 0
      %910 = vmatpush1.bf16.msra.mxu0 %v884
      %911 = vmatprep.subr.bf16.mxu0 0
      %912 = vmatpush1.bf16.msra.mxu0 %v885
      %913 = vmatprep.subr.bf16.mxu0 0
      %914 = vmatpush1.bf16.msra.mxu0 0
      %915 = vmatprep.subr.bf16.mxu0 0
      %916 = vmatpush1.bf16.msra.mxu0 0
      %917 = vmatprep.subr.bf16.mxu0 0
      %918 = vmatpush1.bf16.msra.mxu0 0
      %919 = vmatprep.subr.bf16.mxu0 0
      %920 = vmatpush1.bf16.msra.mxu0 0
      %921 = vmatprep.subr.bf16.mxu0 0
      %922 = vmatpush1.bf16.msra.mxu0 0
      %923 = vmatprep.subr.bf16.mxu0 0
      %924 = vmatpush1.bf16.msra.mxu0 0
      %925 = vmatprep.subr.bf16.mxu0 0
      %926 = vmatpush1.bf16.msra.mxu0 0
      %927 = vmatprep.subr.bf16.mxu0 0
      %928 = vmatpush1.bf16.msra.mxu0 0
      %929 = vmatprep.subr.bf16.mxu0 0
      %930 = vmatpush1.bf16.msra.mxu0 0
      %931 = vmatprep.subr.bf16.mxu0 0
      %932 = vmatpush1.bf16.msra.mxu0 0
      %933 = vmatprep.subr.bf16.mxu0 0
      %934 = vmatpush1.bf16.msra.mxu0 0
      %935 = vmatprep.subr.bf16.mxu0 0
      %936 = vmatpush1.bf16.msra.mxu0 0
      %937 = vmatprep.mubr.bf16.mxu0 0
      %938 = vmatmul.mubr.bf16.gmra.mrb[0].mxu0 %v891
      %v939 = vpop.f32.mrb[0].mxu0
      %v940 = vadd.f32 0.0, %v939
      %v941 = vpop.f32.mrb[0].mxu0
      %v942 = vpop.f32.mrb[0].mxu0
      %v943 = vadd.f32 0.0, %v942
      %v944 = vpop.f32.mrb[0].mxu0
      %945 = vmatprep.mubr.bf16.mxu0 0
      %946 = vmatmul.mubr.bf16.gmra.mrb[0].mxu0 %v894
      %v947 = vpop.f32.mrb[0].mxu0
      %v948 = vadd.f32 0.0, %v947
      %v949 = vpop.f32.mrb[0].mxu0
      %v950 = vpop.f32.mrb[0].mxu0
      %v951 = vadd.f32 0.0, %v950
      %v952 = vpop.f32.mrb[0].mxu0
      %953 = vmatprep.mubr.bf16.mxu0 0
      %954 = vmatmul.mubr.bf16.gmra.mrb[0].mxu0 %v897
      %v955 = vpop.f32.mrb[0].mxu0
      %v956 = vadd.f32 0.0, %v955
      %v957 = vpop.f32.mrb[0].mxu0
      %v958 = vpop.f32.mrb[0].mxu0
      %v959 = vadd.f32 0.0, %v958
      %v960 = vpop.f32.mrb[0].mxu0
      %961 = vmatprep.mubr.bf16.mxu0 0
      %962 = vmatmul.mubr.bf16.gmra.mrb[0].mxu0 %v900
      %v963 = vpop.f32.mrb[0].mxu0
      %v964 = vadd.f32 0.0, %v963
      %v965 = vpop.f32.mrb[0].mxu0
      %v966 = vpop.f32.mrb[0].mxu0
      %v967 = vadd.f32 0.0, %v966
      %v968 = vpop.f32.mrb[0].mxu0
      %969 = vmatprep.mubr.bf16.mxu0 0
      %970 = vmatmul.mubr.bf16.gmra.mrb[0].mxu0 %v903
      %v971 = vpop.f32.mrb[0].mxu0
      %v972 = vadd.f32 0.0, %v971
      %v973 = vpop.f32.mrb[0].mxu0
      %v974 = vpop.f32.mrb[0].mxu0
      %v975 = vadd.f32 0.0, %v974
      %v976 = vpop.f32.mrb[0].mxu0
      %977 = vdwg.mxu0
      %v978 = vadd.f32 %v793, %v940
      %v979 = vadd.f32 %v794, %v943
      %v980 = vadd.f32 %v795, %v948
      %v981 = vadd.f32 %v796, %v951
      %v982 = vadd.f32 %v797, %v956
      %v983 = vadd.f32 %v798, %v959
      %v984 = vadd.f32 %v799, %v964
      %v985 = vadd.f32 %v800, %v967
      %v986 = vadd.f32 %v801, %v972
      %v987 = vadd.f32 %v802, %v975
      %s988 = scalar_lea.vmem %s1, 160
      %v989 = vld [vmem:[%s988] sm:$0xf]
      %v990 = vld [vmem:[%s988 + $0x4] sm:$0xf]
      %v991 = vld [vmem:[%s988 + $0x8] sm:$0xf]
      %v992 = vld [vmem:[%s988 + $0xc] sm:$0xf]
      %v993 = vld [vmem:[%s988 + $0x10] sm:$0xf]
      %v994 = vld [vmem:[%s988 + $0x14] sm:$0xf]
      %v995 = vld [vmem:[%s988 + $0x18] sm:$0xf]
      %v996 = vld [vmem:[%s988 + $0x1c] sm:$0xf]
      %vm997 = vcmask 1045504
      %v998 = vrot.slane %v649, 2
      %v999 = vrot.slane %v650, 2
      %v1000 = vsel %vm997, %v998, %v999
      %v1001 = vrot.slane %v651, 2
      %v1002 = vsel %vm997, %v999, %v1001
      %v1003 = vrot.slane %v652, 2
      %v1004 = vsel %vm997, %v1001, %v1003
      %v1005 = vrot.slane %v653, 2
      %v1006 = vsel %vm997, %v1003, %v1005
      %v1007 = vrot.slane %v654, 2
      %v1008 = vsel %vm997, %v1005, %v1007
      %v1017 = vunpack.c.l.b16 %v989
      %v1018 = vunpack.c.l.b16 %v990
      %v1019 = vunpack.c.l.b16 %v991
      %v1020 = vunpack.c.l.b16 %v992
      %v1021 = vunpack.c.l.b16 %v993
      %v1022 = vunpack.c.l.b16 %v994
      %v1023 = vunpack.c.l.b16 %v995
      %v1024 = vunpack.c.l.b16 %v996
      %v1025 = vpack.c.b16 %v1018, %v1017
      %v1026 = vpack.c.b16 %v1020, %v1019
      %v1027 = vpack.c.b16 %v1022, %v1021
      %v1028 = vpack.c.b16 %v1024, %v1023
      %v1034 = vsel %vm304, %v1000, 0
      %v1037 = vsel %vm304, %v1002, 0
      %v1040 = vsel %vm304, %v1004, 0
      %v1043 = vsel %vm304, %v1006, 0
      %v1046 = vsel %vm304, %v1008, 0
      %1048 = vmatprep.subr.bf16.mxu0 0
      %1049 = vmatpush1.bf16.msra.mxu0 %v1025
      %1050 = vmatprep.subr.bf16.mxu0 0
      %1051 = vmatpush1.bf16.msra.mxu0 %v1026
      %1052 = vmatprep.subr.bf16.mxu0 0
      %1053 = vmatpush1.bf16.msra.mxu0 %v1027
      %1054 = vmatprep.subr.bf16.mxu0 0
      %1055 = vmatpush1.bf16.msra.mxu0 %v1028
      %1056 = vmatprep.subr.bf16.mxu0 0
      %1057 = vmatpush1.bf16.msra.mxu0 0
      %1058 = vmatprep.subr.bf16.mxu0 0
      %1059 = vmatpush1.bf16.msra.mxu0 0
      %1060 = vmatprep.subr.bf16.mxu0 0
      %1061 = vmatpush1.bf16.msra.mxu0 0
      %1062 = vmatprep.subr.bf16.mxu0 0
      %1063 = vmatpush1.bf16.msra.mxu0 0
      %1064 = vmatprep.subr.bf16.mxu0 0
      %1065 = vmatpush1.bf16.msra.mxu0 0
      %1066 = vmatprep.subr.bf16.mxu0 0
      %1067 = vmatpush1.bf16.msra.mxu0 0
      %1068 = vmatprep.subr.bf16.mxu0 0
      %1069 = vmatpush1.bf16.msra.mxu0 0
      %1070 = vmatprep.subr.bf16.mxu0 0
      %1071 = vmatpush1.bf16.msra.mxu0 0
      %1072 = vmatprep.subr.bf16.mxu0 0
      %1073 = vmatpush1.bf16.msra.mxu0 0
      %1074 = vmatprep.subr.bf16.mxu0 0
      %1075 = vmatpush1.bf16.msra.mxu0 0
      %1076 = vmatprep.subr.bf16.mxu0 0
      %1077 = vmatpush1.bf16.msra.mxu0 0
      %1078 = vmatprep.subr.bf16.mxu0 0
      %1079 = vmatpush1.bf16.msra.mxu0 0
      %1080 = vmatprep.mubr.bf16.mxu0 0
      %1081 = vmatmul.mubr.bf16.gmra.mrb[0].mxu0 %v1034
      %v1082 = vpop.f32.mrb[0].mxu0
      %v1083 = vadd.f32 0.0, %v1082
      %v1084 = vpop.f32.mrb[0].mxu0
      %v1085 = vpop.f32.mrb[0].mxu0
      %v1086 = vadd.f32 0.0, %v1085
      %v1087 = vpop.f32.mrb[0].mxu0
      %1088 = vmatprep.mubr.bf16.mxu0 0
      %1089 = vmatmul.mubr.bf16.gmra.mrb[0].mxu0 %v1037
      %v1090 = vpop.f32.mrb[0].mxu0
      %v1091 = vadd.f32 0.0, %v1090
      %v1092 = vpop.f32.mrb[0].mxu0
      %v1093 = vpop.f32.mrb[0].mxu0
      %v1094 = vadd.f32 0.0, %v1093
      %v1095 = vpop.f32.mrb[0].mxu0
      %1096 = vmatprep.mubr.bf16.mxu0 0
      %1097 = vmatmul.mubr.bf16.gmra.mrb[0].mxu0 %v1040
      %v1098 = vpop.f32.mrb[0].mxu0
      %v1099 = vadd.f32 0.0, %v1098
      %v1100 = vpop.f32.mrb[0].mxu0
      %v1101 = vpop.f32.mrb[0].mxu0
      %v1102 = vadd.f32 0.0, %v1101
      %v1103 = vpop.f32.mrb[0].mxu0
      %1104 = vmatprep.mubr.bf16.mxu0 0
      %1105 = vmatmul.mubr.bf16.gmra.mrb[0].mxu0 %v1043
      %v1106 = vpop.f32.mrb[0].mxu0
      %v1107 = vadd.f32 0.0, %v1106
      %v1108 = vpop.f32.mrb[0].mxu0
      %v1109 = vpop.f32.mrb[0].mxu0
      %v1110 = vadd.f32 0.0, %v1109
      %v1111 = vpop.f32.mrb[0].mxu0
      %1112 = vmatprep.mubr.bf16.mxu0 0
      %1113 = vmatmul.mubr.bf16.gmra.mrb[0].mxu0 %v1046
      %v1114 = vpop.f32.mrb[0].mxu0
      %v1115 = vadd.f32 0.0, %v1114
      %v1116 = vpop.f32.mrb[0].mxu0
      %v1117 = vpop.f32.mrb[0].mxu0
      %v1118 = vadd.f32 0.0, %v1117
      %v1119 = vpop.f32.mrb[0].mxu0
      %1120 = vdwg.mxu0
      %v1121 = vadd.f32 %v978, %v1083
      %v1122 = vadd.f32 %v979, %v1086
      %v1123 = vadd.f32 %v980, %v1091
      %v1124 = vadd.f32 %v981, %v1094
      %v1125 = vadd.f32 %v982, %v1099
      %v1126 = vadd.f32 %v983, %v1102
      %v1127 = vadd.f32 %v984, %v1107
      %v1128 = vadd.f32 %v985, %v1110
      %v1129 = vadd.f32 %v986, %v1115
      %v1130 = vadd.f32 %v987, %v1118
      %v1131 = vpack.c.bf16 %v210, %v209
      %v1132 = vpack.c.bf16 %v211, %v211
      %s1133 = scalar_lea.vmem %s1, 192
      %v1134 = vld [vmem:[%s1133] sm:$0xf]
      %v1135 = vld [vmem:[%s1133 + $0x4] sm:$0xf]
      %v1136 = vld [vmem:[%s1133 + $0x8] sm:$0xf]
      %v1137 = vld [vmem:[%s1133 + $0xc] sm:$0xf]
      %v1138 = vld [vmem:[%s1133 + $0x10] sm:$0xf]
      %v1139 = vld [vmem:[%s1133 + $0x14] sm:$0xf]
      %v1140 = vld [vmem:[%s1133 + $0x18] sm:$0xf]
      %v1141 = vld [vmem:[%s1133 + $0x1c] sm:$0xf]
      %v1144 = vrot.slane %v213, 2
      %v1145 = vrot.slane %v214, 2
      %v1146 = vsel %vm997, %v1144, %v1145
      %v1147 = vrot.slane %v215, 2
      %v1148 = vsel %vm997, %v1145, %v1147
      %v1149 = vrot.slane %v216, 2
      %v1150 = vsel %vm997, %v1147, %v1149
      %v1151 = vrot.slane %v1131, 2
      %v1152 = vsel %vm997, %v1149, %v1151
      %v1153 = vrot.slane %v1132, 2
      %v1154 = vsel %vm997, %v1151, %v1153
      %v1163 = vunpack.c.l.b16 %v1134
      %v1164 = vunpack.c.l.b16 %v1135
      %v1165 = vunpack.c.l.b16 %v1136
      %v1166 = vunpack.c.l.b16 %v1137
      %v1167 = vunpack.c.l.b16 %v1138
      %v1168 = vunpack.c.l.b16 %v1139
      %v1169 = vunpack.c.l.b16 %v1140
      %v1170 = vunpack.c.l.b16 %v1141
      %v1171 = vpack.c.b16 %v1164, %v1163
      %v1172 = vpack.c.b16 %v1166, %v1165
      %v1173 = vpack.c.b16 %v1168, %v1167
      %v1174 = vpack.c.b16 %v1170, %v1169
      %v1180 = vsel %vm304, %v1146, 0
      %v1183 = vsel %vm304, %v1148, 0
      %v1186 = vsel %vm304, %v1150, 0
      %v1189 = vsel %vm304, %v1152, 0
      %v1192 = vsel %vm304, %v1154, 0
      %1194 = vmatprep.subr.bf16.mxu0 0
      %1195 = vmatpush1.bf16.msra.mxu0 %v1171
      %1196 = vmatprep.subr.bf16.mxu0 0
      %1197 = vmatpush1.bf16.msra.mxu0 %v1172
      %1198 = vmatprep.subr.bf16.mxu0 0
      %1199 = vmatpush1.bf16.msra.mxu0 %v1173
      %1200 = vmatprep.subr.bf16.mxu0 0
      %1201 = vmatpush1.bf16.msra.mxu0 %v1174
      %1202 = vmatprep.subr.bf16.mxu0 0
      %1203 = vmatpush1.bf16.msra.mxu0 0
      %1204 = vmatprep.subr.bf16.mxu0 0
      %1205 = vmatpush1.bf16.msra.mxu0 0
      %1206 = vmatprep.subr.bf16.mxu0 0
      %1207 = vmatpush1.bf16.msra.mxu0 0
      %1208 = vmatprep.subr.bf16.mxu0 0
      %1209 = vmatpush1.bf16.msra.mxu0 0
      %1210 = vmatprep.subr.bf16.mxu0 0
      %1211 = vmatpush1.bf16.msra.mxu0 0
      %1212 = vmatprep.subr.bf16.mxu0 0
      %1213 = vmatpush1.bf16.msra.mxu0 0
      %1214 = vmatprep.subr.bf16.mxu0 0
      %1215 = vmatpush1.bf16.msra.mxu0 0
      %1216 = vmatprep.subr.bf16.mxu0 0
      %1217 = vmatpush1.bf16.msra.mxu0 0
      %1218 = vmatprep.subr.bf16.mxu0 0
      %1219 = vmatpush1.bf16.msra.mxu0 0
      %1220 = vmatprep.subr.bf16.mxu0 0
      %1221 = vmatpush1.bf16.msra.mxu0 0
      %1222 = vmatprep.subr.bf16.mxu0 0
      %1223 = vmatpush1.bf16.msra.mxu0 0
      %1224 = vmatprep.subr.bf16.mxu0 0
      %1225 = vmatpush1.bf16.msra.mxu0 0
      %1226 = vmatprep.mubr.bf16.mxu0 0
      %1227 = vmatmul.mubr.bf16.gmra.mrb[0].mxu0 %v1180
      %v1228 = vpop.f32.mrb[0].mxu0
      %v1229 = vadd.f32 0.0, %v1228
      %v1230 = vpop.f32.mrb[0].mxu0
      %v1231 = vpop.f32.mrb[0].mxu0
      %v1232 = vadd.f32 0.0, %v1231
      %v1233 = vpop.f32.mrb[0].mxu0
      %1234 = vmatprep.mubr.bf16.mxu0 0
      %1235 = vmatmul.mubr.bf16.gmra.mrb[0].mxu0 %v1183
      %v1236 = vpop.f32.mrb[0].mxu0
      %v1237 = vadd.f32 0.0, %v1236
      %v1238 = vpop.f32.mrb[0].mxu0
      %v1239 = vpop.f32.mrb[0].mxu0
      %v1240 = vadd.f32 0.0, %v1239
      %v1241 = vpop.f32.mrb[0].mxu0
      %1242 = vmatprep.mubr.bf16.mxu0 0
      %1243 = vmatmul.mubr.bf16.gmra.mrb[0].mxu0 %v1186
      %v1244 = vpop.f32.mrb[0].mxu0
      %v1245 = vadd.f32 0.0, %v1244
      %v1246 = vpop.f32.mrb[0].mxu0
      %v1247 = vpop.f32.mrb[0].mxu0
      %v1248 = vadd.f32 0.0, %v1247
      %v1249 = vpop.f32.mrb[0].mxu0
      %1250 = vmatprep.mubr.bf16.mxu0 0
      %1251 = vmatmul.mubr.bf16.gmra.mrb[0].mxu0 %v1189
      %v1252 = vpop.f32.mrb[0].mxu0
      %v1253 = vadd.f32 0.0, %v1252
      %v1254 = vpop.f32.mrb[0].mxu0
      %v1255 = vpop.f32.mrb[0].mxu0
      %v1256 = vadd.f32 0.0, %v1255
      %v1257 = vpop.f32.mrb[0].mxu0
      %1258 = vmatprep.mubr.bf16.mxu0 0
      %1259 = vmatmul.mubr.bf16.gmra.mrb[0].mxu0 %v1192
      %v1260 = vpop.f32.mrb[0].mxu0
      %v1261 = vadd.f32 0.0, %v1260
      %v1262 = vpop.f32.mrb[0].mxu0
      %v1263 = vpop.f32.mrb[0].mxu0
      %v1264 = vadd.f32 0.0, %v1263
      %v1265 = vpop.f32.mrb[0].mxu0
      %1266 = vdwg.mxu0
      %v1267 = vadd.f32 %v1121, %v1229
      %v1268 = vadd.f32 %v1122, %v1232
      %v1269 = vadd.f32 %v1123, %v1237
      %v1270 = vadd.f32 %v1124, %v1240
      %v1271 = vadd.f32 %v1125, %v1245
      %v1272 = vadd.f32 %v1126, %v1248
      %v1273 = vadd.f32 %v1127, %v1253
      %v1274 = vadd.f32 %v1128, %v1256
      %v1275 = vadd.f32 %v1129, %v1261
      %v1276 = vadd.f32 %v1130, %v1264
      %s1277 = scalar_lea.vmem %s1, 224
      %v1278 = vld [vmem:[%s1277] sm:$0xf]
      %v1279 = vld [vmem:[%s1277 + $0x4] sm:$0xf]
      %v1280 = vld [vmem:[%s1277 + $0x8] sm:$0xf]
      %v1281 = vld [vmem:[%s1277 + $0xc] sm:$0xf]
      %v1282 = vld [vmem:[%s1277 + $0x10] sm:$0xf]
      %v1283 = vld [vmem:[%s1277 + $0x14] sm:$0xf]
      %v1284 = vld [vmem:[%s1277 + $0x18] sm:$0xf]
      %v1285 = vld [vmem:[%s1277 + $0x1c] sm:$0xf]
      %vm1286 = vsmask.f32 5376
      %v1287 = vrot.slane %v248, 2
      %v1288 = vrot.slane %v244, 3
      %v1289 = vor.u32 %v1287, %v1288
      %v1290 = vrot.slane %v256, 2
      %v1291 = vrot.slane %v252, 3
      %v1292 = vor.u32 %v1290, %v1291
      %v1293 = vsel %vm1286, %v1289, %v1292
      %v1294 = vrot.slane %v264, 2
      %v1295 = vrot.slane %v260, 3
      %v1296 = vor.u32 %v1294, %v1295
      %v1297 = vsel %vm1286, %v1292, %v1296
      %v1298 = vrot.slane %v272, 2
      %v1299 = vrot.slane %v268, 3
      %v1300 = vor.u32 %v1298, %v1299
      %v1301 = vsel %vm1286, %v1296, %v1300
      %v1303 = vshrl.u32 %v1131, 16
      %v1305 = vrot.slane %v1303, 2
      %v1306 = vshll.u32 %v1131, 16
      %v1308 = vrot.slane %v1306, 3
      %v1309 = vor.u32 %v1305, %v1308
      %v1310 = vsel %vm1286, %v1300, %v1309
      %v1312 = vshrl.u32 %v1132, 16
      %v1314 = vrot.slane %v1312, 2
      %v1315 = vshll.u32 %v1132, 16
      %v1317 = vrot.slane %v1315, 3
      %v1318 = vor.u32 %v1314, %v1317
      %v1319 = vsel %vm1286, %v1309, %v1318
      %v1328 = vunpack.c.l.b16 %v1278
      %v1329 = vunpack.c.l.b16 %v1279
      %v1330 = vunpack.c.l.b16 %v1280
      %v1331 = vunpack.c.l.b16 %v1281
      %v1332 = vunpack.c.l.b16 %v1282
      %v1333 = vunpack.c.l.b16 %v1283
      %v1334 = vunpack.c.l.b16 %v1284
      %v1335 = vunpack.c.l.b16 %v1285
      %v1336 = vpack.c.b16 %v1329, %v1328
      %v1337 = vpack.c.b16 %v1331, %v1330
      %v1338 = vpack.c.b16 %v1333, %v1332
      %v1339 = vpack.c.b16 %v1335, %v1334
      %v1345 = vsel %vm304, %v1293, 0
      %v1348 = vsel %vm304, %v1297, 0
      %v1351 = vsel %vm304, %v1301, 0
      %v1354 = vsel %vm304, %v1310, 0
      %v1357 = vsel %vm304, %v1319, 0
      %1359 = vmatprep.subr.bf16.mxu0 0
      %1360 = vmatpush1.bf16.msra.mxu0 %v1336
      %1361 = vmatprep.subr.bf16.mxu0 0
      %1362 = vmatpush1.bf16.msra.mxu0 %v1337
      %1363 = vmatprep.subr.bf16.mxu0 0
      %1364 = vmatpush1.bf16.msra.mxu0 %v1338
      %1365 = vmatprep.subr.bf16.mxu0 0
      %1366 = vmatpush1.bf16.msra.mxu0 %v1339
      %1367 = vmatprep.subr.bf16.mxu0 0
      %1368 = vmatpush1.bf16.msra.mxu0 0
      %1369 = vmatprep.subr.bf16.mxu0 0
      %1370 = vmatpush1.bf16.msra.mxu0 0
      %1371 = vmatprep.subr.bf16.mxu0 0
      %1372 = vmatpush1.bf16.msra.mxu0 0
      %1373 = vmatprep.subr.bf16.mxu0 0
      %1374 = vmatpush1.bf16.msra.mxu0 0
      %1375 = vmatprep.subr.bf16.mxu0 0
      %1376 = vmatpush1.bf16.msra.mxu0 0
      %1377 = vmatprep.subr.bf16.mxu0 0
      %1378 = vmatpush1.bf16.msra.mxu0 0
      %1379 = vmatprep.subr.bf16.mxu0 0
      %1380 = vmatpush1.bf16.msra.mxu0 0
      %1381 = vmatprep.subr.bf16.mxu0 0
      %1382 = vmatpush1.bf16.msra.mxu0 0
      %1383 = vmatprep.subr.bf16.mxu0 0
      %1384 = vmatpush1.bf16.msra.mxu0 0
      %1385 = vmatprep.subr.bf16.mxu0 0
      %1386 = vmatpush1.bf16.msra.mxu0 0
      %1387 = vmatprep.subr.bf16.mxu0 0
      %1388 = vmatpush1.bf16.msra.mxu0 0
      %1389 = vmatprep.subr.bf16.mxu0 0
      %1390 = vmatpush1.bf16.msra.mxu0 0
      %1391 = vmatprep.mubr.bf16.mxu0 0
      %1392 = vmatmul.mubr.bf16.gmra.mrb[0].mxu0 %v1345
      %v1393 = vpop.f32.mrb[0].mxu0
      %v1394 = vadd.f32 0.0, %v1393
      %v1395 = vpop.f32.mrb[0].mxu0
      %v1396 = vpop.f32.mrb[0].mxu0
      %v1397 = vadd.f32 0.0, %v1396
      %v1398 = vpop.f32.mrb[0].mxu0
      %1399 = vmatprep.mubr.bf16.mxu0 0
      %1400 = vmatmul.mubr.bf16.gmra.mrb[0].mxu0 %v1348
      %v1401 = vpop.f32.mrb[0].mxu0
      %v1402 = vadd.f32 0.0, %v1401
      %v1403 = vpop.f32.mrb[0].mxu0
      %v1404 = vpop.f32.mrb[0].mxu0
      %v1405 = vadd.f32 0.0, %v1404
      %v1406 = vpop.f32.mrb[0].mxu0
      %1407 = vmatprep.mubr.bf16.mxu0 0
      %1408 = vmatmul.mubr.bf16.gmra.mrb[0].mxu0 %v1351
      %v1409 = vpop.f32.mrb[0].mxu0
      %v1410 = vadd.f32 0.0, %v1409
      %v1411 = vpop.f32.mrb[0].mxu0
      %v1412 = vpop.f32.mrb[0].mxu0
      %v1413 = vadd.f32 0.0, %v1412
      %v1414 = vpop.f32.mrb[0].mxu0
      %1415 = vmatprep.mubr.bf16.mxu0 0
      %1416 = vmatmul.mubr.bf16.gmra.mrb[0].mxu0 %v1354
      %v1417 = vpop.f32.mrb[0].mxu0
      %v1418 = vadd.f32 0.0, %v1417
      %v1419 = vpop.f32.mrb[0].mxu0
      %v1420 = vpop.f32.mrb[0].mxu0
      %v1421 = vadd.f32 0.0, %v1420
      %v1422 = vpop.f32.mrb[0].mxu0
      %1423 = vmatprep.mubr.bf16.mxu0 0
      %1424 = vmatmul.mubr.bf16.gmra.mrb[0].mxu0 %v1357
      %v1425 = vpop.f32.mrb[0].mxu0
      %v1426 = vadd.f32 0.0, %v1425
      %v1427 = vpop.f32.mrb[0].mxu0
      %v1428 = vpop.f32.mrb[0].mxu0
      %v1429 = vadd.f32 0.0, %v1428
      %v1430 = vpop.f32.mrb[0].mxu0
      %1431 = vdwg.mxu0
      %v1432 = vadd.f32 %v1267, %v1394
      %v1433 = vadd.f32 %v1268, %v1397
      %v1434 = vadd.f32 %v1269, %v1402
      %v1435 = vadd.f32 %v1270, %v1405
      %v1436 = vadd.f32 %v1271, %v1410
      %v1437 = vadd.f32 %v1272, %v1413
      %v1438 = vadd.f32 %v1273, %v1418
      %v1439 = vadd.f32 %v1274, %v1421
      %v1440 = vadd.f32 %v1275, %v1426
      %v1441 = vadd.f32 %v1276, %v1429
      %s1442 = scalar_lea.vmem %s1, 256
      %v1443 = vld [vmem:[%s1442] sm:$0xf]
      %v1444 = vld [vmem:[%s1442 + $0x4] sm:$0xf]
      %v1445 = vld [vmem:[%s1442 + $0x8] sm:$0xf]
      %v1446 = vld [vmem:[%s1442 + $0xc] sm:$0xf]
      %v1447 = vld [vmem:[%s1442 + $0x10] sm:$0xf]
      %v1448 = vld [vmem:[%s1442 + $0x14] sm:$0xf]
      %v1449 = vld [vmem:[%s1442 + $0x18] sm:$0xf]
      %v1450 = vld [vmem:[%s1442 + $0x1c] sm:$0xf]
      %vm1451 = vcmask 1044480
      %v1452 = vrot.slane %v213, 3
      %v1453 = vrot.slane %v214, 3
      %v1454 = vsel %vm1451, %v1452, %v1453
      %v1455 = vrot.slane %v215, 3
      %v1456 = vsel %vm1451, %v1453, %v1455
      %v1457 = vrot.slane %v216, 3
      %v1458 = vsel %vm1451, %v1455, %v1457
      %v1459 = vrot.slane %v1131, 3
      %v1460 = vsel %vm1451, %v1457, %v1459
      %v1461 = vrot.slane %v1132, 3
      %v1462 = vsel %vm1451, %v1459, %v1461
      %v1471 = vunpack.c.l.b16 %v1443
      %v1472 = vunpack.c.l.b16 %v1444
      %v1473 = vunpack.c.l.b16 %v1445
      %v1474 = vunpack.c.l.b16 %v1446
      %v1475 = vunpack.c.l.b16 %v1447
      %v1476 = vunpack.c.l.b16 %v1448
      %v1477 = vunpack.c.l.b16 %v1449
      %v1478 = vunpack.c.l.b16 %v1450
      %v1479 = vpack.c.b16 %v1472, %v1471
      %v1480 = vpack.c.b16 %v1474, %v1473
      %v1481 = vpack.c.b16 %v1476, %v1475
      %v1482 = vpack.c.b16 %v1478, %v1477
      %v1488 = vsel %vm304, %v1454, 0
      %v1491 = vsel %vm304, %v1456, 0
      %v1494 = vsel %vm304, %v1458, 0
      %v1497 = vsel %vm304, %v1460, 0
      %v1500 = vsel %vm304, %v1462, 0
      %1502 = vmatprep.subr.bf16.mxu0 0
      %1503 = vmatpush1.bf16.msra.mxu0 %v1479
      %1504 = vmatprep.subr.bf16.mxu0 0
      %1505 = vmatpush1.bf16.msra.mxu0 %v1480
      %1506 = vmatprep.subr.bf16.mxu0 0
      %1507 = vmatpush1.bf16.msra.mxu0 %v1481
      %1508 = vmatprep.subr.bf16.mxu0 0
      %1509 = vmatpush1.bf16.msra.mxu0 %v1482
      %1510 = vmatprep.subr.bf16.mxu0 0
      %1511 = vmatpush1.bf16.msra.mxu0 0
      %1512 = vmatprep.subr.bf16.mxu0 0
      %1513 = vmatpush1.bf16.msra.mxu0 0
      %1514 = vmatprep.subr.bf16.mxu0 0
      %1515 = vmatpush1.bf16.msra.mxu0 0
      %1516 = vmatprep.subr.bf16.mxu0 0
      %1517 = vmatpush1.bf16.msra.mxu0 0
      %1518 = vmatprep.subr.bf16.mxu0 0
      %1519 = vmatpush1.bf16.msra.mxu0 0
      %1520 = vmatprep.subr.bf16.mxu0 0
      %1521 = vmatpush1.bf16.msra.mxu0 0
      %1522 = vmatprep.subr.bf16.mxu0 0
      %1523 = vmatpush1.bf16.msra.mxu0 0
      %1524 = vmatprep.subr.bf16.mxu0 0
      %1525 = vmatpush1.bf16.msra.mxu0 0
      %1526 = vmatprep.subr.bf16.mxu0 0
      %1527 = vmatpush1.bf16.msra.mxu0 0
      %1528 = vmatprep.subr.bf16.mxu0 0
      %1529 = vmatpush1.bf16.msra.mxu0 0
      %1530 = vmatprep.subr.bf16.mxu0 0
      %1531 = vmatpush1.bf16.msra.mxu0 0
      %1532 = vmatprep.subr.bf16.mxu0 0
      %1533 = vmatpush1.bf16.msra.mxu0 0
      %1534 = vmatprep.mubr.bf16.mxu0 0
      %1535 = vmatmul.mubr.bf16.gmra.mrb[0].mxu0 %v1488
      %v1536 = vpop.f32.mrb[0].mxu0
      %v1537 = vadd.f32 0.0, %v1536
      %v1538 = vpop.f32.mrb[0].mxu0
      %v1539 = vpop.f32.mrb[0].mxu0
      %v1540 = vadd.f32 0.0, %v1539
      %v1541 = vpop.f32.mrb[0].mxu0
      %1542 = vmatprep.mubr.bf16.mxu0 0
      %1543 = vmatmul.mubr.bf16.gmra.mrb[0].mxu0 %v1491
      %v1544 = vpop.f32.mrb[0].mxu0
      %v1545 = vadd.f32 0.0, %v1544
      %v1546 = vpop.f32.mrb[0].mxu0
      %v1547 = vpop.f32.mrb[0].mxu0
      %v1548 = vadd.f32 0.0, %v1547
      %v1549 = vpop.f32.mrb[0].mxu0
      %1550 = vmatprep.mubr.bf16.mxu0 0
      %1551 = vmatmul.mubr.bf16.gmra.mrb[0].mxu0 %v1494
      %v1552 = vpop.f32.mrb[0].mxu0
      %v1553 = vadd.f32 0.0, %v1552
      %v1554 = vpop.f32.mrb[0].mxu0
      %v1555 = vpop.f32.mrb[0].mxu0
      %v1556 = vadd.f32 0.0, %v1555
      %v1557 = vpop.f32.mrb[0].mxu0
      %1558 = vmatprep.mubr.bf16.mxu0 0
      %1559 = vmatmul.mubr.bf16.gmra.mrb[0].mxu0 %v1497
      %v1560 = vpop.f32.mrb[0].mxu0
      %v1561 = vadd.f32 0.0, %v1560
      %v1562 = vpop.f32.mrb[0].mxu0
      %v1563 = vpop.f32.mrb[0].mxu0
      %v1564 = vadd.f32 0.0, %v1563
      %v1565 = vpop.f32.mrb[0].mxu0
      %1566 = vmatprep.mubr.bf16.mxu0 0
      %1567 = vmatmul.mubr.bf16.gmra.mrb[0].mxu0 %v1500
      %v1568 = vpop.f32.mrb[0].mxu0
      %v1569 = vadd.f32 0.0, %v1568
      %v1570 = vpop.f32.mrb[0].mxu0
      %v1571 = vpop.f32.mrb[0].mxu0
      %v1572 = vadd.f32 0.0, %v1571
      %v1573 = vpop.f32.mrb[0].mxu0
      %1574 = vdwg.mxu0
      %v1575 = vadd.f32 %v1432, %v1537
      %v1576 = vadd.f32 %v1433, %v1540
      %v1577 = vadd.f32 %v1434, %v1545
      %v1578 = vadd.f32 %v1435, %v1548
      %v1579 = vadd.f32 %v1436, %v1553
      %v1580 = vadd.f32 %v1437, %v1556
      %v1581 = vadd.f32 %v1438, %v1561
      %v1582 = vadd.f32 %v1439, %v1564
      %v1583 = vadd.f32 %v1440, %v1569
      %v1584 = vadd.f32 %v1441, %v1572
      %v1585 = vld [vmem:[%s2] sm:$0x1]
      %v1587 = vlaneseq
      %v1588 = vshrl.u32 %v1587, 7
      %v1589 = vsub.s32 0, %v1588
      %v1590 = vrot.slane %v1585, %v1589
      %v1592 = vmul.f32 %v1575, %v1590
      %v1593 = vmul.f32 %v1576, %v1590
      %v1594 = vmul.f32 %v1577, %v1590
      %v1595 = vmul.f32 %v1578, %v1590
      %v1596 = vmul.f32 %v1579, %v1590
      %v1597 = vmul.f32 %v1580, %v1590
      %v1598 = vmul.f32 %v1581, %v1590
      %v1599 = vmul.f32 %v1582, %v1590
      %v1600 = vmul.f32 %v1583, %v1590
      %v1601 = vmul.f32 %v1584, %v1590
      %v1602 = vld [vmem:[%s3] sm:$0x1]
      %v1604 = vlaneseq
      %v1605 = vshrl.u32 %v1604, 7
      %v1606 = vsub.s32 0, %v1605
      %v1607 = vrot.slane %v1602, %v1606
      %v1609 = vadd.f32 %v1592, %v1607
      %v1610 = vadd.f32 %v1593, %v1607
      %v1611 = vadd.f32 %v1594, %v1607
      %v1612 = vadd.f32 %v1595, %v1607
      %v1613 = vadd.f32 %v1596, %v1607
      %v1614 = vadd.f32 %v1597, %v1607
      %v1615 = vadd.f32 %v1598, %v1607
      %v1616 = vadd.f32 %v1599, %v1607
      %v1617 = vadd.f32 %v1600, %v1607
      %v1618 = vadd.f32 %v1601, %v1607
      %v1619 = vmax.f32 %v1609, 0.0
      %v1620 = vmax.f32 %v1610, 0.0
      %v1621 = vmax.f32 %v1611, 0.0
      %v1622 = vmax.f32 %v1612, 0.0
      %v1623 = vmax.f32 %v1613, 0.0
      %v1624 = vmax.f32 %v1614, 0.0
      %v1625 = vmax.f32 %v1615, 0.0
      %v1626 = vmax.f32 %v1616, 0.0
      %v1627 = vmax.f32 %v1617, 0.0
      %v1628 = vmax.f32 %v1618, 0.0
      %1629 = vst.msk [vmem:[%s197] sm:$0xff] %vm304, %v1619
      %1630 = vst.msk [vmem:[%s197 + $0x8] sm:$0xff] %vm304, %v1620
      %1631 = vst.msk [vmem:[%s197 + $0x10] sm:$0xff] %vm304, %v1621
      %1632 = vst.msk [vmem:[%s197 + $0x18] sm:$0xff] %vm304, %v1622
      %1633 = vst.msk [vmem:[%s197 + $0x20] sm:$0xff] %vm304, %v1623
      %1634 = vst.msk [vmem:[%s197 + $0x28] sm:$0xff] %vm304, %v1624
      %1635 = vst.msk [vmem:[%s197 + $0x30] sm:$0xff] %vm304, %v1625
      %1636 = vst.msk [vmem:[%s197 + $0x38] sm:$0xff] %vm304, %v1626
      %1637 = vst.msk [vmem:[%s197 + $0x40] sm:$0xff] %vm304, %v1627
      %1638 = vst.msk [vmem:[%s197 + $0x48] sm:$0xff] %vm304, %v1628
      %p1639 = scmp.lt.s32.totalorder %s15, 1
      %s1640 = scalar_select %p1639, %s15, 1
      %s1641 = smul.addr %s1640, 10
      %s1642 = smul.addr %s1641, 8
      %s1643 = scalar_lea.vmem %s4, %s1642
      // Predicated region
      $region37: #{ba_model_forward.4} parent=35 // pred_check
        %p1644 = pneg %p122
      $region38: #{ba_model_forward.4} parent=35 // pred_check_branch
        %1646 = sbr.rel (%p1644) target = $region40
      $region39: #{ba_model_forward.4} parent=35 // pred_region
        _
      $region40: #{ba_model_forward.4} parent=35 // pred_fallthru
        _
    $region36: #{ba_model_forward.4} parent=5 // pred_fallthru
      _
    %p1647 = scmp.le.s32.totalorder 2, %s10
    // Predicated region
    $region41: #{ba_model_forward.4} parent=5 // pred_check
      %p1648 = pneg %p1647
    $region42: #{ba_model_forward.4} parent=5 // pred_check_branch
      %1650 = sbr.rel (%p1648) target = $region44
    $region43: #{ba_model_forward.4} parent=5 // pred_region
      %s1651 = ssub.s32 %s10, 2
      // Predicated region
      $region45: #{ba_model_forward.4} parent=43 // pred_check
        %p1652 = pneg %p128
      $region46: #{ba_model_forward.4} parent=43 // pred_check_branch
        %1654 = sbr.rel (%p1652) target = $region48
      $region47: #{ba_model_forward.4} parent=43 // pred_region
        %p1655 = scmp.lt.s32.totalorder %s16, 1
        %s1656 = scalar_select %p1655, %s16, 1
        %s1657 = smul.addr %s1656, 10
        %s1658 = smul.addr %s1657, 8
        %s1659 = scalar_lea.vmem %s4, %s1658
      $region48: #{ba_model_forward.4} parent=43 // pred_fallthru
        _
    $region44: #{ba_model_forward.4} parent=5 // pred_fallthru
      _
  $region6: #{ba_model_forward.4} parent=0 // loop_footer
    %s14 = sadd.s32 1, %s10
  $region7: #{ba_model_forward.4} parent=0 // loop_footer_branch
    %9 = sbr.rel target = $region3
  $region8: #{ba_model_forward.4} parent=0 // loop_exit
    _

// kernel: ba_model_forward.5
$region0: #{ba_model_forward.5}
  #allocation0 [shape = 'u32[]', space=smem, size = 0x4, offset = 0x4, fixed_abs, tag = 'smem constant byte address 0x4 - core index']
  #allocation1 [shape = 'u32[144,128]{1,0:T(1,128)}', space=vmem, size = 0x12000, scoped, tag = 'internal scratch']
  #allocation2 [shape = 'f32[1,1]{1,0:T(1,128)S(1)}', space=vmem, size = 0x200, scoped, tag = 'scoped memory for ba_model_forward.5']
  %s0 = inlined_call_operand.vmem [shape: f32[2,256,64], index: 0, kind: input, shape index: {}]
  %s1 = inlined_call_operand.vmem [shape: bf16[2,256,64], index: 1, kind: input, shape index: {}]
  %s2 = inlined_call_operand.vmem [shape: bf16[64,8], index: 2, kind: input, shape index: {}]
  %s3 = inlined_call_operand.vmem [shape: bf16[64,8], index: 3, kind: input, shape index: {}]
  %s4 = inlined_call_operand.vmem [shape: bf16[64,64], index: 4, kind: input, shape index: {}]
  %s5 = inlined_call_operand.<no memory space> [shape: f32[1,1], index: 5, kind: input, shape index: {}]
  %s6 = inlined_call_operand.hbm [shape: f32[2,256,64], index: 6, kind: output, shape index: {}]
  %s7 = sld [smem:[#allocation0]]
  $region57: #{ba_model_forward.5} parent=0
    _
  %s9 = ssub.s32 1, %s7
  %s10 = scalar_select 0, %s9, %s7
  %v11 = vstv %s5
  %12 = vst [vmem:[#allocation2] sm:$0x1] %v11
  $region1: #{ba_model_forward.5} parent=0
    #allocation3 [shape = 'u8[262144]{0}', space=vmem, size = 0x40000, scoped, tag = 'output window, operand 0']
    #allocation4 [shape = 's32[2]{0}', space=sflag, size = 0x8, scoped, tag = 'scoped memory for ba_model_forward.5']
    %13 = vsyncpa [#allocation4], 0
    %s14 = scalar_lea.sflag [#allocation4], 1
    %15 = vsyncpa %s14, 0
    loop: start=0, step=1, limit=4
    $region2: #{ba_model_forward.5} parent=1 // loop_pre_header
      _
    $region3: #{ba_model_forward.5} parent=1 // loop_header
      %s17 = sphi 0, %s21
      %p18 = scmp.ge.s32.totalorder %s17, 4
      %s27 = sphi 0, %s29
      %s30 = sphi 0, %s27
      %s31 = sphi 0, %s30
      %s47 = sphi 0, %s31
      %s53 = sphi 0, %s55
      %s56 = sphi 0, %s53
      %s57 = sphi 0, %s56
      %s73 = sphi 0, %s57
      %s77 = sphi 0, %s77
      %s79 = sphi 0, %s77
      %s80 = sphi 0, %s79
      %s94 = sphi 0, %s80
      %s98 = sphi 0, %s98
      %s100 = sphi 0, %s98
      %s101 = sphi 0, %s100
      %s115 = sphi 0, %s101
      %s119 = sphi 0, %s119
      %s121 = sphi 0, %s119
      %s122 = sphi 0, %s121
      %s136 = sphi 0, %s122
      %s140 = sphi 0, %s140
      %s142 = sphi 0, %s140
      %s143 = sphi 0, %s142
      %s157 = sphi 0, %s143
      %s163 = sphi 0, %s165
      %s166 = sphi 0, %s163
      %s167 = sphi 0, %s166
      %s183 = sphi 0, %s167
    $region4: #{ba_model_forward.5} parent=1 // loop_header_branch
      %20 = sbr.rel (%p18) target = $region8
    $region5: #{ba_model_forward.5} parent=1 // loop_body
      %s22 = ssub.s32 %s17, 1
      %s23 = ssub.s32 %s17, 2
      %s24 = sadd.s32 %s17, 1
      %s25 = ssub.s32 %s17, %s24
      %p26 = scmp.eq.s32.totalorder %s25, 0
      %s28 = sadd.s32 %s27, 1
      %s29 = scalar_select %p26, %s27, %s28
      %p32 = pneg %p26
      %p33 = scmp.eq.s32.totalorder %s17, 1
      %p34 = por %p32, %p33
      %p35 = scmp.ne.s32.totalorder %s27, %s30
      %p36 = scmp.eq.s32.totalorder %s17, 0
      %p37 = por %p35, %p36
      %p38 = scmp.ne.s32.totalorder %s27, %s30
      %p39 = scmp.eq.s32.totalorder %s22, 1
      %p40 = por %p38, %p39
      %p41 = scmp.ne.s32.totalorder %s30, %s31
      %p42 = scmp.eq.s32.totalorder %s22, 0
      %p43 = por %p41, %p42
      %p44 = scmp.ne.s32.totalorder %s30, %s31
      %p45 = scmp.eq.s32.totalorder %s23, 1
      %p46 = por %p44, %p45
      %p48 = scmp.ne.s32.totalorder %s31, %s47
      %p49 = scmp.eq.s32.totalorder %s23, 0
      %p50 = por %p48, %p49
      %s51 = ssub.s32 %s17, %s24
      %p52 = scmp.eq.s32.totalorder %s51, 0
      %s54 = sadd.s32 %s53, 1
      %s55 = scalar_select %p52, %s53, %s54
      %p58 = pneg %p52
      %p59 = scmp.eq.s32.totalorder %s17, 1
      %p60 = por %p58, %p59
      %p61 = scmp.ne.s32.totalorder %s53, %s56
      %p62 = scmp.eq.s32.totalorder %s17, 0
      %p63 = por %p61, %p62
      %p64 = scmp.ne.s32.totalorder %s53, %s56
      %p65 = scmp.eq.s32.totalorder %s22, 1
      %p66 = por %p64, %p65
      %p67 = scmp.ne.s32.totalorder %s56, %s57
      %p68 = scmp.eq.s32.totalorder %s22, 0
      %p69 = por %p67, %p68
      %p70 = scmp.ne.s32.totalorder %s56, %s57
      %p71 = scmp.eq.s32.totalorder %s23, 1
      %p72 = por %p70, %p71
      %p74 = scmp.ne.s32.totalorder %s57, %s73
      %p75 = scmp.eq.s32.totalorder %s23, 0
      %p76 = por %p74, %p75
      %s78 = sadd.s32 %s77, 1
      %p81 = scmp.eq.s32.totalorder %s17, 1
      %p82 = scmp.ne.s32.totalorder %s77, %s79
      %p83 = scmp.eq.s32.totalorder %s17, 0
      %p84 = por %p82, %p83
      %p85 = scmp.ne.s32.totalorder %s77, %s79
      %p86 = scmp.eq.s32.totalorder %s22, 1
      %p87 = por %p85, %p86
      %p88 = scmp.ne.s32.totalorder %s79, %s80
      %p89 = scmp.eq.s32.totalorder %s22, 0
      %p90 = por %p88, %p89
      %p91 = scmp.ne.s32.totalorder %s79, %s80
      %p92 = scmp.eq.s32.totalorder %s23, 1
      %p93 = por %p91, %p92
      %p95 = scmp.ne.s32.totalorder %s80, %s94
      %p96 = scmp.eq.s32.totalorder %s23, 0
      %p97 = por %p95, %p96
      %s99 = sadd.s32 %s98, 1
      %p102 = scmp.eq.s32.totalorder %s17, 1
      %p103 = scmp.ne.s32.totalorder %s98, %s100
      %p104 = scmp.eq.s32.totalorder %s17, 0
      %p105 = por %p103, %p104
      %p106 = scmp.ne.s32.totalorder %s98, %s100
      %p107 = scmp.eq.s32.totalorder %s22, 1
      %p108 = por %p106, %p107
      %p109 = scmp.ne.s32.totalorder %s100, %s101
      %p110 = scmp.eq.s32.totalorder %s22, 0
      %p111 = por %p109, %p110
      %p112 = scmp.ne.s32.totalorder %s100, %s101
      %p113 = scmp.eq.s32.totalorder %s23, 1
      %p114 = por %p112, %p113
      %p116 = scmp.ne.s32.totalorder %s101, %s115
      %p117 = scmp.eq.s32.totalorder %s23, 0
      %p118 = por %p116, %p117
      %s120 = sadd.s32 %s119, 1
      %p123 = scmp.eq.s32.totalorder %s17, 1
      %p124 = scmp.ne.s32.totalorder %s119, %s121
      %p125 = scmp.eq.s32.totalorder %s17, 0
      %p126 = por %p124, %p125
      %p127 = scmp.ne.s32.totalorder %s119, %s121
      %p128 = scmp.eq.s32.totalorder %s22, 1
      %p129 = por %p127, %p128
      %p130 = scmp.ne.s32.totalorder %s121, %s122
      %p131 = scmp.eq.s32.totalorder %s22, 0
      %p132 = por %p130, %p131
      %p133 = scmp.ne.s32.totalorder %s121, %s122
      %p134 = scmp.eq.s32.totalorder %s23, 1
      %p135 = por %p133, %p134
      %p137 = scmp.ne.s32.totalorder %s122, %s136
      %p138 = scmp.eq.s32.totalorder %s23, 0
      %p139 = por %p137, %p138
      %s141 = sadd.s32 %s140, 1
      %p144 = scmp.eq.s32.totalorder %s17, 1
      %p145 = scmp.ne.s32.totalorder %s140, %s142
      %p146 = scmp.eq.s32.totalorder %s17, 0
      %p147 = por %p145, %p146
      %p148 = scmp.ne.s32.totalorder %s140, %s142
      %p149 = scmp.eq.s32.totalorder %s22, 1
      %p150 = por %p148, %p149
      %p151 = scmp.ne.s32.totalorder %s142, %s143
      %p152 = scmp.eq.s32.totalorder %s22, 0
      %p153 = por %p151, %p152
      %p154 = scmp.ne.s32.totalorder %s142, %s143
      %p155 = scmp.eq.s32.totalorder %s23, 1
      %p156 = por %p154, %p155
      %p158 = scmp.ne.s32.totalorder %s143, %s157
      %p159 = scmp.eq.s32.totalorder %s23, 0
      %p160 = por %p158, %p159
      %s161 = ssub.s32 %s17, %s24
      %p162 = scmp.eq.s32.totalorder %s161, 0
      %s164 = sadd.s32 %s163, 1
      %s165 = scalar_select %p162, %s163, %s164
      %p168 = pneg %p162
      %p169 = scmp.eq.s32.totalorder %s17, 1
      %p170 = por %p168, %p169
      %p171 = scmp.ne.s32.totalorder %s163, %s166
      %p172 = scmp.eq.s32.totalorder %s17, 0
      %p173 = por %p171, %p172
      %p174 = scmp.ne.s32.totalorder %s163, %s166
      %p175 = scmp.eq.s32.totalorder %s22, 1
      %p176 = por %p174, %p175
      %p177 = scmp.ne.s32.totalorder %s166, %s167
      %p178 = scmp.eq.s32.totalorder %s22, 0
      %p179 = por %p177, %p178
      %p180 = scmp.ne.s32.totalorder %s166, %s167
      %p181 = scmp.eq.s32.totalorder %s23, 1
      %p182 = por %p180, %p181
      %p184 = scmp.ne.s32.totalorder %s167, %s183
      %p185 = scmp.eq.s32.totalorder %s23, 0
      %p186 = por %p184, %p185
      %p187 = scmp.le.s32.totalorder 1, %s17
      %p188 = scmp.lt.s32.totalorder %s17, 3
      %p189 = pnand %p187, %p188
      %p190 = pneg %p189
      // Predicated region
      $region9: #{ba_model_forward.5} parent=5 // pred_check
        _
      $region10: #{ba_model_forward.5} parent=5 // pred_check_branch
        %192 = sbr.rel (%p189) target = $region12
      $region11: #{ba_model_forward.5} parent=5 // pred_region
        %s193 = ssub.s32 %s17, 1
        // Predicated region
        $region13: #{ba_model_forward.5} parent=11 // pred_check
          %p194 = pneg %p90
        $region14: #{ba_model_forward.5} parent=11 // pred_check_branch
          %196 = sbr.rel (%p194) target = $region16
        $region15: #{ba_model_forward.5} parent=11 // pred_region
          _
        $region16: #{ba_model_forward.5} parent=11 // pred_fallthru
          _
        // Predicated region
        $region17: #{ba_model_forward.5} parent=11 // pred_check
          %p197 = pneg %p111
        $region18: #{ba_model_forward.5} parent=11 // pred_check_branch
          %199 = sbr.rel (%p197) target = $region20
        $region19: #{ba_model_forward.5} parent=11 // pred_region
          _
        $region20: #{ba_model_forward.5} parent=11 // pred_fallthru
          _
        // Predicated region
        $region21: #{ba_model_forward.5} parent=11 // pred_check
          %p200 = pneg %p132
        $region22: #{ba_model_forward.5} parent=11 // pred_check_branch
          %202 = sbr.rel (%p200) target = $region24
        $region23: #{ba_model_forward.5} parent=11 // pred_region
          _
        $region24: #{ba_model_forward.5} parent=11 // pred_fallthru
          _
        // Predicated region
        $region25: #{ba_model_forward.5} parent=11 // pred_check
          %p203 = pneg %p153
        $region26: #{ba_model_forward.5} parent=11 // pred_check_branch
          %205 = sbr.rel (%p203) target = $region28
        $region27: #{ba_model_forward.5} parent=11 // pred_region
          _
        $region28: #{ba_model_forward.5} parent=11 // pred_fallthru
          _
      $region12: #{ba_model_forward.5} parent=5 // pred_fallthru
        _
      %p206 = scmp.lt.s32.totalorder %s17, 2
      // Predicated region
      $region29: #{ba_model_forward.5} parent=5 // pred_check
        %p207 = pneg %p206
      $region30: #{ba_model_forward.5} parent=5 // pred_check_branch
        %209 = sbr.rel (%p207) target = $region32
      $region31: #{ba_model_forward.5} parent=5 // pred_region
        // Predicated region
        $region33: #{ba_model_forward.5} parent=31 // pred_check
          %p210 = pneg %p37
        $region34: #{ba_model_forward.5} parent=31 // pred_check_branch
          %212 = sbr.rel (%p210) target = $region36
        $region35: #{ba_model_forward.5} parent=31 // pred_region
          %p213 = scmp.lt.s32.totalorder %s17, 1
          %s214 = scalar_select %p213, %s17, 1
          %s215 = smul.addr %s214, 32
          %s216 = smul.addr %s215, 8
          %s217 = scalar_lea.vmem %s0, %s216
        $region36: #{ba_model_forward.5} parent=31 // pred_fallthru
          _
        // Predicated region
        $region37: #{ba_model_forward.5} parent=31 // pred_check
          %p218 = pneg %p63
        $region38: #{ba_model_forward.5} parent=31 // pred_check_branch
          %220 = sbr.rel (%p218) target = $region40
        $region39: #{ba_model_forward.5} parent=31 // pred_region
          %p221 = scmp.lt.s32.totalorder %s17, 1
          %s222 = scalar_select %p221, %s17, 1
          %s223 = smul.addr %s222, 32
          %s224 = smul.addr %s223, 4
          %s225 = scalar_lea.vmem %s1, %s224
        $region40: #{ba_model_forward.5} parent=31 // pred_fallthru
          _
      $region32: #{ba_model_forward.5} parent=5 // pred_fallthru
        _
      %p226 = scmp.le.s32.totalorder 1, %s17
      %p227 = scmp.lt.s32.totalorder %s17, 3
      %p228 = pnand %p226, %p227
      %p229 = pneg %p228
      // Predicated region
      $region41: #{ba_model_forward.5} parent=5 // pred_check
        _
      $region42: #{ba_model_forward.5} parent=5 // pred_check_branch
        %231 = sbr.rel (%p228) target = $region44
      $region43: #{ba_model_forward.5} parent=5 // pred_region
        %s232 = ssub.s32 %s17, 1
        %p233 = scmp.lt.s32.totalorder %s22, 1
        %s234 = scalar_select %p233, %s22, 1
        %s235 = smul.addr %s234, 32
        %s236 = smul.addr %s235, 8
        %s237 = scalar_lea.vmem %s0, %s236
        %p238 = pneg %p43
        %p239 = pneg %p40
        %p240 = scmp.lt.s32.totalorder %s22, 1
        %s241 = scalar_select %p240, %s22, 1
        %s242 = smul.addr %s241, 32
        %s243 = smul.addr %s242, 4
        %s244 = scalar_lea.vmem %s1, %s243
        %p245 = pneg %p69
        %p246 = pneg %p66
        %p247 = pneg %p90
        %p248 = pneg %p87
        %p249 = pneg %p111
        %p250 = pneg %p108
        %p251 = pneg %p132
        %p252 = pneg %p129
        %p253 = pneg %p153
        %p254 = pneg %p150
        %p255 = pneg %p179
        %p256 = pneg %p176
        %s257 = sand.u32 %s166, 1
        %s258 = scalar_lea.sflag [#allocation4], %s257
        %s259 = sand.u32 %s166, 1
        %s260 = smul.addr %s259, 256
        %s261 = scalar_lea.vmem [#allocation3], %s260
        %p262 = scmp.lt.s32.totalorder %s22, 1
        %s263 = scalar_select %p262, %s22, 1
        %s264 = smul.addr %s263, 32
        %s265 = smul.addr %s264, 8
        %s266 = scalar_lea.vmem %s0, %s265
        %p267 = scmp.lt.s32.totalorder %s22, 1
        %s268 = scalar_select %p267, %s22, 1
        %s269 = smul.addr %s268, 32
        %s270 = smul.addr %s269, 4
        %s271 = scalar_lea.vmem %s1, %s270
        %v273 = vld [vmem:[%s266] sm:$0xff]
        %v274 = vld [vmem:[%s266 + $0x8] sm:$0xff]
        %v275 = vld [vmem:[%s266 + $0x10] sm:$0xff]
        %v276 = vld [vmem:[%s266 + $0x18] sm:$0xff]
        %v277 = vld [vmem:[%s266 + $0x20] sm:$0xff]
        %v278 = vld [vmem:[%s266 + $0x28] sm:$0xff]
        %v279 = vld [vmem:[%s266 + $0x30] sm:$0xff]
        %v280 = vld [vmem:[%s266 + $0x38] sm:$0xff]
        %v281 = vld [vmem:[%s266 + $0x40] sm:$0xff]
        %v282 = vld [vmem:[%s266 + $0x48] sm:$0xff]
        %v283 = vld [vmem:[%s266 + $0x50] sm:$0xff]
        %v284 = vld [vmem:[%s266 + $0x58] sm:$0xff]
        %v285 = vld [vmem:[%s266 + $0x60] sm:$0xff]
        %v286 = vld [vmem:[%s266 + $0x68] sm:$0xff]
        %v287 = vld [vmem:[%s266 + $0x70] sm:$0xff]
        %v288 = vld [vmem:[%s266 + $0x78] sm:$0xff]
        %v289 = vld [vmem:[%s266 + $0x80] sm:$0xff]
        %v290 = vld [vmem:[%s266 + $0x88] sm:$0xff]
        %v291 = vld [vmem:[%s266 + $0x90] sm:$0xff]
        %v292 = vld [vmem:[%s266 + $0x98] sm:$0xff]
        %v293 = vld [vmem:[%s266 + $0xa0] sm:$0xff]
        %v294 = vld [vmem:[%s266 + $0xa8] sm:$0xff]
        %v295 = vld [vmem:[%s266 + $0xb0] sm:$0xff]
        %v296 = vld [vmem:[%s266 + $0xb8] sm:$0xff]
        %v297 = vld [vmem:[%s266 + $0xc0] sm:$0xff]
        %v298 = vld [vmem:[%s266 + $0xc8] sm:$0xff]
        %v299 = vld [vmem:[%s266 + $0xd0] sm:$0xff]
        %v300 = vld [vmem:[%s266 + $0xd8] sm:$0xff]
        %v301 = vld [vmem:[%s266 + $0xe0] sm:$0xff]
        %v302 = vld [vmem:[%s266 + $0xe8] sm:$0xff]
        %v303 = vld [vmem:[%s266 + $0xf0] sm:$0xff]
        %v304 = vld [vmem:[%s266 + $0xf8] sm:$0xff]
        %v305 = vld [vmem:[%s271] sm:$0xf]
        %v306 = vld [vmem:[%s271 + $0x4] sm:$0xf]
        %v307 = vld [vmem:[%s271 + $0x8] sm:$0xf]
        %v308 = vld [vmem:[%s271 + $0xc] sm:$0xf]
        %v309 = vld [vmem:[%s271 + $0x10] sm:$0xf]
        %v310 = vld [vmem:[%s271 + $0x14] sm:$0xf]
        %v311 = vld [vmem:[%s271 + $0x18] sm:$0xf]
        %v312 = vld [vmem:[%s271 + $0x1c] sm:$0xf]
        %v313 = vld [vmem:[%s271 + $0x20] sm:$0xf]
        %v314 = vld [vmem:[%s271 + $0x24] sm:$0xf]
        %v315 = vld [vmem:[%s271 + $0x28] sm:$0xf]
        %v316 = vld [vmem:[%s271 + $0x2c] sm:$0xf]
        %v317 = vld [vmem:[%s271 + $0x30] sm:$0xf]
        %v318 = vld [vmem:[%s271 + $0x34] sm:$0xf]
        %v319 = vld [vmem:[%s271 + $0x38] sm:$0xf]
        %v320 = vld [vmem:[%s271 + $0x3c] sm:$0xf]
        %v321 = vld [vmem:[%s271 + $0x40] sm:$0xf]
        %v322 = vld [vmem:[%s271 + $0x44] sm:$0xf]
        %v323 = vld [vmem:[%s271 + $0x48] sm:$0xf]
        %v324 = vld [vmem:[%s271 + $0x4c] sm:$0xf]
        %v325 = vld [vmem:[%s271 + $0x50] sm:$0xf]
        %v326 = vld [vmem:[%s271 + $0x54] sm:$0xf]
        %v327 = vld [vmem:[%s271 + $0x58] sm:$0xf]
        %v328 = vld [vmem:[%s271 + $0x5c] sm:$0xf]
        %v329 = vld [vmem:[%s271 + $0x60] sm:$0xf]
        %v330 = vld [vmem:[%s271 + $0x64] sm:$0xf]
        %v331 = vld [vmem:[%s271 + $0x68] sm:$0xf]
        %v332 = vld [vmem:[%s271 + $0x6c] sm:$0xf]
        %v333 = vld [vmem:[%s271 + $0x70] sm:$0xf]
        %v334 = vld [vmem:[%s271 + $0x74] sm:$0xf]
        %v335 = vld [vmem:[%s271 + $0x78] sm:$0xf]
        %v336 = vld [vmem:[%s271 + $0x7c] sm:$0xf]
        %v337 = vpack.c.bf16 %v274, %v273
        %v338 = vpack.c.bf16 %v276, %v275
        %v339 = vpack.c.bf16 %v278, %v277
        %v340 = vpack.c.bf16 %v280, %v279
        %v341 = vpack.c.bf16 %v282, %v281
        %v342 = vpack.c.bf16 %v284, %v283
        %v343 = vpack.c.bf16 %v286, %v285
        %v344 = vpack.c.bf16 %v288, %v287
        %v345 = vpack.c.bf16 %v290, %v289
        %v346 = vpack.c.bf16 %v292, %v291
        %v347 = vpack.c.bf16 %v294, %v293
        %v348 = vpack.c.bf16 %v296, %v295
        %v349 = vpack.c.bf16 %v298, %v297
        %v350 = vpack.c.bf16 %v300, %v299
        %v351 = vpack.c.bf16 %v302, %v301
        %v352 = vpack.c.bf16 %v304, %v303
        %v353 = vld [vmem:[%s2] sm:$0xf]
        %v354 = vld [vmem:[%s2 + $0x4] sm:$0xf]
        %v355 = vld [vmem:[%s2 + $0x8] sm:$0xf]
        %v356 = vld [vmem:[%s2 + $0xc] sm:$0xf]
        %v357 = vld [vmem:[%s2 + $0x10] sm:$0xf]
        %v358 = vld [vmem:[%s2 + $0x14] sm:$0xf]
        %v359 = vld [vmem:[%s2 + $0x18] sm:$0xf]
        %v360 = vld [vmem:[%s2 + $0x1c] sm:$0xf]
        %v393 = vunpack.c.l.b16 %v305
        %v394 = vunpack.c.l.b16 %v306
        %v395 = vunpack.c.l.b16 %v307
        %v396 = vunpack.c.l.b16 %v308
        %v397 = vunpack.c.l.b16 %v309
        %v398 = vunpack.c.l.b16 %v310
        %v399 = vunpack.c.l.b16 %v311
        %v400 = vunpack.c.l.b16 %v312
        %v401 = vunpack.c.l.b16 %v313
        %v402 = vunpack.c.l.b16 %v314
        %v403 = vunpack.c.l.b16 %v315
        %v404 = vunpack.c.l.b16 %v316
        %v405 = vunpack.c.l.b16 %v317
        %v406 = vunpack.c.l.b16 %v318
        %v407 = vunpack.c.l.b16 %v319
        %v408 = vunpack.c.l.b16 %v320
        %v409 = vunpack.c.l.b16 %v321
        %v410 = vunpack.c.l.b16 %v322
        %v411 = vunpack.c.l.b16 %v323
        %v412 = vunpack.c.l.b16 %v324
        %v413 = vunpack.c.l.b16 %v325
        %v414 = vunpack.c.l.b16 %v326
        %v415 = vunpack.c.l.b16 %v327
        %v416 = vunpack.c.l.b16 %v328
        %v417 = vunpack.c.l.b16 %v329
        %v418 = vunpack.c.l.b16 %v330
        %v419 = vunpack.c.l.b16 %v331
        %v420 = vunpack.c.l.b16 %v332
        %v421 = vunpack.c.l.b16 %v333
        %v422 = vunpack.c.l.b16 %v334
        %v423 = vunpack.c.l.b16 %v335
        %v424 = vunpack.c.l.b16 %v336
        %v425 = vpack.c.b16 %v394, %v393
        %v426 = vpack.c.b16 %v396, %v395
        %v427 = vpack.c.b16 %v398, %v397
        %v428 = vpack.c.b16 %v400, %v399
        %v429 = vpack.c.b16 %v402, %v401
        %v430 = vpack.c.b16 %v404, %v403
        %v431 = vpack.c.b16 %v406, %v405
        %v432 = vpack.c.b16 %v408, %v407
        %v433 = vpack.c.b16 %v410, %v409
        %v434 = vpack.c.b16 %v412, %v411
        %v435 = vpack.c.b16 %v414, %v413
        %v436 = vpack.c.b16 %v416, %v415
        %v437 = vpack.c.b16 %v418, %v417
        %v438 = vpack.c.b16 %v420, %v419
        %v439 = vpack.c.b16 %v422, %v421
        %v440 = vpack.c.b16 %v424, %v423
        %v449 = vunpack.c.l.b16 %v353
        %v450 = vunpack.c.l.b16 %v354
        %v451 = vunpack.c.l.b16 %v355
        %v452 = vunpack.c.l.b16 %v356
        %v453 = vunpack.c.l.b16 %v357
        %v454 = vunpack.c.l.b16 %v358
        %v455 = vunpack.c.l.b16 %v359
        %v456 = vunpack.c.l.b16 %v360
        %v457 = vpack.c.b16 %v450, %v449
        %v458 = vpack.c.b16 %v452, %v451
        %v459 = vpack.c.b16 %v454, %v453
        %v460 = vpack.c.b16 %v456, %v455
        %vm465 = vcmask 523264
        %v467 = vsel %vm465, %v425, 0
        %v470 = vsel %vm465, %v426, 0
        %v473 = vsel %vm465, %v427, 0
        %v476 = vsel %vm465, %v428, 0
        %v479 = vsel %vm465, %v429, 0
        %v482 = vsel %vm465, %v430, 0
        %v485 = vsel %vm465, %v431, 0
        %v488 = vsel %vm465, %v432, 0
        %v491 = vsel %vm465, %v433, 0
        %v494 = vsel %vm465, %v434, 0
        %v497 = vsel %vm465, %v435, 0
        %v500 = vsel %vm465, %v436, 0
        %v503 = vsel %vm465, %v437, 0
        %v506 = vsel %vm465, %v438, 0
        %v509 = vsel %vm465, %v439, 0
        %v512 = vsel %vm465, %v440, 0
        %514 = vmatprep.subr.bf16.mxu0 0
        %515 = vmatpush1.bf16.msra.mxu0 %v457
        %516 = vmatprep.subr.bf16.mxu0 0
        %517 = vmatpush1.bf16.msra.mxu0 %v458
        %518 = vmatprep.subr.bf16.mxu0 0
        %519 = vmatpush1.bf16.msra.mxu0 %v459
        %520 = vmatprep.subr.bf16.mxu0 0
        %521 = vmatpush1.bf16.msra.mxu0 %v460
        %522 = vmatprep.subr.bf16.mxu0 0
        %523 = vmatpush1.bf16.msra.mxu0 0
        %524 = vmatprep.subr.bf16.mxu0 0
        %525 = vmatpush1.bf16.msra.mxu0 0
        %526 = vmatprep.subr.bf16.mxu0 0
        %527 = vmatpush1.bf16.msra.mxu0 0
        %528 = vmatprep.subr.bf16.mxu0 0
        %529 = vmatpush1.bf16.msra.mxu0 0
        %530 = vmatprep.subr.bf16.mxu0 0
        %531 = vmatpush1.bf16.msra.mxu0 0
        %532 = vmatprep.subr.bf16.mxu0 0
        %533 = vmatpush1.bf16.msra.mxu0 0
        %534 = vmatprep.subr.bf16.mxu0 0
        %535 = vmatpush1.bf16.msra.mxu0 0
        %536 = vmatprep.subr.bf16.mxu0 0
        %537 = vmatpush1.bf16.msra.mxu0 0
        %538 = vmatprep.subr.bf16.mxu0 0
        %539 = vmatpush1.bf16.msra.mxu0 0
        %540 = vmatprep.subr.bf16.mxu0 0
        %541 = vmatpush1.bf16.msra.mxu0 0
        %542 = vmatprep.subr.bf16.mxu0 0
        %543 = vmatpush1.bf16.msra.mxu0 0
        %544 = vmatprep.subr.bf16.mxu0 0
        %545 = vmatpush1.bf16.msra.mxu0 0
        %546 = vmatprep.mubr.bf16.mxu0 0
        %547 = vmatmul.mubr.bf16.gmra.mrb[0].mxu0 %v467
        %v548 = vpop.f32.mrb[0].mxu0
        %v549 = vadd.f32 0.0, %v548
        %v550 = vpop.f32.mrb[0].mxu0
        %v551 = vpop.f32.mrb[0].mxu0
        %v552 = vadd.f32 0.0, %v551
        %v553 = vpop.f32.mrb[0].mxu0
        %554 = vmatprep.mubr.bf16.mxu0 0
        %555 = vmatmul.mubr.bf16.gmra.mrb[0].mxu0 %v470
        %v556 = vpop.f32.mrb[0].mxu0
        %v557 = vadd.f32 0.0, %v556
        %v558 = vpop.f32.mrb[0].mxu0
        %v559 = vpop.f32.mrb[0].mxu0
        %v560 = vadd.f32 0.0, %v559
        %v561 = vpop.f32.mrb[0].mxu0
        %562 = vmatprep.mubr.bf16.mxu0 0
        %563 = vmatmul.mubr.bf16.gmra.mrb[0].mxu0 %v473
        %v564 = vpop.f32.mrb[0].mxu0
        %v565 = vadd.f32 0.0, %v564
        %v566 = vpop.f32.mrb[0].mxu0
        %v567 = vpop.f32.mrb[0].mxu0
        %v568 = vadd.f32 0.0, %v567
        %v569 = vpop.f32.mrb[0].mxu0
        %570 = vmatprep.mubr.bf16.mxu0 0
        %571 = vmatmul.mubr.bf16.gmra.mrb[0].mxu0 %v476
        %v572 = vpop.f32.mrb[0].mxu0
        %v573 = vadd.f32 0.0, %v572
        %v574 = vpop.f32.mrb[0].mxu0
        %v575 = vpop.f32.mrb[0].mxu0
        %v576 = vadd.f32 0.0, %v575
        %v577 = vpop.f32.mrb[0].mxu0
        %578 = vmatprep.mubr.bf16.mxu0 0
        %579 = vmatmul.mubr.bf16.gmra.mrb[0].mxu0 %v479
        %v580 = vpop.f32.mrb[0].mxu0
        %v581 = vadd.f32 0.0, %v580
        %v582 = vpop.f32.mrb[0].mxu0
        %v583 = vpop.f32.mrb[0].mxu0
        %v584 = vadd.f32 0.0, %v583
        %v585 = vpop.f32.mrb[0].mxu0
        %586 = vmatprep.mubr.bf16.mxu0 0
        %587 = vmatmul.mubr.bf16.gmra.mrb[0].mxu0 %v482
        %v588 = vpop.f32.mrb[0].mxu0
        %v589 = vadd.f32 0.0, %v588
        %v590 = vpop.f32.mrb[0].mxu0
        %v591 = vpop.f32.mrb[0].mxu0
        %v592 = vadd.f32 0.0, %v591
        %v593 = vpop.f32.mrb[0].mxu0
        %594 = vmatprep.mubr.bf16.mxu0 0
        %595 = vmatmul.mubr.bf16.gmra.mrb[0].mxu0 %v485
        %v596 = vpop.f32.mrb[0].mxu0
        %v597 = vadd.f32 0.0, %v596
        %v598 = vpop.f32.mrb[0].mxu0
        %v599 = vpop.f32.mrb[0].mxu0
        %v600 = vadd.f32 0.0, %v599
        %v601 = vpop.f32.mrb[0].mxu0
        %602 = vmatprep.mubr.bf16.mxu0 0
        %603 = vmatmul.mubr.bf16.gmra.mrb[0].mxu0 %v488
        %v604 = vpop.f32.mrb[0].mxu0
        %v605 = vadd.f32 0.0, %v604
        %v606 = vpop.f32.mrb[0].mxu0
        %v607 = vpop.f32.mrb[0].mxu0
        %v608 = vadd.f32 0.0, %v607
        %v609 = vpop.f32.mrb[0].mxu0
        %610 = vmatprep.mubr.bf16.mxu0 0
        %611 = vmatmul.mubr.bf16.gmra.mrb[0].mxu0 %v491
        %v612 = vpop.f32.mrb[0].mxu0
        %v613 = vadd.f32 0.0, %v612
        %v614 = vpop.f32.mrb[0].mxu0
        %v615 = vpop.f32.mrb[0].mxu0
        %v616 = vadd.f32 0.0, %v615
        %v617 = vpop.f32.mrb[0].mxu0
        %618 = vmatprep.mubr.bf16.mxu0 0
        %619 = vmatmul.mubr.bf16.gmra.mrb[0].mxu0 %v494
        %v620 = vpop.f32.mrb[0].mxu0
        %v621 = vadd.f32 0.0, %v620
        %v622 = vpop.f32.mrb[0].mxu0
        %v623 = vpop.f32.mrb[0].mxu0
        %v624 = vadd.f32 0.0, %v623
        %v625 = vpop.f32.mrb[0].mxu0
        %626 = vmatprep.mubr.bf16.mxu0 0
        %627 = vmatmul.mubr.bf16.gmra.mrb[0].mxu0 %v497
        %v628 = vpop.f32.mrb[0].mxu0
        %v629 = vadd.f32 0.0, %v628
        %v630 = vpop.f32.mrb[0].mxu0
        %v631 = vpop.f32.mrb[0].mxu0
        %v632 = vadd.f32 0.0, %v631
        %v633 = vpop.f32.mrb[0].mxu0
        %634 = vmatprep.mubr.bf16.mxu0 0
        %635 = vmatmul.mubr.bf16.gmra.mrb[0].mxu0 %v500
        %v636 = vpop.f32.mrb[0].mxu0
        %v637 = vadd.f32 0.0, %v636
        %v638 = vpop.f32.mrb[0].mxu0
        %v639 = vpop.f32.mrb[0].mxu0
        %v640 = vadd.f32 0.0, %v639
        %v641 = vpop.f32.mrb[0].mxu0
        %642 = vmatprep.mubr.bf16.mxu0 0
        %643 = vmatmul.mubr.bf16.gmra.mrb[0].mxu0 %v503
        %v644 = vpop.f32.mrb[0].mxu0
        %v645 = vadd.f32 0.0, %v644
        %v646 = vpop.f32.mrb[0].mxu0
        %v647 = vpop.f32.mrb[0].mxu0
        %v648 = vadd.f32 0.0, %v647
        %v649 = vpop.f32.mrb[0].mxu0
        %650 = vmatprep.mubr.bf16.mxu0 0
        %651 = vmatmul.mubr.bf16.gmra.mrb[0].mxu0 %v506
        %v652 = vpop.f32.mrb[0].mxu0
        %v653 = vadd.f32 0.0, %v652
        %v654 = vpop.f32.mrb[0].mxu0
        %v655 = vpop.f32.mrb[0].mxu0
        %v656 = vadd.f32 0.0, %v655
        %v657 = vpop.f32.mrb[0].mxu0
        %658 = vmatprep.mubr.bf16.mxu0 0
        %659 = vmatmul.mubr.bf16.gmra.mrb[0].mxu0 %v509
        %v660 = vpop.f32.mrb[0].mxu0
        %v661 = vadd.f32 0.0, %v660
        %v662 = vpop.f32.mrb[0].mxu0
        %v663 = vpop.f32.mrb[0].mxu0
        %v664 = vadd.f32 0.0, %v663
        %v665 = vpop.f32.mrb[0].mxu0
        %666 = vmatprep.mubr.bf16.mxu0 0
        %667 = vmatmul.mubr.bf16.gmra.mrb[0].mxu0 %v512
        %v668 = vpop.f32.mrb[0].mxu0
        %v669 = vadd.f32 0.0, %v668
        %v670 = vpop.f32.mrb[0].mxu0
        %v671 = vpop.f32.mrb[0].mxu0
        %v672 = vadd.f32 0.0, %v671
        %v673 = vpop.f32.mrb[0].mxu0
        %674 = vdwg.mxu0
        %v675 = vld [vmem:[%s3] sm:$0xf]
        %v676 = vld [vmem:[%s3 + $0x4] sm:$0xf]
        %v677 = vld [vmem:[%s3 + $0x8] sm:$0xf]
        %v678 = vld [vmem:[%s3 + $0xc] sm:$0xf]
        %v679 = vld [vmem:[%s3 + $0x10] sm:$0xf]
        %v680 = vld [vmem:[%s3 + $0x14] sm:$0xf]
        %v681 = vld [vmem:[%s3 + $0x18] sm:$0xf]
        %v682 = vld [vmem:[%s3 + $0x1c] sm:$0xf]
        %v691 = vunpack.c.l.b16 %v675
        %v692 = vunpack.c.l.b16 %v676
        %v693 = vunpack.c.l.b16 %v677
        %v694 = vunpack.c.l.b16 %v678
        %v695 = vunpack.c.l.b16 %v679
        %v696 = vunpack.c.l.b16 %v680
        %v697 = vunpack.c.l.b16 %v681
        %v698 = vunpack.c.l.b16 %v682
        %v699 = vpack.c.b16 %v692, %v691
        %v700 = vpack.c.b16 %v694, %v693
        %v701 = vpack.c.b16 %v696, %v695
        %v702 = vpack.c.b16 %v698, %v697
        %v708 = vsel %vm465, %v337, 0
        %v711 = vsel %vm465, %v338, 0
        %v714 = vsel %vm465, %v339, 0
        %v717 = vsel %vm465, %v340, 0
        %v720 = vsel %vm465, %v341, 0
        %v723 = vsel %vm465, %v342, 0
        %v726 = vsel %vm465, %v343, 0
        %v729 = vsel %vm465, %v344, 0
        %v732 = vsel %vm465, %v345, 0
        %v735 = vsel %vm465, %v346, 0
        %v738 = vsel %vm465, %v347, 0
        %v741 = vsel %vm465, %v348, 0
        %v744 = vsel %vm465, %v349, 0
        %v747 = vsel %vm465, %v350, 0
        %v750 = vsel %vm465, %v351, 0
        %v753 = vsel %vm465, %v352, 0
        %755 = vmatprep.subr.bf16.mxu0 0
        %756 = vmatpush1.bf16.msra.mxu0 %v699
        %757 = vmatprep.subr.bf16.mxu0 0
        %758 = vmatpush1.bf16.msra.mxu0 %v700
        %759 = vmatprep.subr.bf16.mxu0 0
        %760 = vmatpush1.bf16.msra.mxu0 %v701
        %761 = vmatprep.subr.bf16.mxu0 0
        %762 = vmatpush1.bf16.msra.mxu0 %v702
        %763 = vmatprep.subr.bf16.mxu0 0
        %764 = vmatpush1.bf16.msra.mxu0 0
        %765 = vmatprep.subr.bf16.mxu0 0
        %766 = vmatpush1.bf16.msra.mxu0 0
        %767 = vmatprep.subr.bf16.mxu0 0
        %768 = vmatpush1.bf16.msra.mxu0 0
        %769 = vmatprep.subr.bf16.mxu0 0
        %770 = vmatpush1.bf16.msra.mxu0 0
        %771 = vmatprep.subr.bf16.mxu0 0
        %772 = vmatpush1.bf16.msra.mxu0 0
        %773 = vmatprep.subr.bf16.mxu0 0
        %774 = vmatpush1.bf16.msra.mxu0 0
        %775 = vmatprep.subr.bf16.mxu0 0
        %776 = vmatpush1.bf16.msra.mxu0 0
        %777 = vmatprep.subr.bf16.mxu0 0
        %778 = vmatpush1.bf16.msra.mxu0 0
        %779 = vmatprep.subr.bf16.mxu0 0
        %780 = vmatpush1.bf16.msra.mxu0 0
        %781 = vmatprep.subr.bf16.mxu0 0
        %782 = vmatpush1.bf16.msra.mxu0 0
        %783 = vmatprep.subr.bf16.mxu0 0
        %784 = vmatpush1.bf16.msra.mxu0 0
        %785 = vmatprep.subr.bf16.mxu0 0
        %786 = vmatpush1.bf16.msra.mxu0 0
        %787 = vmatprep.mubr.bf16.mxu0 0
        %788 = vmatmul.mubr.bf16.gmra.mrb[0].mxu0 %v708
        %v789 = vpop.f32.mrb[0].mxu0
        %v790 = vadd.f32 0.0, %v789
        %v791 = vpop.f32.mrb[0].mxu0
        %v792 = vpop.f32.mrb[0].mxu0
        %v793 = vadd.f32 0.0, %v792
        %v794 = vpop.f32.mrb[0].mxu0
        %795 = vmatprep.mubr.bf16.mxu0 0
        %796 = vmatmul.mubr.bf16.gmra.mrb[0].mxu0 %v711
        %v797 = vpop.f32.mrb[0].mxu0
        %v798 = vadd.f32 0.0, %v797
        %v799 = vpop.f32.mrb[0].mxu0
        %v800 = vpop.f32.mrb[0].mxu0
        %v801 = vadd.f32 0.0, %v800
        %v802 = vpop.f32.mrb[0].mxu0
        %803 = vmatprep.mubr.bf16.mxu0 0
        %804 = vmatmul.mubr.bf16.gmra.mrb[0].mxu0 %v714
        %v805 = vpop.f32.mrb[0].mxu0
        %v806 = vadd.f32 0.0, %v805
        %v807 = vpop.f32.mrb[0].mxu0
        %v808 = vpop.f32.mrb[0].mxu0
        %v809 = vadd.f32 0.0, %v808
        %v810 = vpop.f32.mrb[0].mxu0
        %811 = vmatprep.mubr.bf16.mxu0 0
        %812 = vmatmul.mubr.bf16.gmra.mrb[0].mxu0 %v717
        %v813 = vpop.f32.mrb[0].mxu0
        %v814 = vadd.f32 0.0, %v813
        %v815 = vpop.f32.mrb[0].mxu0
        %v816 = vpop.f32.mrb[0].mxu0
        %v817 = vadd.f32 0.0, %v816
        %v818 = vpop.f32.mrb[0].mxu0
        %819 = vmatprep.mubr.bf16.mxu0 0
        %820 = vmatmul.mubr.bf16.gmra.mrb[0].mxu0 %v720
        %v821 = vpop.f32.mrb[0].mxu0
        %v822 = vadd.f32 0.0, %v821
        %v823 = vpop.f32.mrb[0].mxu0
        %v824 = vpop.f32.mrb[0].mxu0
        %v825 = vadd.f32 0.0, %v824
        %v826 = vpop.f32.mrb[0].mxu0
        %827 = vmatprep.mubr.bf16.mxu0 0
        %828 = vmatmul.mubr.bf16.gmra.mrb[0].mxu0 %v723
        %v829 = vpop.f32.mrb[0].mxu0
        %v830 = vadd.f32 0.0, %v829
        %v831 = vpop.f32.mrb[0].mxu0
        %v832 = vpop.f32.mrb[0].mxu0
        %v833 = vadd.f32 0.0, %v832
        %v834 = vpop.f32.mrb[0].mxu0
        %835 = vmatprep.mubr.bf16.mxu0 0
        %836 = vmatmul.mubr.bf16.gmra.mrb[0].mxu0 %v726
        %v837 = vpop.f32.mrb[0].mxu0
        %v838 = vadd.f32 0.0, %v837
        %v839 = vpop.f32.mrb[0].mxu0
        %v840 = vpop.f32.mrb[0].mxu0
        %v841 = vadd.f32 0.0, %v840
        %v842 = vpop.f32.mrb[0].mxu0
        %843 = vmatprep.mubr.bf16.mxu0 0
        %844 = vmatmul.mubr.bf16.gmra.mrb[0].mxu0 %v729
        %v845 = vpop.f32.mrb[0].mxu0
        %v846 = vadd.f32 0.0, %v845
        %v847 = vpop.f32.mrb[0].mxu0
        %v848 = vpop.f32.mrb[0].mxu0
        %v849 = vadd.f32 0.0, %v848
        %v850 = vpop.f32.mrb[0].mxu0
        %851 = vmatprep.mubr.bf16.mxu0 0
        %852 = vmatmul.mubr.bf16.gmra.mrb[0].mxu0 %v732
        %v853 = vpop.f32.mrb[0].mxu0
        %v854 = vadd.f32 0.0, %v853
        %v855 = vpop.f32.mrb[0].mxu0
        %v856 = vpop.f32.mrb[0].mxu0
        %v857 = vadd.f32 0.0, %v856
        %v858 = vpop.f32.mrb[0].mxu0
        %859 = vmatprep.mubr.bf16.mxu0 0
        %860 = vmatmul.mubr.bf16.gmra.mrb[0].mxu0 %v735
        %v861 = vpop.f32.mrb[0].mxu0
        %v862 = vadd.f32 0.0, %v861
        %v863 = vpop.f32.mrb[0].mxu0
        %v864 = vpop.f32.mrb[0].mxu0
        %v865 = vadd.f32 0.0, %v864
        %v866 = vpop.f32.mrb[0].mxu0
        %867 = vmatprep.mubr.bf16.mxu0 0
        %868 = vmatmul.mubr.bf16.gmra.mrb[0].mxu0 %v738
        %v869 = vpop.f32.mrb[0].mxu0
        %v870 = vadd.f32 0.0, %v869
        %v871 = vpop.f32.mrb[0].mxu0
        %v872 = vpop.f32.mrb[0].mxu0
        %v873 = vadd.f32 0.0, %v872
        %v874 = vpop.f32.mrb[0].mxu0
        %875 = vmatprep.mubr.bf16.mxu0 0
        %876 = vmatmul.mubr.bf16.gmra.mrb[0].mxu0 %v741
        %v877 = vpop.f32.mrb[0].mxu0
        %v878 = vadd.f32 0.0, %v877
        %v879 = vpop.f32.mrb[0].mxu0
        %v880 = vpop.f32.mrb[0].mxu0
        %v881 = vadd.f32 0.0, %v880
        %v882 = vpop.f32.mrb[0].mxu0
        %883 = vmatprep.mubr.bf16.mxu0 0
        %884 = vmatmul.mubr.bf16.gmra.mrb[0].mxu0 %v744
        %v885 = vpop.f32.mrb[0].mxu0
        %v886 = vadd.f32 0.0, %v885
        %v887 = vpop.f32.mrb[0].mxu0
        %v888 = vpop.f32.mrb[0].mxu0
        %v889 = vadd.f32 0.0, %v888
        %v890 = vpop.f32.mrb[0].mxu0
        %891 = vmatprep.mubr.bf16.mxu0 0
        %892 = vmatmul.mubr.bf16.gmra.mrb[0].mxu0 %v747
        %v893 = vpop.f32.mrb[0].mxu0
        %v894 = vadd.f32 0.0, %v893
        %v895 = vpop.f32.mrb[0].mxu0
        %v896 = vpop.f32.mrb[0].mxu0
        %v897 = vadd.f32 0.0, %v896
        %v898 = vpop.f32.mrb[0].mxu0
        %899 = vmatprep.mubr.bf16.mxu0 0
        %900 = vmatmul.mubr.bf16.gmra.mrb[0].mxu0 %v750
        %v901 = vpop.f32.mrb[0].mxu0
        %v902 = vadd.f32 0.0, %v901
        %v903 = vpop.f32.mrb[0].mxu0
        %v904 = vpop.f32.mrb[0].mxu0
        %v905 = vadd.f32 0.0, %v904
        %v906 = vpop.f32.mrb[0].mxu0
        %907 = vmatprep.mubr.bf16.mxu0 0
        %908 = vmatmul.mubr.bf16.gmra.mrb[0].mxu0 %v753
        %v909 = vpop.f32.mrb[0].mxu0
        %v910 = vadd.f32 0.0, %v909
        %v911 = vpop.f32.mrb[0].mxu0
        %v912 = vpop.f32.mrb[0].mxu0
        %v913 = vadd.f32 0.0, %v912
        %v914 = vpop.f32.mrb[0].mxu0
        %915 = vdwg.mxu0
        %v916 = vld [vmem:[%s4] sm:$0xf]
        %v917 = vld [vmem:[%s4 + $0x4] sm:$0xf]
        %v918 = vld [vmem:[%s4 + $0x8] sm:$0xf]
        %v919 = vld [vmem:[%s4 + $0xc] sm:$0xf]
        %v920 = vld [vmem:[%s4 + $0x10] sm:$0xf]
        %v921 = vld [vmem:[%s4 + $0x14] sm:$0xf]
        %v922 = vld [vmem:[%s4 + $0x18] sm:$0xf]
        %v923 = vld [vmem:[%s4 + $0x1c] sm:$0xf]
        %v932 = vunpack.c.l.b16 %v916
        %v933 = vunpack.c.l.b16 %v917
        %v934 = vunpack.c.l.b16 %v918
        %v935 = vunpack.c.l.b16 %v919
        %v936 = vunpack.c.l.b16 %v920
        %v937 = vunpack.c.l.b16 %v921
        %v938 = vunpack.c.l.b16 %v922
        %v939 = vunpack.c.l.b16 %v923
        %v940 = vpack.c.b16 %v933, %v932
        %v941 = vpack.c.b16 %v935, %v934
        %v942 = vpack.c.b16 %v937, %v936
        %v943 = vpack.c.b16 %v939, %v938
        %948 = vmatprep.subr.bf16.mxu0 0
        %949 = vmatpush1.bf16.msra.mxu0 %v940
        %950 = vmatprep.subr.bf16.mxu0 0
        %951 = vmatpush1.bf16.msra.mxu0 %v941
        %952 = vmatprep.subr.bf16.mxu0 0
        %953 = vmatpush1.bf16.msra.mxu0 %v942
        %954 = vmatprep.subr.bf16.mxu0 0
        %955 = vmatpush1.bf16.msra.mxu0 %v943
        %956 = vmatprep.subr.bf16.mxu0 0
        %957 = vmatpush1.bf16.msra.mxu0 0
        %958 = vmatprep.subr.bf16.mxu0 0
        %959 = vmatpush1.bf16.msra.mxu0 0
        %960 = vmatprep.subr.bf16.mxu0 0
        %961 = vmatpush1.bf16.msra.mxu0 0
        %962 = vmatprep.subr.bf16.mxu0 0
        %963 = vmatpush1.bf16.msra.mxu0 0
        %964 = vmatprep.subr.bf16.mxu0 0
        %965 = vmatpush1.bf16.msra.mxu0 0
        %966 = vmatprep.subr.bf16.mxu0 0
        %967 = vmatpush1.bf16.msra.mxu0 0
        %968 = vmatprep.subr.bf16.mxu0 0
        %969 = vmatpush1.bf16.msra.mxu0 0
        %970 = vmatprep.subr.bf16.mxu0 0
        %971 = vmatpush1.bf16.msra.mxu0 0
        %972 = vmatprep.subr.bf16.mxu0 0
        %973 = vmatpush1.bf16.msra.mxu0 0
        %974 = vmatprep.subr.bf16.mxu0 0
        %975 = vmatpush1.bf16.msra.mxu0 0
        %976 = vmatprep.subr.bf16.mxu0 0
        %977 = vmatpush1.bf16.msra.mxu0 0
        %978 = vmatprep.subr.bf16.mxu0 0
        %979 = vmatpush1.bf16.msra.mxu0 0
        %980 = vmatprep.mubr.bf16.mxu0 0
        %981 = vmatmul.mubr.bf16.gmra.mrb[0].mxu0 %v708
        %v982 = vpop.f32.mrb[0].mxu0
        %v983 = vadd.f32 0.0, %v982
        %v984 = vpop.f32.mrb[0].mxu0
        %v985 = vpop.f32.mrb[0].mxu0
        %v986 = vadd.f32 0.0, %v985
        %v987 = vpop.f32.mrb[0].mxu0
        %988 = vmatprep.mubr.bf16.mxu0 0
        %989 = vmatmul.mubr.bf16.gmra.mrb[0].mxu0 %v711
        %v990 = vpop.f32.mrb[0].mxu0
        %v991 = vadd.f32 0.0, %v990
        %v992 = vpop.f32.mrb[0].mxu0
        %v993 = vpop.f32.mrb[0].mxu0
        %v994 = vadd.f32 0.0, %v993
        %v995 = vpop.f32.mrb[0].mxu0
        %996 = vmatprep.mubr.bf16.mxu0 0
        %997 = vmatmul.mubr.bf16.gmra.mrb[0].mxu0 %v714
        %v998 = vpop.f32.mrb[0].mxu0
        %v999 = vadd.f32 0.0, %v998
        %v1000 = vpop.f32.mrb[0].mxu0
        %v1001 = vpop.f32.mrb[0].mxu0
        %v1002 = vadd.f32 0.0, %v1001
        %v1003 = vpop.f32.mrb[0].mxu0
        %1004 = vmatprep.mubr.bf16.mxu0 0
        %1005 = vmatmul.mubr.bf16.gmra.mrb[0].mxu0 %v717
        %v1006 = vpop.f32.mrb[0].mxu0
        %v1007 = vadd.f32 0.0, %v1006
        %v1008 = vpop.f32.mrb[0].mxu0
        %v1009 = vpop.f32.mrb[0].mxu0
        %v1010 = vadd.f32 0.0, %v1009
        %v1011 = vpop.f32.mrb[0].mxu0
        %1012 = vmatprep.mubr.bf16.mxu0 0
        %1013 = vmatmul.mubr.bf16.gmra.mrb[0].mxu0 %v720
        %v1014 = vpop.f32.mrb[0].mxu0
        %v1015 = vadd.f32 0.0, %v1014
        %v1016 = vpop.f32.mrb[0].mxu0
        %v1017 = vpop.f32.mrb[0].mxu0
        %v1018 = vadd.f32 0.0, %v1017
        %v1019 = vpop.f32.mrb[0].mxu0
        %1020 = vmatprep.mubr.bf16.mxu0 0
        %1021 = vmatmul.mubr.bf16.gmra.mrb[0].mxu0 %v723
        %v1022 = vpop.f32.mrb[0].mxu0
        %v1023 = vadd.f32 0.0, %v1022
        %v1024 = vpop.f32.mrb[0].mxu0
        %v1025 = vpop.f32.mrb[0].mxu0
        %v1026 = vadd.f32 0.0, %v1025
        %v1027 = vpop.f32.mrb[0].mxu0
        %1028 = vmatprep.mubr.bf16.mxu0 0
        %1029 = vmatmul.mubr.bf16.gmra.mrb[0].mxu0 %v726
        %v1030 = vpop.f32.mrb[0].mxu0
        %v1031 = vadd.f32 0.0, %v1030
        %v1032 = vpop.f32.mrb[0].mxu0
        %v1033 = vpop.f32.mrb[0].mxu0
        %v1034 = vadd.f32 0.0, %v1033
        %v1035 = vpop.f32.mrb[0].mxu0
        %1036 = vmatprep.mubr.bf16.mxu0 0
        %1037 = vmatmul.mubr.bf16.gmra.mrb[0].mxu0 %v729
        %v1038 = vpop.f32.mrb[0].mxu0
        %v1039 = vadd.f32 0.0, %v1038
        %v1040 = vpop.f32.mrb[0].mxu0
        %v1041 = vpop.f32.mrb[0].mxu0
        %v1042 = vadd.f32 0.0, %v1041
        %v1043 = vpop.f32.mrb[0].mxu0
        %1044 = vmatprep.mubr.bf16.mxu0 0
        %1045 = vmatmul.mubr.bf16.gmra.mrb[0].mxu0 %v732
        %v1046 = vpop.f32.mrb[0].mxu0
        %v1047 = vadd.f32 0.0, %v1046
        %v1048 = vpop.f32.mrb[0].mxu0
        %v1049 = vpop.f32.mrb[0].mxu0
        %v1050 = vadd.f32 0.0, %v1049
        %v1051 = vpop.f32.mrb[0].mxu0
        %1052 = vmatprep.mubr.bf16.mxu0 0
        %1053 = vmatmul.mubr.bf16.gmra.mrb[0].mxu0 %v735
        %v1054 = vpop.f32.mrb[0].mxu0
        %v1055 = vadd.f32 0.0, %v1054
        %v1056 = vpop.f32.mrb[0].mxu0
        %v1057 = vpop.f32.mrb[0].mxu0
        %v1058 = vadd.f32 0.0, %v1057
        %v1059 = vpop.f32.mrb[0].mxu0
        %1060 = vmatprep.mubr.bf16.mxu0 0
        %1061 = vmatmul.mubr.bf16.gmra.mrb[0].mxu0 %v738
        %v1062 = vpop.f32.mrb[0].mxu0
        %v1063 = vadd.f32 0.0, %v1062
        %v1064 = vpop.f32.mrb[0].mxu0
        %v1065 = vpop.f32.mrb[0].mxu0
        %v1066 = vadd.f32 0.0, %v1065
        %v1067 = vpop.f32.mrb[0].mxu0
        %1068 = vmatprep.mubr.bf16.mxu0 0
        %1069 = vmatmul.mubr.bf16.gmra.mrb[0].mxu0 %v741
        %v1070 = vpop.f32.mrb[0].mxu0
        %v1071 = vadd.f32 0.0, %v1070
        %v1072 = vpop.f32.mrb[0].mxu0
        %v1073 = vpop.f32.mrb[0].mxu0
        %v1074 = vadd.f32 0.0, %v1073
        %v1075 = vpop.f32.mrb[0].mxu0
        %1076 = vmatprep.mubr.bf16.mxu0 0
        %1077 = vmatmul.mubr.bf16.gmra.mrb[0].mxu0 %v744
        %v1078 = vpop.f32.mrb[0].mxu0
        %v1079 = vadd.f32 0.0, %v1078
        %v1080 = vpop.f32.mrb[0].mxu0
        %v1081 = vpop.f32.mrb[0].mxu0
        %v1082 = vadd.f32 0.0, %v1081
        %v1083 = vpop.f32.mrb[0].mxu0
        %1084 = vmatprep.mubr.bf16.mxu0 0
        %1085 = vmatmul.mubr.bf16.gmra.mrb[0].mxu0 %v747
        %v1086 = vpop.f32.mrb[0].mxu0
        %v1087 = vadd.f32 0.0, %v1086
        %v1088 = vpop.f32.mrb[0].mxu0
        %v1089 = vpop.f32.mrb[0].mxu0
        %v1090 = vadd.f32 0.0, %v1089
        %v1091 = vpop.f32.mrb[0].mxu0
        %1092 = vmatprep.mubr.bf16.mxu0 0
        %1093 = vmatmul.mubr.bf16.gmra.mrb[0].mxu0 %v750
        %v1094 = vpop.f32.mrb[0].mxu0
        %v1095 = vadd.f32 0.0, %v1094
        %v1096 = vpop.f32.mrb[0].mxu0
        %v1097 = vpop.f32.mrb[0].mxu0
        %v1098 = vadd.f32 0.0, %v1097
        %v1099 = vpop.f32.mrb[0].mxu0
        %1100 = vmatprep.mubr.bf16.mxu0 0
        %1101 = vmatmul.mubr.bf16.gmra.mrb[0].mxu0 %v753
        %v1102 = vpop.f32.mrb[0].mxu0
        %v1103 = vadd.f32 0.0, %v1102
        %v1104 = vpop.f32.mrb[0].mxu0
        %v1105 = vpop.f32.mrb[0].mxu0
        %v1106 = vadd.f32 0.0, %v1105
        %v1107 = vpop.f32.mrb[0].mxu0
        %1108 = vdwg.mxu0
        %v1109 = vmul.f32 %v549, %v549
        %v1110 = vmul.f32 %v552, %v552
        %v1111 = vmul.f32 %v557, %v557
        %v1112 = vmul.f32 %v560, %v560
        %v1113 = vmul.f32 %v565, %v565
        %v1114 = vmul.f32 %v568, %v568
        %v1115 = vmul.f32 %v573, %v573
        %v1116 = vmul.f32 %v576, %v576
        %v1117 = vmul.f32 %v581, %v581
        %v1118 = vmul.f32 %v584, %v584
        %v1119 = vmul.f32 %v589, %v589
        %v1120 = vmul.f32 %v592, %v592
        %v1121 = vmul.f32 %v597, %v597
        %v1122 = vmul.f32 %v600, %v600
        %v1123 = vmul.f32 %v605, %v605
        %v1124 = vmul.f32 %v608, %v608
        %v1125 = vmul.f32 %v613, %v613
        %v1126 = vmul.f32 %v616, %v616
        %v1127 = vmul.f32 %v621, %v621
        %v1128 = vmul.f32 %v624, %v624
        %v1129 = vmul.f32 %v629, %v629
        %v1130 = vmul.f32 %v632, %v632
        %v1131 = vmul.f32 %v637, %v637
        %v1132 = vmul.f32 %v640, %v640
        %v1133 = vmul.f32 %v645, %v645
        %v1134 = vmul.f32 %v648, %v648
        %v1135 = vmul.f32 %v653, %v653
        %v1136 = vmul.f32 %v656, %v656
        %v1137 = vmul.f32 %v661, %v661
        %v1138 = vmul.f32 %v664, %v664
        %v1139 = vmul.f32 %v669, %v669
        %v1140 = vmul.f32 %v672, %v672
        %vm1141 = vcmask 64512
        %v1142 = vsel %vm1141, %v1109, 0.0
        %1143 = vadd.xlane.f32.xlu0 %v1142
        %v1144 = vpop.xlane.xlu0 %1143
        %v1145 = vsel %vm1141, %v1110, 0.0
        %1146 = vadd.xlane.f32.xlu0 %v1145
        %v1147 = vpop.xlane.xlu0 %1146
        %v1148 = vsel %vm1141, %v1111, 0.0
        %1149 = vadd.xlane.f32.xlu0 %v1148
        %v1150 = vpop.xlane.xlu0 %1149
        %v1151 = vsel %vm1141, %v1112, 0.0
        %1152 = vadd.xlane.f32.xlu0 %v1151
        %v1153 = vpop.xlane.xlu0 %1152
        %v1154 = vsel %vm1141, %v1113, 0.0
        %1155 = vadd.xlane.f32.xlu0 %v1154
        %v1156 = vpop.xlane.xlu0 %1155
        %v1157 = vsel %vm1141, %v1114, 0.0
        %1158 = vadd.xlane.f32.xlu0 %v1157
        %v1159 = vpop.xlane.xlu0 %1158
        %v1160 = vsel %vm1141, %v1115, 0.0
        %1161 = vadd.xlane.f32.xlu0 %v1160
        %v1162 = vpop.xlane.xlu0 %1161
        %v1163 = vsel %vm1141, %v1116, 0.0
        %1164 = vadd.xlane.f32.xlu0 %v1163
        %v1165 = vpop.xlane.xlu0 %1164
        %v1166 = vsel %vm1141, %v1117, 0.0
        %1167 = vadd.xlane.f32.xlu0 %v1166
        %v1168 = vpop.xlane.xlu0 %1167
        %v1169 = vsel %vm1141, %v1118, 0.0
        %1170 = vadd.xlane.f32.xlu0 %v1169
        %v1171 = vpop.xlane.xlu0 %1170
        %v1172 = vsel %vm1141, %v1119, 0.0
        %1173 = vadd.xlane.f32.xlu0 %v1172
        %v1174 = vpop.xlane.xlu0 %1173
        %v1175 = vsel %vm1141, %v1120, 0.0
        %1176 = vadd.xlane.f32.xlu0 %v1175
        %v1177 = vpop.xlane.xlu0 %1176
        %v1178 = vsel %vm1141, %v1121, 0.0
        %1179 = vadd.xlane.f32.xlu0 %v1178
        %v1180 = vpop.xlane.xlu0 %1179
        %v1181 = vsel %vm1141, %v1122, 0.0
        %1182 = vadd.xlane.f32.xlu0 %v1181
        %v1183 = vpop.xlane.xlu0 %1182
        %v1184 = vsel %vm1141, %v1123, 0.0
        %1185 = vadd.xlane.f32.xlu0 %v1184
        %v1186 = vpop.xlane.xlu0 %1185
        %v1187 = vsel %vm1141, %v1124, 0.0
        %1188 = vadd.xlane.f32.xlu0 %v1187
        %v1189 = vpop.xlane.xlu0 %1188
        %v1190 = vsel %vm1141, %v1125, 0.0
        %1191 = vadd.xlane.f32.xlu0 %v1190
        %v1192 = vpop.xlane.xlu0 %1191
        %v1193 = vsel %vm1141, %v1126, 0.0
        %1194 = vadd.xlane.f32.xlu0 %v1193
        %v1195 = vpop.xlane.xlu0 %1194
        %v1196 = vsel %vm1141, %v1127, 0.0
        %1197 = vadd.xlane.f32.xlu0 %v1196
        %v1198 = vpop.xlane.xlu0 %1197
        %v1199 = vsel %vm1141, %v1128, 0.0
        %1200 = vadd.xlane.f32.xlu0 %v1199
        %v1201 = vpop.xlane.xlu0 %1200
        %v1202 = vsel %vm1141, %v1129, 0.0
        %1203 = vadd.xlane.f32.xlu0 %v1202
        %v1204 = vpop.xlane.xlu0 %1203
        %v1205 = vsel %vm1141, %v1130, 0.0
        %1206 = vadd.xlane.f32.xlu0 %v1205
        %v1207 = vpop.xlane.xlu0 %1206
        %v1208 = vsel %vm1141, %v1131, 0.0
        %1209 = vadd.xlane.f32.xlu0 %v1208
        %v1210 = vpop.xlane.xlu0 %1209
        %v1211 = vsel %vm1141, %v1132, 0.0
        %1212 = vadd.xlane.f32.xlu0 %v1211
        %v1213 = vpop.xlane.xlu0 %1212
        %v1214 = vsel %vm1141, %v1133, 0.0
        %1215 = vadd.xlane.f32.xlu0 %v1214
        %v1216 = vpop.xlane.xlu0 %1215
        %v1217 = vsel %vm1141, %v1134, 0.0
        %1218 = vadd.xlane.f32.xlu0 %v1217
        %v1219 = vpop.xlane.xlu0 %1218
        %v1220 = vsel %vm1141, %v1135, 0.0
        %1221 = vadd.xlane.f32.xlu0 %v1220
        %v1222 = vpop.xlane.xlu0 %1221
        %v1223 = vsel %vm1141, %v1136, 0.0
        %1224 = vadd.xlane.f32.xlu0 %v1223
        %v1225 = vpop.xlane.xlu0 %1224
        %v1226 = vsel %vm1141, %v1137, 0.0
        %1227 = vadd.xlane.f32.xlu0 %v1226
        %v1228 = vpop.xlane.xlu0 %1227
        %v1229 = vsel %vm1141, %v1138, 0.0
        %1230 = vadd.xlane.f32.xlu0 %v1229
        %v1231 = vpop.xlane.xlu0 %1230
        %v1232 = vsel %vm1141, %v1139, 0.0
        %1233 = vadd.xlane.f32.xlu0 %v1232
        %v1234 = vpop.xlane.xlu0 %1233
        %v1235 = vsel %vm1141, %v1140, 0.0
        %1236 = vadd.xlane.f32.xlu0 %v1235
        %v1237 = vpop.xlane.xlu0 %1236
        %v1238 = vadd.f32 %v1144, 1e-12
        %v1239 = vadd.f32 %v1147, 1e-12
        %v1240 = vadd.f32 %v1150, 1e-12
        %v1241 = vadd.f32 %v1153, 1e-12
        %v1242 = vadd.f32 %v1156, 1e-12
        %v1243 = vadd.f32 %v1159, 1e-12
        %v1244 = vadd.f32 %v1162, 1e-12
        %v1245 = vadd.f32 %v1165, 1e-12
        %v1246 = vadd.f32 %v1168, 1e-12
        %v1247 = vadd.f32 %v1171, 1e-12
        %v1248 = vadd.f32 %v1174, 1e-12
        %v1249 = vadd.f32 %v1177, 1e-12
        %v1250 = vadd.f32 %v1180, 1e-12
        %v1251 = vadd.f32 %v1183, 1e-12
        %v1252 = vadd.f32 %v1186, 1e-12
        %v1253 = vadd.f32 %v1189, 1e-12
        %v1254 = vadd.f32 %v1192, 1e-12
        %v1255 = vadd.f32 %v1195, 1e-12
        %v1256 = vadd.f32 %v1198, 1e-12
        %v1257 = vadd.f32 %v1201, 1e-12
        %v1258 = vadd.f32 %v1204, 1e-12
        %v1259 = vadd.f32 %v1207, 1e-12
        %v1260 = vadd.f32 %v1210, 1e-12
        %v1261 = vadd.f32 %v1213, 1e-12
        %v1262 = vadd.f32 %v1216, 1e-12
        %v1263 = vadd.f32 %v1219, 1e-12
        %v1264 = vadd.f32 %v1222, 1e-12
        %v1265 = vadd.f32 %v1225, 1e-12
        %v1266 = vadd.f32 %v1228, 1e-12
        %v1267 = vadd.f32 %v1231, 1e-12
        %v1268 = vadd.f32 %v1234, 1e-12
        %v1269 = vadd.f32 %v1237, 1e-12
        %v1270 = vrsqrt.pop %v1238
        %v1271 = vrsqrt.pop %v1239
        %v1272 = vrsqrt.pop %v1240
        %v1273 = vrsqrt.pop %v1241
        %v1274 = vrsqrt.pop %v1242
        %v1275 = vrsqrt.pop %v1243
        %v1276 = vrsqrt.pop %v1244
        %v1277 = vrsqrt.pop %v1245
        %v1278 = vrsqrt.pop %v1246
        %v1279 = vrsqrt.pop %v1247
        %v1280 = vrsqrt.pop %v1248
        %v1281 = vrsqrt.pop %v1249
        %v1282 = vrsqrt.pop %v1250
        %v1283 = vrsqrt.pop %v1251
        %v1284 = vrsqrt.pop %v1252
        %v1285 = vrsqrt.pop %v1253
        %v1286 = vrsqrt.pop %v1254
        %v1287 = vrsqrt.pop %v1255
        %v1288 = vrsqrt.pop %v1256
        %v1289 = vrsqrt.pop %v1257
        %v1290 = vrsqrt.pop %v1258
        %v1291 = vrsqrt.pop %v1259
        %v1292 = vrsqrt.pop %v1260
        %v1293 = vrsqrt.pop %v1261
        %v1294 = vrsqrt.pop %v1262
        %v1295 = vrsqrt.pop %v1263
        %v1296 = vrsqrt.pop %v1264
        %v1297 = vrsqrt.pop %v1265
        %v1298 = vrsqrt.pop %v1266
        %v1299 = vrsqrt.pop %v1267
        %v1300 = vrsqrt.pop %v1268
        %v1301 = vrsqrt.pop %v1269
        %v1302 = vmul.f32 %v549, %v1270
        %v1303 = vmul.f32 %v552, %v1271
        %v1304 = vmul.f32 %v557, %v1272
        %v1305 = vmul.f32 %v560, %v1273
        %v1306 = vmul.f32 %v565, %v1274
        %v1307 = vmul.f32 %v568, %v1275
        %v1308 = vmul.f32 %v573, %v1276
        %v1309 = vmul.f32 %v576, %v1277
        %v1310 = vmul.f32 %v581, %v1278
        %v1311 = vmul.f32 %v584, %v1279
        %v1312 = vmul.f32 %v589, %v1280
        %v1313 = vmul.f32 %v592, %v1281
        %v1314 = vmul.f32 %v597, %v1282
        %v1315 = vmul.f32 %v600, %v1283
        %v1316 = vmul.f32 %v605, %v1284
        %v1317 = vmul.f32 %v608, %v1285
        %v1318 = vmul.f32 %v613, %v1286
        %v1319 = vmul.f32 %v616, %v1287
        %v1320 = vmul.f32 %v621, %v1288
        %v1321 = vmul.f32 %v624, %v1289
        %v1322 = vmul.f32 %v629, %v1290
        %v1323 = vmul.f32 %v632, %v1291
        %v1324 = vmul.f32 %v637, %v1292
        %v1325 = vmul.f32 %v640, %v1293
        %v1326 = vmul.f32 %v645, %v1294
        %v1327 = vmul.f32 %v648, %v1295
        %v1328 = vmul.f32 %v653, %v1296
        %v1329 = vmul.f32 %v656, %v1297
        %v1330 = vmul.f32 %v661, %v1298
        %v1331 = vmul.f32 %v664, %v1299
        %v1332 = vmul.f32 %v669, %v1300
        %v1333 = vmul.f32 %v672, %v1301
        %v1334 = vmul.f32 %v790, %v790
        %v1335 = vmul.f32 %v793, %v793
        %v1336 = vmul.f32 %v798, %v798
        %v1337 = vmul.f32 %v801, %v801
        %v1338 = vmul.f32 %v806, %v806
        %v1339 = vmul.f32 %v809, %v809
        %v1340 = vmul.f32 %v814, %v814
        %v1341 = vmul.f32 %v817, %v817
        %v1342 = vmul.f32 %v822, %v822
        %v1343 = vmul.f32 %v825, %v825
        %v1344 = vmul.f32 %v830, %v830
        %v1345 = vmul.f32 %v833, %v833
        %v1346 = vmul.f32 %v838, %v838
        %v1347 = vmul.f32 %v841, %v841
        %v1348 = vmul.f32 %v846, %v846
        %v1349 = vmul.f32 %v849, %v849
        %v1350 = vmul.f32 %v854, %v854
        %v1351 = vmul.f32 %v857, %v857
        %v1352 = vmul.f32 %v862, %v862
        %v1353 = vmul.f32 %v865, %v865
        %v1354 = vmul.f32 %v870, %v870
        %v1355 = vmul.f32 %v873, %v873
        %v1356 = vmul.f32 %v878, %v878
        %v1357 = vmul.f32 %v881, %v881
        %v1358 = vmul.f32 %v886, %v886
        %v1359 = vmul.f32 %v889, %v889
        %v1360 = vmul.f32 %v894, %v894
        %v1361 = vmul.f32 %v897, %v897
        %v1362 = vmul.f32 %v902, %v902
        %v1363 = vmul.f32 %v905, %v905
        %v1364 = vmul.f32 %v910, %v910
        %v1365 = vmul.f32 %v913, %v913
        %v1366 = vsel %vm1141, %v1334, 0.0
        %1367 = vadd.xlane.f32.xlu0 %v1366
        %v1368 = vpop.xlane.xlu0 %1367
        %v1369 = vsel %vm1141, %v1335, 0.0
        %1370 = vadd.xlane.f32.xlu0 %v1369
        %v1371 = vpop.xlane.xlu0 %1370
        %v1372 = vsel %vm1141, %v1336, 0.0
        %1373 = vadd.xlane.f32.xlu0 %v1372
        %v1374 = vpop.xlane.xlu0 %1373
        %v1375 = vsel %vm1141, %v1337, 0.0
        %1376 = vadd.xlane.f32.xlu0 %v1375
        %v1377 = vpop.xlane.xlu0 %1376
        %v1378 = vsel %vm1141, %v1338, 0.0
        %1379 = vadd.xlane.f32.xlu0 %v1378
        %v1380 = vpop.xlane.xlu0 %1379
        %v1381 = vsel %vm1141, %v1339, 0.0
        %1382 = vadd.xlane.f32.xlu0 %v1381
        %v1383 = vpop.xlane.xlu0 %1382
        %v1384 = vsel %vm1141, %v1340, 0.0
        %1385 = vadd.xlane.f32.xlu0 %v1384
        %v1386 = vpop.xlane.xlu0 %1385
        %v1387 = vsel %vm1141, %v1341, 0.0
        %1388 = vadd.xlane.f32.xlu0 %v1387
        %v1389 = vpop.xlane.xlu0 %1388
        %v1390 = vsel %vm1141, %v1342, 0.0
        %1391 = vadd.xlane.f32.xlu0 %v1390
        %v1392 = vpop.xlane.xlu0 %1391
        %v1393 = vsel %vm1141, %v1343, 0.0
        %1394 = vadd.xlane.f32.xlu0 %v1393
        %v1395 = vpop.xlane.xlu0 %1394
        %v1396 = vsel %vm1141, %v1344, 0.0
        %1397 = vadd.xlane.f32.xlu0 %v1396
        %v1398 = vpop.xlane.xlu0 %1397
        %v1399 = vsel %vm1141, %v1345, 0.0
        %1400 = vadd.xlane.f32.xlu0 %v1399
        %v1401 = vpop.xlane.xlu0 %1400
        %v1402 = vsel %vm1141, %v1346, 0.0
        %1403 = vadd.xlane.f32.xlu0 %v1402
        %v1404 = vpop.xlane.xlu0 %1403
        %v1405 = vsel %vm1141, %v1347, 0.0
        %1406 = vadd.xlane.f32.xlu0 %v1405
        %v1407 = vpop.xlane.xlu0 %1406
        %v1408 = vsel %vm1141, %v1348, 0.0
        %1409 = vadd.xlane.f32.xlu0 %v1408
        %v1410 = vpop.xlane.xlu0 %1409
        %v1411 = vsel %vm1141, %v1349, 0.0
        %1412 = vadd.xlane.f32.xlu0 %v1411
        %v1413 = vpop.xlane.xlu0 %1412
        %v1414 = vsel %vm1141, %v1350, 0.0
        %1415 = vadd.xlane.f32.xlu0 %v1414
        %v1416 = vpop.xlane.xlu0 %1415
        %v1417 = vsel %vm1141, %v1351, 0.0
        %1418 = vadd.xlane.f32.xlu0 %v1417
        %v1419 = vpop.xlane.xlu0 %1418
        %v1420 = vsel %vm1141, %v1352, 0.0
        %1421 = vadd.xlane.f32.xlu0 %v1420
        %v1422 = vpop.xlane.xlu0 %1421
        %v1423 = vsel %vm1141, %v1353, 0.0
        %1424 = vadd.xlane.f32.xlu0 %v1423
        %v1425 = vpop.xlane.xlu0 %1424
        %v1426 = vsel %vm1141, %v1354, 0.0
        %1427 = vadd.xlane.f32.xlu0 %v1426
        %v1428 = vpop.xlane.xlu0 %1427
        %v1429 = vsel %vm1141, %v1355, 0.0
        %1430 = vadd.xlane.f32.xlu0 %v1429
        %v1431 = vpop.xlane.xlu0 %1430
        %v1432 = vsel %vm1141, %v1356, 0.0
        %1433 = vadd.xlane.f32.xlu0 %v1432
        %v1434 = vpop.xlane.xlu0 %1433
        %v1435 = vsel %vm1141, %v1357, 0.0
        %1436 = vadd.xlane.f32.xlu0 %v1435
        %v1437 = vpop.xlane.xlu0 %1436
        %v1438 = vsel %vm1141, %v1358, 0.0
        %1439 = vadd.xlane.f32.xlu0 %v1438
        %v1440 = vpop.xlane.xlu0 %1439
        %v1441 = vsel %vm1141, %v1359, 0.0
        %1442 = vadd.xlane.f32.xlu0 %v1441
        %v1443 = vpop.xlane.xlu0 %1442
        %v1444 = vsel %vm1141, %v1360, 0.0
        %1445 = vadd.xlane.f32.xlu0 %v1444
        %v1446 = vpop.xlane.xlu0 %1445
        %v1447 = vsel %vm1141, %v1361, 0.0
        %1448 = vadd.xlane.f32.xlu0 %v1447
        %v1449 = vpop.xlane.xlu0 %1448
        %v1450 = vsel %vm1141, %v1362, 0.0
        %1451 = vadd.xlane.f32.xlu0 %v1450
        %v1452 = vpop.xlane.xlu0 %1451
        %v1453 = vsel %vm1141, %v1363, 0.0
        %1454 = vadd.xlane.f32.xlu0 %v1453
        %v1455 = vpop.xlane.xlu0 %1454
        %v1456 = vsel %vm1141, %v1364, 0.0
        %1457 = vadd.xlane.f32.xlu0 %v1456
        %v1458 = vpop.xlane.xlu0 %1457
        %v1459 = vsel %vm1141, %v1365, 0.0
        %1460 = vadd.xlane.f32.xlu0 %v1459
        %v1461 = vpop.xlane.xlu0 %1460
        %v1462 = vadd.f32 %v1368, 1e-12
        %v1463 = vadd.f32 %v1371, 1e-12
        %v1464 = vadd.f32 %v1374, 1e-12
        %v1465 = vadd.f32 %v1377, 1e-12
        %v1466 = vadd.f32 %v1380, 1e-12
        %v1467 = vadd.f32 %v1383, 1e-12
        %v1468 = vadd.f32 %v1386, 1e-12
        %v1469 = vadd.f32 %v1389, 1e-12
        %v1470 = vadd.f32 %v1392, 1e-12
        %v1471 = vadd.f32 %v1395, 1e-12
        %v1472 = vadd.f32 %v1398, 1e-12
        %v1473 = vadd.f32 %v1401, 1e-12
        %v1474 = vadd.f32 %v1404, 1e-12
        %v1475 = vadd.f32 %v1407, 1e-12
        %v1476 = vadd.f32 %v1410, 1e-12
        %v1477 = vadd.f32 %v1413, 1e-12
        %v1478 = vadd.f32 %v1416, 1e-12
        %v1479 = vadd.f32 %v1419, 1e-12
        %v1480 = vadd.f32 %v1422, 1e-12
        %v1481 = vadd.f32 %v1425, 1e-12
        %v1482 = vadd.f32 %v1428, 1e-12
        %v1483 = vadd.f32 %v1431, 1e-12
        %v1484 = vadd.f32 %v1434, 1e-12
        %v1485 = vadd.f32 %v1437, 1e-12
        %v1486 = vadd.f32 %v1440, 1e-12
        %v1487 = vadd.f32 %v1443, 1e-12
        %v1488 = vadd.f32 %v1446, 1e-12
        %v1489 = vadd.f32 %v1449, 1e-12
        %v1490 = vadd.f32 %v1452, 1e-12
        %v1491 = vadd.f32 %v1455, 1e-12
        %v1492 = vadd.f32 %v1458, 1e-12
        %v1493 = vadd.f32 %v1461, 1e-12
        %v1494 = vrsqrt.pop %v1462
        %v1495 = vrsqrt.pop %v1463
        %v1496 = vrsqrt.pop %v1464
        %v1497 = vrsqrt.pop %v1465
        %v1498 = vrsqrt.pop %v1466
        %v1499 = vrsqrt.pop %v1467
        %v1500 = vrsqrt.pop %v1468
        %v1501 = vrsqrt.pop %v1469
        %v1502 = vrsqrt.pop %v1470
        %v1503 = vrsqrt.pop %v1471
        %v1504 = vrsqrt.pop %v1472
        %v1505 = vrsqrt.pop %v1473
        %v1506 = vrsqrt.pop %v1474
        %v1507 = vrsqrt.pop %v1475
        %v1508 = vrsqrt.pop %v1476
        %v1509 = vrsqrt.pop %v1477
        %v1510 = vrsqrt.pop %v1478
        %v1511 = vrsqrt.pop %v1479
        %v1512 = vrsqrt.pop %v1480
        %v1513 = vrsqrt.pop %v1481
        %v1514 = vrsqrt.pop %v1482
        %v1515 = vrsqrt.pop %v1483
        %v1516 = vrsqrt.pop %v1484
        %v1517 = vrsqrt.pop %v1485
        %v1518 = vrsqrt.pop %v1486
        %v1519 = vrsqrt.pop %v1487
        %v1520 = vrsqrt.pop %v1488
        %v1521 = vrsqrt.pop %v1489
        %v1522 = vrsqrt.pop %v1490
        %v1523 = vrsqrt.pop %v1491
        %v1524 = vrsqrt.pop %v1492
        %v1525 = vrsqrt.pop %v1493
        %v1526 = vmul.f32 %v790, %v1494
        %v1527 = vmul.f32 %v793, %v1495
        %v1528 = vmul.f32 %v798, %v1496
        %v1529 = vmul.f32 %v801, %v1497
        %v1530 = vmul.f32 %v806, %v1498
        %v1531 = vmul.f32 %v809, %v1499
        %v1532 = vmul.f32 %v814, %v1500
        %v1533 = vmul.f32 %v817, %v1501
        %v1534 = vmul.f32 %v822, %v1502
        %v1535 = vmul.f32 %v825, %v1503
        %v1536 = vmul.f32 %v830, %v1504
        %v1537 = vmul.f32 %v833, %v1505
        %v1538 = vmul.f32 %v838, %v1506
        %v1539 = vmul.f32 %v841, %v1507
        %v1540 = vmul.f32 %v846, %v1508
        %v1541 = vmul.f32 %v849, %v1509
        %v1542 = vmul.f32 %v854, %v1510
        %v1543 = vmul.f32 %v857, %v1511
        %v1544 = vmul.f32 %v862, %v1512
        %v1545 = vmul.f32 %v865, %v1513
        %v1546 = vmul.f32 %v870, %v1514
        %v1547 = vmul.f32 %v873, %v1515
        %v1548 = vmul.f32 %v878, %v1516
        %v1549 = vmul.f32 %v881, %v1517
        %v1550 = vmul.f32 %v886, %v1518
        %v1551 = vmul.f32 %v889, %v1519
        %v1552 = vmul.f32 %v894, %v1520
        %v1553 = vmul.f32 %v897, %v1521
        %v1554 = vmul.f32 %v902, %v1522
        %v1555 = vmul.f32 %v905, %v1523
        %v1556 = vmul.f32 %v910, %v1524
        %v1557 = vmul.f32 %v913, %v1525
        %v1558 = vsel %vm1141, %v1526, 0.0
        %v1559 = vsel %vm1141, %v1527, 0.0
        %v1560 = vadd.f32 %v1558, %v1559
        %v1561 = vsel %vm1141, %v1528, 0.0
        %v1562 = vadd.f32 %v1560, %v1561
        %v1563 = vsel %vm1141, %v1529, 0.0
        %v1564 = vadd.f32 %v1562, %v1563
        %v1565 = vsel %vm1141, %v1530, 0.0
        %v1566 = vadd.f32 %v1564, %v1565
        %v1567 = vsel %vm1141, %v1531, 0.0
        %v1568 = vadd.f32 %v1566, %v1567
        %v1569 = vsel %vm1141, %v1532, 0.0
        %v1570 = vadd.f32 %v1568, %v1569
        %v1571 = vsel %vm1141, %v1533, 0.0
        %v1572 = vadd.f32 %v1570, %v1571
        %v1573 = vsel %vm1141, %v1534, 0.0
        %v1574 = vadd.f32 %v1572, %v1573
        %v1575 = vsel %vm1141, %v1535, 0.0
        %v1576 = vadd.f32 %v1574, %v1575
        %v1577 = vsel %vm1141, %v1536, 0.0
        %v1578 = vadd.f32 %v1576, %v1577
        %v1579 = vsel %vm1141, %v1537, 0.0
        %v1580 = vadd.f32 %v1578, %v1579
        %v1581 = vsel %vm1141, %v1538, 0.0
        %v1582 = vadd.f32 %v1580, %v1581
        %v1583 = vsel %vm1141, %v1539, 0.0
        %v1584 = vadd.f32 %v1582, %v1583
        %v1585 = vsel %vm1141, %v1540, 0.0
        %v1586 = vadd.f32 %v1584, %v1585
        %v1587 = vsel %vm1141, %v1541, 0.0
        %v1588 = vadd.f32 %v1586, %v1587
        %v1589 = vsel %vm1141, %v1542, 0.0
        %v1590 = vadd.f32 %v1588, %v1589
        %v1591 = vsel %vm1141, %v1543, 0.0
        %v1592 = vadd.f32 %v1590, %v1591
        %v1593 = vsel %vm1141, %v1544, 0.0
        %v1594 = vadd.f32 %v1592, %v1593
        %v1595 = vsel %vm1141, %v1545, 0.0
        %v1596 = vadd.f32 %v1594, %v1595
        %v1597 = vsel %vm1141, %v1546, 0.0
        %v1598 = vadd.f32 %v1596, %v1597
        %v1599 = vsel %vm1141, %v1547, 0.0
        %v1600 = vadd.f32 %v1598, %v1599
        %v1601 = vsel %vm1141, %v1548, 0.0
        %v1602 = vadd.f32 %v1600, %v1601
        %v1603 = vsel %vm1141, %v1549, 0.0
        %v1604 = vadd.f32 %v1602, %v1603
        %v1605 = vsel %vm1141, %v1550, 0.0
        %v1606 = vadd.f32 %v1604, %v1605
        %v1607 = vsel %vm1141, %v1551, 0.0
        %v1608 = vadd.f32 %v1606, %v1607
        %v1609 = vsel %vm1141, %v1552, 0.0
        %v1610 = vadd.f32 %v1608, %v1609
        %v1611 = vsel %vm1141, %v1553, 0.0
        %v1612 = vadd.f32 %v1610, %v1611
        %v1613 = vsel %vm1141, %v1554, 0.0
        %v1614 = vadd.f32 %v1612, %v1613
        %v1615 = vsel %vm1141, %v1555, 0.0
        %v1616 = vadd.f32 %v1614, %v1615
        %v1617 = vsel %vm1141, %v1556, 0.0
        %v1618 = vadd.f32 %v1616, %v1617
        %v1619 = vsel %vm1141, %v1557, 0.0
        %v1620 = vadd.f32 %v1618, %v1619
        %v1621 = vrot.slane %v1620, 4
        %v1622 = vadd.f32 %v1620, %v1621
        %v1623 = vrot.slane %v1622, 2
        %v1624 = vadd.f32 %v1622, %v1623
        %v1625 = vrot.slane %v1624, 1
        %v1626 = vadd.f32 %v1624, %v1625
        %v1627 = vadd.f32 %v1626, 1e-06
        %v1628 = vmul.f32 %v1302, %v1627
        %v1629 = vmul.f32 %v1303, %v1627
        %v1630 = vmul.f32 %v1304, %v1627
        %v1631 = vmul.f32 %v1305, %v1627
        %v1632 = vmul.f32 %v1306, %v1627
        %v1633 = vmul.f32 %v1307, %v1627
        %v1634 = vmul.f32 %v1308, %v1627
        %v1635 = vmul.f32 %v1309, %v1627
        %v1636 = vmul.f32 %v1310, %v1627
        %v1637 = vmul.f32 %v1311, %v1627
        %v1638 = vmul.f32 %v1312, %v1627
        %v1639 = vmul.f32 %v1313, %v1627
        %v1640 = vmul.f32 %v1314, %v1627
        %v1641 = vmul.f32 %v1315, %v1627
        %v1642 = vmul.f32 %v1316, %v1627
        %v1643 = vmul.f32 %v1317, %v1627
        %v1644 = vmul.f32 %v1318, %v1627
        %v1645 = vmul.f32 %v1319, %v1627
        %v1646 = vmul.f32 %v1320, %v1627
        %v1647 = vmul.f32 %v1321, %v1627
        %v1648 = vmul.f32 %v1322, %v1627
        %v1649 = vmul.f32 %v1323, %v1627
        %v1650 = vmul.f32 %v1324, %v1627
        %v1651 = vmul.f32 %v1325, %v1627
        %v1652 = vmul.f32 %v1326, %v1627
        %v1653 = vmul.f32 %v1327, %v1627
        %v1654 = vmul.f32 %v1328, %v1627
        %v1655 = vmul.f32 %v1329, %v1627
        %v1656 = vmul.f32 %v1330, %v1627
        %v1657 = vmul.f32 %v1331, %v1627
        %v1658 = vmul.f32 %v1332, %v1627
        %v1659 = vmul.f32 %v1333, %v1627
        %v1660 = vsel %vm1141, %v1628, 0.0
        %1661 = vadd.xlane.f32.xlu0 %v1660
        %v1662 = vpop.xlane.xlu0 %1661
        %v1663 = vsel %vm1141, %v1629, 0.0
        %1664 = vadd.xlane.f32.xlu0 %v1663
        %v1665 = vpop.xlane.xlu0 %1664
        %v1666 = vsel %vm1141, %v1630, 0.0
        %1667 = vadd.xlane.f32.xlu0 %v1666
        %v1668 = vpop.xlane.xlu0 %1667
        %v1669 = vsel %vm1141, %v1631, 0.0
        %1670 = vadd.xlane.f32.xlu0 %v1669
        %v1671 = vpop.xlane.xlu0 %1670
        %v1672 = vsel %vm1141, %v1632, 0.0
        %1673 = vadd.xlane.f32.xlu0 %v1672
        %v1674 = vpop.xlane.xlu0 %1673
        %v1675 = vsel %vm1141, %v1633, 0.0
        %1676 = vadd.xlane.f32.xlu0 %v1675
        %v1677 = vpop.xlane.xlu0 %1676
        %v1678 = vsel %vm1141, %v1634, 0.0
        %1679 = vadd.xlane.f32.xlu0 %v1678
        %v1680 = vpop.xlane.xlu0 %1679
        %v1681 = vsel %vm1141, %v1635, 0.0
        %1682 = vadd.xlane.f32.xlu0 %v1681
        %v1683 = vpop.xlane.xlu0 %1682
        %v1684 = vsel %vm1141, %v1636, 0.0
        %1685 = vadd.xlane.f32.xlu0 %v1684
        %v1686 = vpop.xlane.xlu0 %1685
        %v1687 = vsel %vm1141, %v1637, 0.0
        %1688 = vadd.xlane.f32.xlu0 %v1687
        %v1689 = vpop.xlane.xlu0 %1688
        %v1690 = vsel %vm1141, %v1638, 0.0
        %1691 = vadd.xlane.f32.xlu0 %v1690
        %v1692 = vpop.xlane.xlu0 %1691
        %v1693 = vsel %vm1141, %v1639, 0.0
        %1694 = vadd.xlane.f32.xlu0 %v1693
        %v1695 = vpop.xlane.xlu0 %1694
        %v1696 = vsel %vm1141, %v1640, 0.0
        %1697 = vadd.xlane.f32.xlu0 %v1696
        %v1698 = vpop.xlane.xlu0 %1697
        %v1699 = vsel %vm1141, %v1641, 0.0
        %1700 = vadd.xlane.f32.xlu0 %v1699
        %v1701 = vpop.xlane.xlu0 %1700
        %v1702 = vsel %vm1141, %v1642, 0.0
        %1703 = vadd.xlane.f32.xlu0 %v1702
        %v1704 = vpop.xlane.xlu0 %1703
        %v1705 = vsel %vm1141, %v1643, 0.0
        %1706 = vadd.xlane.f32.xlu0 %v1705
        %v1707 = vpop.xlane.xlu0 %1706
        %v1708 = vsel %vm1141, %v1644, 0.0
        %1709 = vadd.xlane.f32.xlu0 %v1708
        %v1710 = vpop.xlane.xlu0 %1709
        %v1711 = vsel %vm1141, %v1645, 0.0
        %1712 = vadd.xlane.f32.xlu0 %v1711
        %v1713 = vpop.xlane.xlu0 %1712
        %v1714 = vsel %vm1141, %v1646, 0.0
        %1715 = vadd.xlane.f32.xlu0 %v1714
        %v1716 = vpop.xlane.xlu0 %1715
        %v1717 = vsel %vm1141, %v1647, 0.0
        %1718 = vadd.xlane.f32.xlu0 %v1717
        %v1719 = vpop.xlane.xlu0 %1718
        %v1720 = vsel %vm1141, %v1648, 0.0
        %1721 = vadd.xlane.f32.xlu0 %v1720
        %v1722 = vpop.xlane.xlu0 %1721
        %v1723 = vsel %vm1141, %v1649, 0.0
        %1724 = vadd.xlane.f32.xlu0 %v1723
        %v1725 = vpop.xlane.xlu0 %1724
        %v1726 = vsel %vm1141, %v1650, 0.0
        %1727 = vadd.xlane.f32.xlu0 %v1726
        %v1728 = vpop.xlane.xlu0 %1727
        %v1729 = vsel %vm1141, %v1651, 0.0
        %1730 = vadd.xlane.f32.xlu0 %v1729
        %v1731 = vpop.xlane.xlu0 %1730
        %v1732 = vsel %vm1141, %v1652, 0.0
        %1733 = vadd.xlane.f32.xlu0 %v1732
        %v1734 = vpop.xlane.xlu0 %1733
        %v1735 = vsel %vm1141, %v1653, 0.0
        %1736 = vadd.xlane.f32.xlu0 %v1735
        %v1737 = vpop.xlane.xlu0 %1736
        %v1738 = vsel %vm1141, %v1654, 0.0
        %1739 = vadd.xlane.f32.xlu0 %v1738
        %v1740 = vpop.xlane.xlu0 %1739
        %v1741 = vsel %vm1141, %v1655, 0.0
        %1742 = vadd.xlane.f32.xlu0 %v1741
        %v1743 = vpop.xlane.xlu0 %1742
        %v1744 = vsel %vm1141, %v1656, 0.0
        %1745 = vadd.xlane.f32.xlu0 %v1744
        %v1746 = vpop.xlane.xlu0 %1745
        %v1747 = vsel %vm1141, %v1657, 0.0
        %1748 = vadd.xlane.f32.xlu0 %v1747
        %v1749 = vpop.xlane.xlu0 %1748
        %v1750 = vsel %vm1141, %v1658, 0.0
        %1751 = vadd.xlane.f32.xlu0 %v1750
        %v1752 = vpop.xlane.xlu0 %1751
        %v1753 = vsel %vm1141, %v1659, 0.0
        %1754 = vadd.xlane.f32.xlu0 %v1753
        %v1755 = vpop.xlane.xlu0 %1754
        %v1756 = vadd.f32 %v1662, 256.0
        %v1757 = vadd.f32 %v1665, 256.0
        %v1758 = vadd.f32 %v1668, 256.0
        %v1759 = vadd.f32 %v1671, 256.0
        %v1760 = vadd.f32 %v1674, 256.0
        %v1761 = vadd.f32 %v1677, 256.0
        %v1762 = vadd.f32 %v1680, 256.0
        %v1763 = vadd.f32 %v1683, 256.0
        %v1764 = vadd.f32 %v1686, 256.0
        %v1765 = vadd.f32 %v1689, 256.0
        %v1766 = vadd.f32 %v1692, 256.0
        %v1767 = vadd.f32 %v1695, 256.0
        %v1768 = vadd.f32 %v1698, 256.0
        %v1769 = vadd.f32 %v1701, 256.0
        %v1770 = vadd.f32 %v1704, 256.0
        %v1771 = vadd.f32 %v1707, 256.0
        %v1772 = vadd.f32 %v1710, 256.0
        %v1773 = vadd.f32 %v1713, 256.0
        %v1774 = vadd.f32 %v1716, 256.0
        %v1775 = vadd.f32 %v1719, 256.0
        %v1776 = vadd.f32 %v1722, 256.0
        %v1777 = vadd.f32 %v1725, 256.0
        %v1778 = vadd.f32 %v1728, 256.0
        %v1779 = vadd.f32 %v1731, 256.0
        %v1780 = vadd.f32 %v1734, 256.0
        %v1781 = vadd.f32 %v1737, 256.0
        %v1782 = vadd.f32 %v1740, 256.0
        %v1783 = vadd.f32 %v1743, 256.0
        %v1784 = vadd.f32 %v1746, 256.0
        %v1785 = vadd.f32 %v1749, 256.0
        %v1786 = vadd.f32 %v1752, 256.0
        %v1787 = vadd.f32 %v1755, 256.0
        %v1788 = vrcp.pop %v1756
        %v1789 = vrcp.pop %v1757
        %v1790 = vrcp.pop %v1758
        %v1791 = vrcp.pop %v1759
        %v1792 = vrcp.pop %v1760
        %v1793 = vrcp.pop %v1761
        %v1794 = vrcp.pop %v1762
        %v1795 = vrcp.pop %v1763
        %v1796 = vrcp.pop %v1764
        %v1797 = vrcp.pop %v1765
        %v1798 = vrcp.pop %v1766
        %v1799 = vrcp.pop %v1767
        %v1800 = vrcp.pop %v1768
        %v1801 = vrcp.pop %v1769
        %v1802 = vrcp.pop %v1770
        %v1803 = vrcp.pop %v1771
        %v1804 = vrcp.pop %v1772
        %v1805 = vrcp.pop %v1773
        %v1806 = vrcp.pop %v1774
        %v1807 = vrcp.pop %v1775
        %v1808 = vrcp.pop %v1776
        %v1809 = vrcp.pop %v1777
        %v1810 = vrcp.pop %v1778
        %v1811 = vrcp.pop %v1779
        %v1812 = vrcp.pop %v1780
        %v1813 = vrcp.pop %v1781
        %v1814 = vrcp.pop %v1782
        %v1815 = vrcp.pop %v1783
        %v1816 = vrcp.pop %v1784
        %v1817 = vrcp.pop %v1785
        %v1818 = vrcp.pop %v1786
        %v1819 = vrcp.pop %v1787
        %v1820 = vsel %vm465, %v983, 0.0
        %v1821 = vsel %vm465, %v986, 0.0
        %v1822 = vadd.f32 %v1820, %v1821
        %v1823 = vsel %vm465, %v991, 0.0
        %v1824 = vadd.f32 %v1822, %v1823
        %v1825 = vsel %vm465, %v994, 0.0
        %v1826 = vadd.f32 %v1824, %v1825
        %v1827 = vsel %vm465, %v999, 0.0
        %v1828 = vadd.f32 %v1826, %v1827
        %v1829 = vsel %vm465, %v1002, 0.0
        %v1830 = vadd.f32 %v1828, %v1829
        %v1831 = vsel %vm465, %v1007, 0.0
        %v1832 = vadd.f32 %v1830, %v1831
        %v1833 = vsel %vm465, %v1010, 0.0
        %v1834 = vadd.f32 %v1832, %v1833
        %v1835 = vsel %vm465, %v1015, 0.0
        %v1836 = vadd.f32 %v1834, %v1835
        %v1837 = vsel %vm465, %v1018, 0.0
        %v1838 = vadd.f32 %v1836, %v1837
        %v1839 = vsel %vm465, %v1023, 0.0
        %v1840 = vadd.f32 %v1838, %v1839
        %v1841 = vsel %vm465, %v1026, 0.0
        %v1842 = vadd.f32 %v1840, %v1841
        %v1843 = vsel %vm465, %v1031, 0.0
        %v1844 = vadd.f32 %v1842, %v1843
        %v1845 = vsel %vm465, %v1034, 0.0
        %v1846 = vadd.f32 %v1844, %v1845
        %v1847 = vsel %vm465, %v1039, 0.0
        %v1848 = vadd.f32 %v1846, %v1847
        %v1849 = vsel %vm465, %v1042, 0.0
        %v1850 = vadd.f32 %v1848, %v1849
        %v1851 = vsel %vm465, %v1047, 0.0
        %v1852 = vadd.f32 %v1850, %v1851
        %v1853 = vsel %vm465, %v1050, 0.0
        %v1854 = vadd.f32 %v1852, %v1853
        %v1855 = vsel %vm465, %v1055, 0.0
        %v1856 = vadd.f32 %v1854, %v1855
        %v1857 = vsel %vm465, %v1058, 0.0
        %v1858 = vadd.f32 %v1856, %v1857
        %v1859 = vsel %vm465, %v1063, 0.0
        %v1860 = vadd.f32 %v1858, %v1859
        %v1861 = vsel %vm465, %v1066, 0.0
        %v1862 = vadd.f32 %v1860, %v1861
        %v1863 = vsel %vm465, %v1071, 0.0
        %v1864 = vadd.f32 %v1862, %v1863
        %v1865 = vsel %vm465, %v1074, 0.0
        %v1866 = vadd.f32 %v1864, %v1865
        %v1867 = vsel %vm465, %v1079, 0.0
        %v1868 = vadd.f32 %v1866, %v1867
        %v1869 = vsel %vm465, %v1082, 0.0
        %v1870 = vadd.f32 %v1868, %v1869
        %v1871 = vsel %vm465, %v1087, 0.0
        %v1872 = vadd.f32 %v1870, %v1871
        %v1873 = vsel %vm465, %v1090, 0.0
        %v1874 = vadd.f32 %v1872, %v1873
        %v1875 = vsel %vm465, %v1095, 0.0
        %v1876 = vadd.f32 %v1874, %v1875
        %v1877 = vsel %vm465, %v1098, 0.0
        %v1878 = vadd.f32 %v1876, %v1877
        %v1879 = vsel %vm465, %v1103, 0.0
        %v1880 = vadd.f32 %v1878, %v1879
        %v1881 = vsel %vm465, %v1106, 0.0
        %v1882 = vadd.f32 %v1880, %v1881
        %v1883 = vrot.slane %v1882, 4
        %v1884 = vadd.f32 %v1882, %v1883
        %v1885 = vrot.slane %v1884, 2
        %v1886 = vadd.f32 %v1884, %v1885
        %v1887 = vrot.slane %v1886, 1
        %v1888 = vadd.f32 %v1886, %v1887
        %1889 = vxpose.xlu0.b32.start [1/16] %v1526, 128
        %1890 = vxpose.xlu0.b32.cont [2/16] %v1527, 128
        %1891 = vxpose.xlu0.b32.cont [3/16] %v1528, 128
        %1892 = vxpose.xlu0.b32.cont [4/16] %v1529, 128
        %1893 = vxpose.xlu0.b32.cont [5/16] %v1530, 128
        %1894 = vxpose.xlu0.b32.cont [6/16] %v1531, 128
        %1895 = vxpose.xlu0.b32.cont [7/16] %v1532, 128
        %1896 = vxpose.xlu0.b32.cont [8/16] %v1533, 128
        %1897 = vxpose.xlu0.b32.cont [9/16] %v1534, 128
        %1898 = vxpose.xlu0.b32.cont [10/16] %v1535, 128
        %1899 = vxpose.xlu0.b32.cont [11/16] %v1536, 128
        %1900 = vxpose.xlu0.b32.cont [12/16] %v1537, 128
        %1901 = vxpose.xlu0.b32.cont [13/16] %v1538, 128
        %1902 = vxpose.xlu0.b32.cont [14/16] %v1539, 128
        %1903 = vxpose.xlu0.b32.cont [15/16] %v1540, 128
        %1904 = vxpose.xlu0.b32.end [16/16] %v1541, 128
        %v1905 = vpop.trf.xlu0
        %v1906 = vpop.trf.xlu0
        %v1907 = vpop.trf.xlu0
        %v1908 = vpop.trf.xlu0
        %v1909 = vpop.trf.xlu0
        %v1910 = vpop.trf.xlu0
        %v1911 = vpop.trf.xlu0
        %v1912 = vpop.trf.xlu0
        %v1913 = vpop.trf.xlu0
        %v1914 = vpop.trf.xlu0
        %v1915 = vpop.trf.xlu0
        %v1916 = vpop.trf.xlu0
        %v1917 = vpop.trf.xlu0
        %v1918 = vpop.trf.xlu0
        %v1919 = vpop.trf.xlu0
        %v1920 = vpop.trf.xlu0
        %1921 = vxpose.xlu0.b32.start [1/16] %v1542, 128
        %1922 = vxpose.xlu0.b32.cont [2/16] %v1543, 128
        %1923 = vxpose.xlu0.b32.cont [3/16] %v1544, 128
        %1924 = vxpose.xlu0.b32.cont [4/16] %v1545, 128
        %1925 = vxpose.xlu0.b32.cont [5/16] %v1546, 128
        %1926 = vxpose.xlu0.b32.cont [6/16] %v1547, 128
        %1927 = vxpose.xlu0.b32.cont [7/16] %v1548, 128
        %1928 = vxpose.xlu0.b32.cont [8/16] %v1549, 128
        %1929 = vxpose.xlu0.b32.cont [9/16] %v1550, 128
        %1930 = vxpose.xlu0.b32.cont [10/16] %v1551, 128
        %1931 = vxpose.xlu0.b32.cont [11/16] %v1552, 128
        %1932 = vxpose.xlu0.b32.cont [12/16] %v1553, 128
        %1933 = vxpose.xlu0.b32.cont [13/16] %v1554, 128
        %1934 = vxpose.xlu0.b32.cont [14/16] %v1555, 128
        %1935 = vxpose.xlu0.b32.cont [15/16] %v1556, 128
        %1936 = vxpose.xlu0.b32.end [16/16] %v1557, 128
        %v1937 = vpop.trf.xlu0
        %v1938 = vpop.trf.xlu0
        %v1939 = vpop.trf.xlu0
        %v1940 = vpop.trf.xlu0
        %v1941 = vpop.trf.xlu0
        %v1942 = vpop.trf.xlu0
        %v1943 = vpop.trf.xlu0
        %v1944 = vpop.trf.xlu0
        %v1945 = vpop.trf.xlu0
        %v1946 = vpop.trf.xlu0
        %v1947 = vpop.trf.xlu0
        %v1948 = vpop.trf.xlu0
        %v1949 = vpop.trf.xlu0
        %v1950 = vpop.trf.xlu0
        %v1951 = vpop.trf.xlu0
        %v1952 = vpop.trf.xlu0
        %1953 = vmatprep.subr.mxu0 0.0
        %1954 = vmatpush1.msra.mxu0 %v983
        %1955 = vmatprep.subr.mxu0 0.0
        %1956 = vmatpush1.msra.mxu0 %v986
        %1957 = vmatprep.subr.mxu0 0.0
        %1958 = vmatpush1.msra.mxu0 %v991
        %1959 = vmatprep.subr.mxu0 0.0
        %1960 = vmatpush1.msra.mxu0 %v994
        %1961 = vmatprep.subr.mxu0 0.0
        %1962 = vmatpush1.msra.mxu0 %v999
        %1963 = vmatprep.subr.mxu0 0.0
        %1964 = vmatpush1.msra.mxu0 %v1002
        %1965 = vmatprep.subr.mxu0 0.0
        %1966 = vmatpush1.msra.mxu0 %v1007
        %1967 = vmatprep.subr.mxu0 0.0
        %1968 = vmatpush1.msra.mxu0 %v1010
        %1969 = vmatprep.subr.mxu0 0.0
        %1970 = vmatpush1.msra.mxu0 %v1015
        %1971 = vmatprep.subr.mxu0 0.0
        %1972 = vmatpush1.msra.mxu0 %v1018
        %1973 = vmatprep.subr.mxu0 0.0
        %1974 = vmatpush1.msra.mxu0 %v1023
        %1975 = vmatprep.subr.mxu0 0.0
        %1976 = vmatpush1.msra.mxu0 %v1026
        %1977 = vmatprep.subr.mxu0 0.0
        %1978 = vmatpush1.msra.mxu0 %v1031
        %1979 = vmatprep.subr.mxu0 0.0
        %1980 = vmatpush1.msra.mxu0 %v1034
        %1981 = vmatprep.subr.mxu0 0.0
        %1982 = vmatpush1.msra.mxu0 %v1039
        %1983 = vmatprep.subr.mxu0 0.0
        %1984 = vmatpush1.msra.mxu0 %v1042
        %1985 = vmatprep.subr.mxu0 0.0
        %1986 = vmatpush1.msra.mxu0 %v1047
        %1987 = vmatprep.subr.mxu0 0.0
        %1988 = vmatpush1.msra.mxu0 %v1050
        %1989 = vmatprep.subr.mxu0 0.0
        %1990 = vmatpush1.msra.mxu0 %v1055
        %1991 = vmatprep.subr.mxu0 0.0
        %1992 = vmatpush1.msra.mxu0 %v1058
        %1993 = vmatprep.subr.mxu0 0.0
        %1994 = vmatpush1.msra.mxu0 %v1063
        %1995 = vmatprep.subr.mxu0 0.0
        %1996 = vmatpush1.msra.mxu0 %v1066
        %1997 = vmatprep.subr.mxu0 0.0
        %1998 = vmatpush1.msra.mxu0 %v1071
        %1999 = vmatprep.subr.mxu0 0.0
        %2000 = vmatpush1.msra.mxu0 %v1074
        %2001 = vmatprep.subr.mxu0 0.0
        %2002 = vmatpush1.msra.mxu0 %v1079
        %2003 = vmatprep.subr.mxu0 0.0
        %2004 = vmatpush1.msra.mxu0 %v1082
        %2005 = vmatprep.subr.mxu0 0.0
        %2006 = vmatpush1.msra.mxu0 %v1087
        %2007 = vmatprep.subr.mxu0 0.0
        %2008 = vmatpush1.msra.mxu0 %v1090
        %2009 = vmatprep.subr.mxu0 0.0
        %2010 = vmatpush1.msra.mxu0 %v1095
        %2011 = vmatprep.subr.mxu0 0.0
        %2012 = vmatpush1.msra.mxu0 %v1098
        %2013 = vmatprep.subr.mxu0 0.0
        %2014 = vmatpush1.msra.mxu0 %v1103
        %2015 = vmatprep.subr.mxu0 0.0
        %2016 = vmatpush1.msra.mxu0 %v1106
        %2017 = vmatprep.mubr.f32.mxu0 %v1937
        %2018 = vmatmul.mubr.f32.gmra.mrb[0].mxu0 %v1905
        %v2019 = vpop.f32.mrb[0].mxu0
        %v2020 = vadd.f32 0.0, %v2019
        %v2021 = vpop.f32.mrb[0].mxu0
        %2022 = vdwg.mxu0
        %v2024 = vsel %vm1141, %v1302, 0
        %v2027 = vsel %vm1141, %v1303, 0
        %v2030 = vsel %vm1141, %v1304, 0
        %v2033 = vsel %vm1141, %v1305, 0
        %v2036 = vsel %vm1141, %v1306, 0
        %v2039 = vsel %vm1141, %v1307, 0
        %v2042 = vsel %vm1141, %v1308, 0
        %v2045 = vsel %vm1141, %v1309, 0
        %v2048 = vsel %vm1141, %v1310, 0
        %v2051 = vsel %vm1141, %v1311, 0
        %v2054 = vsel %vm1141, %v1312, 0
        %v2057 = vsel %vm1141, %v1313, 0
        %v2060 = vsel %vm1141, %v1314, 0
        %v2063 = vsel %vm1141, %v1315, 0
        %v2066 = vsel %vm1141, %v1316, 0
        %v2069 = vsel %vm1141, %v1317, 0
        %v2072 = vsel %vm1141, %v1318, 0
        %v2075 = vsel %vm1141, %v1319, 0
        %v2078 = vsel %vm1141, %v1320, 0
        %v2081 = vsel %vm1141, %v1321, 0
        %v2084 = vsel %vm1141, %v1322, 0
        %v2087 = vsel %vm1141, %v1323, 0
        %v2090 = vsel %vm1141, %v1324, 0
        %v2093 = vsel %vm1141, %v1325, 0
        %v2096 = vsel %vm1141, %v1326, 0
        %v2099 = vsel %vm1141, %v1327, 0
        %v2102 = vsel %vm1141, %v1328, 0
        %v2105 = vsel %vm1141, %v1329, 0
        %v2108 = vsel %vm1141, %v1330, 0
        %v2111 = vsel %vm1141, %v1331, 0
        %v2114 = vsel %vm1141, %v1332, 0
        %v2117 = vsel %vm1141, %v1333, 0
        %2119 = vmatprep.subr.mxu0 0.0
        %2120 = vmatpush1.msra.mxu0 %v2020
        %2121 = vmatprep.subr.mxu0 0.0
        %2122 = vmatpush1.msra.mxu0 0.0
        %2123 = vmatprep.subr.mxu0 0.0
        %2124 = vmatpush1.msra.mxu0 0.0
        %2125 = vmatprep.subr.mxu0 0.0
        %2126 = vmatpush1.msra.mxu0 0.0
        %2127 = vmatprep.subr.mxu0 0.0
        %2128 = vmatpush1.msra.mxu0 0.0
        %2129 = vmatprep.subr.mxu0 0.0
        %2130 = vmatpush1.msra.mxu0 0.0
        %2131 = vmatprep.subr.mxu0 0.0
        %2132 = vmatpush1.msra.mxu0 0.0
        %2133 = vmatprep.subr.mxu0 0.0
        %2134 = vmatpush1.msra.mxu0 0.0
        %2135 = vmatprep.subr.mxu0 0.0
        %2136 = vmatpush1.msra.mxu0 0.0
        %2137 = vmatprep.subr.mxu0 0.0
        %2138 = vmatpush1.msra.mxu0 0.0
        %2139 = vmatprep.subr.mxu0 0.0
        %2140 = vmatpush1.msra.mxu0 0.0
        %2141 = vmatprep.subr.mxu0 0.0
        %2142 = vmatpush1.msra.mxu0 0.0
        %2143 = vmatprep.subr.mxu0 0.0
        %2144 = vmatpush1.msra.mxu0 0.0
        %2145 = vmatprep.subr.mxu0 0.0
        %2146 = vmatpush1.msra.mxu0 0.0
        %2147 = vmatprep.subr.mxu0 0.0
        %2148 = vmatpush1.msra.mxu0 0.0
        %2149 = vmatprep.subr.mxu0 0.0
        %2150 = vmatpush1.msra.mxu0 0.0
        %2151 = vmatprep.subr.mxu0 0.0
        %2152 = vmatpush1.msra.mxu0 0.0
        %2153 = vmatprep.subr.mxu0 0.0
        %2154 = vmatpush1.msra.mxu0 0.0
        %2155 = vmatprep.subr.mxu0 0.0
        %2156 = vmatpush1.msra.mxu0 0.0
        %2157 = vmatprep.subr.mxu0 0.0
        %2158 = vmatpush1.msra.mxu0 0.0
        %2159 = vmatprep.subr.mxu0 0.0
        %2160 = vmatpush1.msra.mxu0 0.0
        %2161 = vmatprep.subr.mxu0 0.0
        %2162 = vmatpush1.msra.mxu0 0.0
        %2163 = vmatprep.subr.mxu0 0.0
        %2164 = vmatpush1.msra.mxu0 0.0
        %2165 = vmatprep.subr.mxu0 0.0
        %2166 = vmatpush1.msra.mxu0 0.0
        %2167 = vmatprep.subr.mxu0 0.0
        %2168 = vmatpush1.msra.mxu0 0.0
        %2169 = vmatprep.subr.mxu0 0.0
        %2170 = vmatpush1.msra.mxu0 0.0
        %2171 = vmatprep.subr.mxu0 0.0
        %2172 = vmatpush1.msra.mxu0 0.0
        %2173 = vmatprep.subr.mxu0 0.0
        %2174 = vmatpush1.msra.mxu0 0.0
        %2175 = vmatprep.subr.mxu0 0.0
        %2176 = vmatpush1.msra.mxu0 0.0
        %2177 = vmatprep.subr.mxu0 0.0
        %2178 = vmatpush1.msra.mxu0 0.0
        %2179 = vmatprep.subr.mxu0 0.0
        %2180 = vmatpush1.msra.mxu0 0.0
        %2181 = vmatprep.subr.mxu0 0.0
        %2182 = vmatpush1.msra.mxu0 0.0
        %2183 = vmatprep.mubr.f32.mxu0 0.0
        %2184 = vmatmul.mubr.f32.gmra.mrb[0].mxu0 %v2024
        %v2185 = vpop.f32.mrb[0].mxu0
        %v2186 = vadd.f32 0.0, %v2185
        %v2187 = vpop.f32.mrb[0].mxu0
        %2188 = vmatprep.mubr.f32.mxu0 0.0
        %2189 = vmatmul.mubr.f32.gmra.mrb[0].mxu0 %v2027
        %v2190 = vpop.f32.mrb[0].mxu0
        %v2191 = vadd.f32 0.0, %v2190
        %v2192 = vpop.f32.mrb[0].mxu0
        %2193 = vmatprep.mubr.f32.mxu0 0.0
        %2194 = vmatmul.mubr.f32.gmra.mrb[0].mxu0 %v2030
        %v2195 = vpop.f32.mrb[0].mxu0
        %v2196 = vadd.f32 0.0, %v2195
        %v2197 = vpop.f32.mrb[0].mxu0
        %2198 = vmatprep.mubr.f32.mxu0 0.0
        %2199 = vmatmul.mubr.f32.gmra.mrb[0].mxu0 %v2033
        %v2200 = vpop.f32.mrb[0].mxu0
        %v2201 = vadd.f32 0.0, %v2200
        %v2202 = vpop.f32.mrb[0].mxu0
        %2203 = vmatprep.mubr.f32.mxu0 0.0
        %2204 = vmatmul.mubr.f32.gmra.mrb[0].mxu0 %v2036
        %v2205 = vpop.f32.mrb[0].mxu0
        %v2206 = vadd.f32 0.0, %v2205
        %v2207 = vpop.f32.mrb[0].mxu0
        %2208 = vmatprep.mubr.f32.mxu0 0.0
        %2209 = vmatmul.mubr.f32.gmra.mrb[0].mxu0 %v2039
        %v2210 = vpop.f32.mrb[0].mxu0
        %v2211 = vadd.f32 0.0, %v2210
        %v2212 = vpop.f32.mrb[0].mxu0
        %2213 = vmatprep.mubr.f32.mxu0 0.0
        %2214 = vmatmul.mubr.f32.gmra.mrb[0].mxu0 %v2042
        %v2215 = vpop.f32.mrb[0].mxu0
        %v2216 = vadd.f32 0.0, %v2215
        %v2217 = vpop.f32.mrb[0].mxu0
        %2218 = vmatprep.mubr.f32.mxu0 0.0
        %2219 = vmatmul.mubr.f32.gmra.mrb[0].mxu0 %v2045
        %v2220 = vpop.f32.mrb[0].mxu0
        %v2221 = vadd.f32 0.0, %v2220
        %v2222 = vpop.f32.mrb[0].mxu0
        %2223 = vmatprep.mubr.f32.mxu0 0.0
        %2224 = vmatmul.mubr.f32.gmra.mrb[0].mxu0 %v2048
        %v2225 = vpop.f32.mrb[0].mxu0
        %v2226 = vadd.f32 0.0, %v2225
        %v2227 = vpop.f32.mrb[0].mxu0
        %2228 = vmatprep.mubr.f32.mxu0 0.0
        %2229 = vmatmul.mubr.f32.gmra.mrb[0].mxu0 %v2051
        %v2230 = vpop.f32.mrb[0].mxu0
        %v2231 = vadd.f32 0.0, %v2230
        %v2232 = vpop.f32.mrb[0].mxu0
        %2233 = vmatprep.mubr.f32.mxu0 0.0
        %2234 = vmatmul.mubr.f32.gmra.mrb[0].mxu0 %v2054
        %v2235 = vpop.f32.mrb[0].mxu0
        %v2236 = vadd.f32 0.0, %v2235
        %v2237 = vpop.f32.mrb[0].mxu0
        %2238 = vmatprep.mubr.f32.mxu0 0.0
        %2239 = vmatmul.mubr.f32.gmra.mrb[0].mxu0 %v2057
        %v2240 = vpop.f32.mrb[0].mxu0
        %v2241 = vadd.f32 0.0, %v2240
        %v2242 = vpop.f32.mrb[0].mxu0
        %2243 = vmatprep.mubr.f32.mxu0 0.0
        %2244 = vmatmul.mubr.f32.gmra.mrb[0].mxu0 %v2060
        %v2245 = vpop.f32.mrb[0].mxu0
        %v2246 = vadd.f32 0.0, %v2245
        %v2247 = vpop.f32.mrb[0].mxu0
        %2248 = vmatprep.mubr.f32.mxu0 0.0
        %2249 = vmatmul.mubr.f32.gmra.mrb[0].mxu0 %v2063
        %v2250 = vpop.f32.mrb[0].mxu0
        %v2251 = vadd.f32 0.0, %v2250
        %v2252 = vpop.f32.mrb[0].mxu0
        %2253 = vmatprep.mubr.f32.mxu0 0.0
        %2254 = vmatmul.mubr.f32.gmra.mrb[0].mxu0 %v2066
        %v2255 = vpop.f32.mrb[0].mxu0
        %v2256 = vadd.f32 0.0, %v2255
        %v2257 = vpop.f32.mrb[0].mxu0
        %2258 = vmatprep.mubr.f32.mxu0 0.0
        %2259 = vmatmul.mubr.f32.gmra.mrb[0].mxu0 %v2069
        %v2260 = vpop.f32.mrb[0].mxu0
        %v2261 = vadd.f32 0.0, %v2260
        %v2262 = vpop.f32.mrb[0].mxu0
        %2263 = vmatprep.mubr.f32.mxu0 0.0
        %2264 = vmatmul.mubr.f32.gmra.mrb[0].mxu0 %v2072
        %v2265 = vpop.f32.mrb[0].mxu0
        %v2266 = vadd.f32 0.0, %v2265
        %v2267 = vpop.f32.mrb[0].mxu0
        %2268 = vmatprep.mubr.f32.mxu0 0.0
        %2269 = vmatmul.mubr.f32.gmra.mrb[0].mxu0 %v2075
        %v2270 = vpop.f32.mrb[0].mxu0
        %v2271 = vadd.f32 0.0, %v2270
        %v2272 = vpop.f32.mrb[0].mxu0
        %2273 = vmatprep.mubr.f32.mxu0 0.0
        %2274 = vmatmul.mubr.f32.gmra.mrb[0].mxu0 %v2078
        %v2275 = vpop.f32.mrb[0].mxu0
        %v2276 = vadd.f32 0.0, %v2275
        %v2277 = vpop.f32.mrb[0].mxu0
        %2278 = vmatprep.mubr.f32.mxu0 0.0
        %2279 = vmatmul.mubr.f32.gmra.mrb[0].mxu0 %v2081
        %v2280 = vpop.f32.mrb[0].mxu0
        %v2281 = vadd.f32 0.0, %v2280
        %v2282 = vpop.f32.mrb[0].mxu0
        %2283 = vmatprep.mubr.f32.mxu0 0.0
        %2284 = vmatmul.mubr.f32.gmra.mrb[0].mxu0 %v2084
        %v2285 = vpop.f32.mrb[0].mxu0
        %v2286 = vadd.f32 0.0, %v2285
        %v2287 = vpop.f32.mrb[0].mxu0
        %2288 = vmatprep.mubr.f32.mxu0 0.0
        %2289 = vmatmul.mubr.f32.gmra.mrb[0].mxu0 %v2087
        %v2290 = vpop.f32.mrb[0].mxu0
        %v2291 = vadd.f32 0.0, %v2290
        %v2292 = vpop.f32.mrb[0].mxu0
        %2293 = vmatprep.mubr.f32.mxu0 0.0
        %2294 = vmatmul.mubr.f32.gmra.mrb[0].mxu0 %v2090
        %v2295 = vpop.f32.mrb[0].mxu0
        %v2296 = vadd.f32 0.0, %v2295
        %v2297 = vpop.f32.mrb[0].mxu0
        %2298 = vmatprep.mubr.f32.mxu0 0.0
        %2299 = vmatmul.mubr.f32.gmra.mrb[0].mxu0 %v2093
        %v2300 = vpop.f32.mrb[0].mxu0
        %v2301 = vadd.f32 0.0, %v2300
        %v2302 = vpop.f32.mrb[0].mxu0
        %2303 = vmatprep.mubr.f32.mxu0 0.0
        %2304 = vmatmul.mubr.f32.gmra.mrb[0].mxu0 %v2096
        %v2305 = vpop.f32.mrb[0].mxu0
        %v2306 = vadd.f32 0.0, %v2305
        %v2307 = vpop.f32.mrb[0].mxu0
        %2308 = vmatprep.mubr.f32.mxu0 0.0
        %2309 = vmatmul.mubr.f32.gmra.mrb[0].mxu0 %v2099
        %v2310 = vpop.f32.mrb[0].mxu0
        %v2311 = vadd.f32 0.0, %v2310
        %v2312 = vpop.f32.mrb[0].mxu0
        %2313 = vmatprep.mubr.f32.mxu0 0.0
        %2314 = vmatmul.mubr.f32.gmra.mrb[0].mxu0 %v2102
        %v2315 = vpop.f32.mrb[0].mxu0
        %v2316 = vadd.f32 0.0, %v2315
        %v2317 = vpop.f32.mrb[0].mxu0
        %2318 = vmatprep.mubr.f32.mxu0 0.0
        %2319 = vmatmul.mubr.f32.gmra.mrb[0].mxu0 %v2105
        %v2320 = vpop.f32.mrb[0].mxu0
        %v2321 = vadd.f32 0.0, %v2320
        %v2322 = vpop.f32.mrb[0].mxu0
        %2323 = vmatprep.mubr.f32.mxu0 0.0
        %2324 = vmatmul.mubr.f32.gmra.mrb[0].mxu0 %v2108
        %v2325 = vpop.f32.mrb[0].mxu0
        %v2326 = vadd.f32 0.0, %v2325
        %v2327 = vpop.f32.mrb[0].mxu0
        %2328 = vmatprep.mubr.f32.mxu0 0.0
        %2329 = vmatmul.mubr.f32.gmra.mrb[0].mxu0 %v2111
        %v2330 = vpop.f32.mrb[0].mxu0
        %v2331 = vadd.f32 0.0, %v2330
        %v2332 = vpop.f32.mrb[0].mxu0
        %2333 = vmatprep.mubr.f32.mxu0 0.0
        %2334 = vmatmul.mubr.f32.gmra.mrb[0].mxu0 %v2114
        %v2335 = vpop.f32.mrb[0].mxu0
        %v2336 = vadd.f32 0.0, %v2335
        %v2337 = vpop.f32.mrb[0].mxu0
        %2338 = vmatprep.mubr.f32.mxu0 0.0
        %2339 = vmatmul.mubr.f32.gmra.mrb[0].mxu0 %v2117
        %v2340 = vpop.f32.mrb[0].mxu0
        %v2341 = vadd.f32 0.0, %v2340
        %v2342 = vpop.f32.mrb[0].mxu0
        %2343 = vdwg.mxu0
        %v2344 = vadd.f32 %v1888, %v2186
        %v2345 = vadd.f32 %v1888, %v2191
        %v2346 = vadd.f32 %v1888, %v2196
        %v2347 = vadd.f32 %v1888, %v2201
        %v2348 = vadd.f32 %v1888, %v2206
        %v2349 = vadd.f32 %v1888, %v2211
        %v2350 = vadd.f32 %v1888, %v2216
        %v2351 = vadd.f32 %v1888, %v2221
        %v2352 = vadd.f32 %v1888, %v2226
        %v2353 = vadd.f32 %v1888, %v2231
        %v2354 = vadd.f32 %v1888, %v2236
        %v2355 = vadd.f32 %v1888, %v2241
        %v2356 = vadd.f32 %v1888, %v2246
        %v2357 = vadd.f32 %v1888, %v2251
        %v2358 = vadd.f32 %v1888, %v2256
        %v2359 = vadd.f32 %v1888, %v2261
        %v2360 = vadd.f32 %v1888, %v2266
        %v2361 = vadd.f32 %v1888, %v2271
        %v2362 = vadd.f32 %v1888, %v2276
        %v2363 = vadd.f32 %v1888, %v2281
        %v2364 = vadd.f32 %v1888, %v2286
        %v2365 = vadd.f32 %v1888, %v2291
        %v2366 = vadd.f32 %v1888, %v2296
        %v2367 = vadd.f32 %v1888, %v2301
        %v2368 = vadd.f32 %v1888, %v2306
        %v2369 = vadd.f32 %v1888, %v2311
        %v2370 = vadd.f32 %v1888, %v2316
        %v2371 = vadd.f32 %v1888, %v2321
        %v2372 = vadd.f32 %v1888, %v2326
        %v2373 = vadd.f32 %v1888, %v2331
        %v2374 = vadd.f32 %v1888, %v2336
        %v2375 = vadd.f32 %v1888, %v2341
        %v2376 = vld [vmem:[#allocation2] sm:$0x1]
        %v2377 = vmul.f32 %v2344, %v1788
        %v2378 = vmul.f32 %v2345, %v1789
        %v2379 = vmul.f32 %v2346, %v1790
        %v2380 = vmul.f32 %v2347, %v1791
        %v2381 = vmul.f32 %v2348, %v1792
        %v2382 = vmul.f32 %v2349, %v1793
        %v2383 = vmul.f32 %v2350, %v1794
        %v2384 = vmul.f32 %v2351, %v1795
        %v2385 = vmul.f32 %v2352, %v1796
        %v2386 = vmul.f32 %v2353, %v1797
        %v2387 = vmul.f32 %v2354, %v1798
        %v2388 = vmul.f32 %v2355, %v1799
        %v2389 = vmul.f32 %v2356, %v1800
        %v2390 = vmul.f32 %v2357, %v1801
        %v2391 = vmul.f32 %v2358, %v1802
        %v2392 = vmul.f32 %v2359, %v1803
        %v2393 = vmul.f32 %v2360, %v1804
        %v2394 = vmul.f32 %v2361, %v1805
        %v2395 = vmul.f32 %v2362, %v1806
        %v2396 = vmul.f32 %v2363, %v1807
        %v2397 = vmul.f32 %v2364, %v1808
        %v2398 = vmul.f32 %v2365, %v1809
        %v2399 = vmul.f32 %v2366, %v1810
        %v2400 = vmul.f32 %v2367, %v1811
        %v2401 = vmul.f32 %v2368, %v1812
        %v2402 = vmul.f32 %v2369, %v1813
        %v2403 = vmul.f32 %v2370, %v1814
        %v2404 = vmul.f32 %v2371, %v1815
        %v2405 = vmul.f32 %v2372, %v1816
        %v2406 = vmul.f32 %v2373, %v1817
        %v2407 = vmul.f32 %v2374, %v1818
        %v2408 = vmul.f32 %v2375, %v1819
        %v2410 = vlaneseq
        %v2411 = vshrl.u32 %v2410, 7
        %v2412 = vsub.s32 0, %v2411
        %v2413 = vrot.slane %v2376, %v2412
        %2414 = vset.pattern.permute.xlu0 0
        %2415 = vperm.xlu0 %2414, %v2413
        %v2416 = vpop.permute.xlu0 %2415
        %v2418 = vmul.f32 %v2416, %v2377
        %v2419 = vmul.f32 %v2416, %v2378
        %v2420 = vmul.f32 %v2416, %v2379
        %v2421 = vmul.f32 %v2416, %v2380
        %v2422 = vmul.f32 %v2416, %v2381
        %v2423 = vmul.f32 %v2416, %v2382
        %v2424 = vmul.f32 %v2416, %v2383
        %v2425 = vmul.f32 %v2416, %v2384
        %v2426 = vmul.f32 %v2416, %v2385
        %v2427 = vmul.f32 %v2416, %v2386
        %v2428 = vmul.f32 %v2416, %v2387
        %v2429 = vmul.f32 %v2416, %v2388
        %v2430 = vmul.f32 %v2416, %v2389
        %v2431 = vmul.f32 %v2416, %v2390
        %v2432 = vmul.f32 %v2416, %v2391
        %v2433 = vmul.f32 %v2416, %v2392
        %v2434 = vmul.f32 %v2416, %v2393
        %v2435 = vmul.f32 %v2416, %v2394
        %v2436 = vmul.f32 %v2416, %v2395
        %v2437 = vmul.f32 %v2416, %v2396
        %v2438 = vmul.f32 %v2416, %v2397
        %v2439 = vmul.f32 %v2416, %v2398
        %v2440 = vmul.f32 %v2416, %v2399
        %v2441 = vmul.f32 %v2416, %v2400
        %v2442 = vmul.f32 %v2416, %v2401
        %v2443 = vmul.f32 %v2416, %v2402
        %v2444 = vmul.f32 %v2416, %v2403
        %v2445 = vmul.f32 %v2416, %v2404
        %v2446 = vmul.f32 %v2416, %v2405
        %v2447 = vmul.f32 %v2416, %v2406
        %v2448 = vmul.f32 %v2416, %v2407
        %v2449 = vmul.f32 %v2416, %v2408
        %v2450 = vadd.f32 %v273, %v2418
        %v2451 = vadd.f32 %v274, %v2419
        %v2452 = vadd.f32 %v275, %v2420
        %v2453 = vadd.f32 %v276, %v2421
        %v2454 = vadd.f32 %v277, %v2422
        %v2455 = vadd.f32 %v278, %v2423
        %v2456 = vadd.f32 %v279, %v2424
        %v2457 = vadd.f32 %v280, %v2425
        %v2458 = vadd.f32 %v281, %v2426
        %v2459 = vadd.f32 %v282, %v2427
        %v2460 = vadd.f32 %v283, %v2428
        %v2461 = vadd.f32 %v284, %v2429
        %v2462 = vadd.f32 %v285, %v2430
        %v2463 = vadd.f32 %v286, %v2431
        %v2464 = vadd.f32 %v287, %v2432
        %v2465 = vadd.f32 %v288, %v2433
        %v2466 = vadd.f32 %v289, %v2434
        %v2467 = vadd.f32 %v290, %v2435
        %v2468 = vadd.f32 %v291, %v2436
        %v2469 = vadd.f32 %v292, %v2437
        %v2470 = vadd.f32 %v293, %v2438
        %v2471 = vadd.f32 %v294, %v2439
        %v2472 = vadd.f32 %v295, %v2440
        %v2473 = vadd.f32 %v296, %v2441
        %v2474 = vadd.f32 %v297, %v2442
        %v2475 = vadd.f32 %v298, %v2443
        %v2476 = vadd.f32 %v299, %v2444
        %v2477 = vadd.f32 %v300, %v2445
        %v2478 = vadd.f32 %v301, %v2446
        %v2479 = vadd.f32 %v302, %v2447
        %v2480 = vadd.f32 %v303, %v2448
        %v2481 = vadd.f32 %v304, %v2449
        %2482 = vst.msk [vmem:[%s261] sm:$0xff] %vm465, %v2450
        %2483 = vst.msk [vmem:[%s261 + $0x8] sm:$0xff] %vm465, %v2451
        %2484 = vst.msk [vmem:[%s261 + $0x10] sm:$0xff] %vm465, %v2452
        %2485 = vst.msk [vmem:[%s261 + $0x18] sm:$0xff] %vm465, %v2453
        %2486 = vst.msk [vmem:[%s261 + $0x20] sm:$0xff] %vm465, %v2454
        %2487 = vst.msk [vmem:[%s261 + $0x28] sm:$0xff] %vm465, %v2455
        %2488 = vst.msk [vmem:[%s261 + $0x30] sm:$0xff] %vm465, %v2456
        %2489 = vst.msk [vmem:[%s261 + $0x38] sm:$0xff] %vm465, %v2457
        %2490 = vst.msk [vmem:[%s261 + $0x40] sm:$0xff] %vm465, %v2458
        %2491 = vst.msk [vmem:[%s261 + $0x48] sm:$0xff] %vm465, %v2459
        %2492 = vst.msk [vmem:[%s261 + $0x50] sm:$0xff] %vm465, %v2460
        %2493 = vst.msk [vmem:[%s261 + $0x58] sm:$0xff] %vm465, %v2461
        %2494 = vst.msk [vmem:[%s261 + $0x60] sm:$0xff] %vm465, %v2462
        %2495 = vst.msk [vmem:[%s261 + $0x68] sm:$0xff] %vm465, %v2463
        %2496 = vst.msk [vmem:[%s261 + $0x70] sm:$0xff] %vm465, %v2464
        %2497 = vst.msk [vmem:[%s261 + $0x78] sm:$0xff] %vm465, %v2465
        %2498 = vst.msk [vmem:[%s261 + $0x80] sm:$0xff] %vm465, %v2466
        %2499 = vst.msk [vmem:[%s261 + $0x88] sm:$0xff] %vm465, %v2467
        %2500 = vst.msk [vmem:[%s261 + $0x90] sm:$0xff] %vm465, %v2468
        %2501 = vst.msk [vmem:[%s261 + $0x98] sm:$0xff] %vm465, %v2469
        %2502 = vst.msk [vmem:[%s261 + $0xa0] sm:$0xff] %vm465, %v2470
        %2503 = vst.msk [vmem:[%s261 + $0xa8] sm:$0xff] %vm465, %v2471
        %2504 = vst.msk [vmem:[%s261 + $0xb0] sm:$0xff] %vm465, %v2472
        %2505 = vst.msk [vmem:[%s261 + $0xb8] sm:$0xff] %vm465, %v2473
        %2506 = vst.msk [vmem:[%s261 + $0xc0] sm:$0xff] %vm465, %v2474
        %2507 = vst.msk [vmem:[%s261 + $0xc8] sm:$0xff] %vm465, %v2475
        %2508 = vst.msk [vmem:[%s261 + $0xd0] sm:$0xff] %vm465, %v2476
        %2509 = vst.msk [vmem:[%s261 + $0xd8] sm:$0xff] %vm465, %v2477
        %2510 = vst.msk [vmem:[%s261 + $0xe0] sm:$0xff] %vm465, %v2478
        %2511 = vst.msk [vmem:[%s261 + $0xe8] sm:$0xff] %vm465, %v2479
        %2512 = vst.msk [vmem:[%s261 + $0xf0] sm:$0xff] %vm465, %v2480
        %2513 = vst.msk [vmem:[%s261 + $0xf8] sm:$0xff] %vm465, %v2481
        %s2514 = sand.u32 %s166, 1
        %s2515 = scalar_lea.sflag [#allocation4], %s2514
        %s2516 = sand.u32 %s166, 1
        %s2517 = smul.addr %s2516, 256
        %s2518 = scalar_lea.vmem [#allocation3], %s2517
        // Predicated region
        $region45: #{ba_model_forward.5} parent=43 // pred_check
          %p2519 = pneg %p176
        $region46: #{ba_model_forward.5} parent=43 // pred_check_branch
          %2521 = sbr.rel (%p2519) target = $region48
        $region47: #{ba_model_forward.5} parent=43 // pred_region
          %s2523 = ssub.s32 4096, 4096
          %2524 = vsyncadd %s2515, %s2523
          %s2525 = smul.addr %s22, 32
          %s2526 = smul.addr %s2525, 128
          %s2527 = scalar_lea.hbm %s6, %s2526
          %s2528 = sshll.u32 %s2518, 4
          %s2529 = int_to_ptr.vmem [resolvable:$true] %s2528
          %2534 = dma.vmem_to_hbm [thread:$0]  %s2529, 4096, %s2527, %s2515, 128, 128, 8
        $region48: #{ba_model_forward.5} parent=43 // pred_fallthru
          _
      $region44: #{ba_model_forward.5} parent=5 // pred_fallthru
        _
      %p2535 = scmp.le.s32.totalorder 2, %s17
      // Predicated region
      $region49: #{ba_model_forward.5} parent=5 // pred_check
        %p2536 = pneg %p2535
      $region50: #{ba_model_forward.5} parent=5 // pred_check_branch
        %2538 = sbr.rel (%p2536) target = $region52
      $region51: #{ba_model_forward.5} parent=5 // pred_region
        %s2539 = ssub.s32 %s17, 2
        // Predicated region
        $region53: #{ba_model_forward.5} parent=51 // pred_check
          %p2540 = pneg %p182
        $region54: #{ba_model_forward.5} parent=51 // pred_check_branch
          %2542 = sbr.rel (%p2540) target = $region56
        $region55: #{ba_model_forward.5} parent=51 // pred_region
          %s2543 = sand.u32 %s167, 1
          %s2544 = scalar_lea.sflag [#allocation4], %s2543
          %s2545 = sand.u32 %s167, 1
          %s2546 = smul.addr %s2545, 256
          %s2547 = scalar_lea.vmem [#allocation3], %s2546
          %2548 = dma.done %s2544, 4096
        $region56: #{ba_model_forward.5} parent=51 // pred_fallthru
          _
      $region52: #{ba_model_forward.5} parent=5 // pred_fallthru
        _
    $region6: #{ba_model_forward.5} parent=1 // loop_footer
      %s21 = sadd.s32 1, %s17
    $region7: #{ba_model_forward.5} parent=1 // loop_footer_branch
      %16 = sbr.rel target = $region3
    $region8: #{ba_model_forward.5} parent=1 // loop_exit
      _
    %2549 = vsyncpa [#allocation4], 1
    %s2550 = scalar_lea.sflag [#allocation4], 1
    %2551 = vsyncpa %s2550, 1

</llo_original>
